<compile_context>
chip_gen: v7x
topology: tpu7x:2x2x1
jax: 0.10.0
libtpu: 0.0.40
codegen_flags: <defaults>
</compile_context>

<pallas_src>
import functools

import jax
import jax.numpy as jnp
import numpy as np
from jax import lax
from jax.experimental import pallas as pl
from jax.experimental.pallas import tpu as pltpu


def _silu(v):
    return v * jax.nn.sigmoid(v)


# ----------------------------------------------------------------------------
# Fused BottleneckCSP kernel: one (batch, row-tile) step per grid point.
# ----------------------------------------------------------------------------
def _make_csp_kernel(W, c1, c_, c2, TH, shortcut):
    f32, bf16 = jnp.float32, jnp.bfloat16
    S = TH * W            # positions owned by this tile
    E = TH + 4            # extended rows of the cv1 intermediate (2-row halo each side)

    def _im2col(pad_ref, rows):
        # pad_ref: (rows+2, W+2, c_) bf16, zero padded; returns (rows*W, 9*c_)
        taps = []
        for dy in range(3):
            for dx in range(3):
                taps.append(pad_ref[dy:dy + rows, dx:dx + W, :].reshape(rows * W, c_))
        return jnp.concatenate(taps, axis=-1)

    def kernel(x_tile_ref, x_top_ref, x_bot_ref,
               w12_ref, wm1_ref, wm2_ref, w3_ref, w4_ref,
               vc_ref, v2c_ref, b4_ref, o_ref, ypad, tpad):
        r = pl.program_id(1)
        T = pl.num_programs(1)
        b1 = vc_ref[0:1, :]
        bm1 = vc_ref[1:2, :]
        bm2 = vc_ref[2:3, :]

        # ---- cv1|cv2 fused 1x1 conv on the tile's own rows ----
        xm = x_tile_ref[0].reshape(S, c1).astype(bf16)
        xw = jnp.dot(xm, w12_ref[...], preferred_element_type=f32)      # (S, 2c_)
        y_main = _silu(xw[:, :c_] + b1)                                  # cv1 (f32)
        y2 = xw[:, c_:]                                                  # cv2 (raw)

        # ---- cv1 on the two 2-row halo blocks (recompute-overlap) ----
        def halo_y(x_ref):
            xh = x_ref[0].reshape(2 * W, c1).astype(bf16)
            h = jnp.dot(xh, w12_ref[...], preferred_element_type=f32)
            return _silu(h[:, :c_] + b1)                                 # (2W, c_)

        y_top = jnp.where(r > 0, halo_y(x_top_ref), 0.0)                 # zero = image pad
        y_bot = jnp.where(r < T - 1, halo_y(x_bot_ref), 0.0)

        # ---- assemble zero-padded y (bf16) for the first 3x3 conv ----
        zcol_y = jnp.zeros((E, 1, c_), bf16)
        ypad[:, 0:1, :] = zcol_y                                         # left pad col
        ypad[:, W + 1:W + 2, :] = zcol_y                                 # right pad col
        ypad[0:2, 1:W + 1, :] = y_top.reshape(2, W, c_).astype(bf16)
        ypad[2:TH + 2, 1:W + 1, :] = y_main.reshape(TH, W, c_).astype(bf16)
        ypad[TH + 2:E, 1:W + 1, :] = y_bot.reshape(2, W, c_).astype(bf16)

        # ---- Bottleneck conv #1: single im2col matmul, K = 9*c_ ----
        t_ext = _silu(jnp.dot(_im2col(ypad, TH + 2), wm1_ref[...],
                              preferred_element_type=f32) + bm1)         # ((TH+2)*W, c_)
        t3 = t_ext.reshape(TH + 2, W, c_)

        # ---- zero-padded t for the second 3x3 conv ----
        zcol_t = jnp.zeros((TH + 2, 1, c_), bf16)
        tpad[:, 0:1, :] = zcol_t
        tpad[:, W + 1:W + 2, :] = zcol_t
        tpad[0:1, 1:W + 1, :] = jnp.where(r > 0, t3[0:1], 0.0).astype(bf16)
        tpad[1:TH + 1, 1:W + 1, :] = t3[1:TH + 1].astype(bf16)
        tpad[TH + 1:TH + 2, 1:W + 1, :] = jnp.where(
            r < T - 1, t3[TH + 1:TH + 2], 0.0).astype(bf16)

        # ---- Bottleneck conv #2 + residual ----
        u = _silu(jnp.dot(_im2col(tpad, TH), wm2_ref[...],
                          preferred_element_type=f32) + bm2)             # (S, c_)
        m_out = y_main + u if shortcut else u

        # ---- cv3 (raw 1x1), cat(y1, y2), BN + SiLU, cv4 ----
        y1 = jnp.dot(m_out.astype(bf16), w3_ref[...], preferred_element_type=f32)
        ycat = jnp.concatenate([y1, y2], axis=-1)                        # (S, 2c_)
        z = _silu(ycat * v2c_ref[0:1, :] + v2c_ref[1:2, :])
        out = _silu(jnp.dot(z.astype(bf16), w4_ref[...],
                            preferred_element_type=f32) + b4_ref[...])
        o_ref[0] = out.reshape(TH, W, c2).astype(o_ref.dtype)

    return kernel


# ----------------------------------------------------------------------------
# Wrapper: NHWC in / NHWC out, grid = (batch, row_tiles)
# ----------------------------------------------------------------------------
@functools.partial(jax.jit, static_argnames=("shortcut", "tile_h"))
def bottleneck_csp_pallas(x_nhwc, params, shortcut=True, tile_h=None):
    N, H, W, c1 = x_nhwc.shape
    c_ = params["w3"].shape[0]
    c2 = params["b4"].shape[1]

    if tile_h is None:
        cands = [d for d in range(2, H + 1, 2) if H % d == 0 and d <= max(2, H // 2)]
        tile_h = max(cands) if cands else H
    assert H % 2 == 0 and tile_h % 2 == 0 and H % tile_h == 0
    T = H // tile_h
    th2 = tile_h // 2

    weights = (params["w12"], params["wm1c"], params["wm2c"], params["w3"],
               params["w4"], params["vc"], params["v2c"], params["b4"])

    in_specs = [
        # tile's own rows (auto-pipelined)
        pl.BlockSpec((1, tile_h, W, c1), lambda n, r: (n, r, 0, 0)),
        # 2-row top halo (previous tile's last 2 rows; clamped at the image top)
        pl.BlockSpec((1, 2, W, c1),
                     lambda n, r: (n, jnp.maximum(r * th2 - 1, 0), 0, 0)),
        # 2-row bottom halo (next tile's first 2 rows; clamped at the image bottom)
        pl.BlockSpec((1, 2, W, c1),
                     lambda n, r: (n, jnp.minimum(r * th2 + th2, H // 2 - 1), 0, 0)),
    ]
    for wgt in weights:  # resident weights (constant index maps)
        in_specs.append(pl.BlockSpec(wgt.shape, lambda n, r, nd=wgt.ndim: (0,) * nd))

    # Advisory cost estimate for the XLA scheduler.
    macs_per_pos = c1 * 2 * c_ + 18 * c_ * c_ + c_ * c_ + 2 * c_ * c2
    flops = 2 * N * H * W * macs_per_pos
    transcendentals = N * H * W * (5 * c_ + c2)
    bytes_accessed = (x_nhwc.size * x_nhwc.dtype.itemsize
                      + N * H * W * c2 * x_nhwc.dtype.itemsize
                      + sum(int(w.size) * w.dtype.itemsize for w in weights))

    out = pl.pallas_call(
        _make_csp_kernel(W, c1, c_, c2, tile_h, shortcut),
        out_shape=jax.ShapeDtypeStruct((N, H, W, c2), x_nhwc.dtype),
        grid_spec=pltpu.PrefetchScalarGridSpec(
            num_scalar_prefetch=0,
            grid=(N, T),
            in_specs=in_specs,
            out_specs=pl.BlockSpec((1, tile_h, W, c2), lambda n, r: (n, r, 0, 0)),
            scratch_shapes=[
                pltpu.VMEM((tile_h + 4, W + 2, c_), jnp.bfloat16),   # padded y
                pltpu.VMEM((tile_h + 2, W + 2, c_), jnp.bfloat16),   # padded t
            ]),
        compiler_params=pltpu.CompilerParams(
            dimension_semantics=("parallel", "parallel"),
            vmem_limit_bytes=48 * 1024 * 1024),
        cost_estimate=pl.CostEstimate(flops=flops,
                                      transcendentals=transcendentals,
                                      bytes_accessed=bytes_accessed),
    )(x_nhwc, x_nhwc, x_nhwc, *weights)
    return out


def bottleneck_csp_pallas_nchw(x_nchw, params, shortcut=True, tile_h=None):
    # Convenience wrapper for PyTorch's NCHW layout (adds two transposes).
    x = jnp.transpose(x_nchw, (0, 2, 3, 1))
    out = bottleneck_csp_pallas(x, params, shortcut=shortcut, tile_h=tile_h)
    return jnp.transpose(out, (0, 3, 1, 2))


# ----------------------------------------------------------------------------
# Deterministic parameters + eval-mode BN folding.
# ----------------------------------------------------------------------------
def _bn_params(c, salt):
    idx = jnp.arange(c, dtype=jnp.float32)
    gamma = 1.0 + 0.10 * jnp.cos(idx + salt)
    beta = 0.05 * jnp.sin(idx + salt)
    mean = 0.01 * idx
    var = 1.0 + 0.02 * idx
    return gamma, beta, mean, var


def _fold_bn(w, c_out, salt, eps=1e-5):
    gamma, beta, mean, var = _bn_params(c_out, salt)
    scale = gamma / jnp.sqrt(var + eps)
    return w * scale, beta - mean * scale      # scale output channels


def init_params(c1, c2, e=0.5, seed=0):
    c_ = int(c2 * e)
    ks = jax.random.split(jax.random.PRNGKey(seed), 6)
    bf16 = jnp.bfloat16

    w1 = 0.4 * jax.random.normal(ks[0], (c1, c_), jnp.float32)
    w1, b1 = _fold_bn(w1, c_, 0.0)
    w2 = 0.4 * jax.random.normal(ks[4], (c1, c_), jnp.float32)        # raw cv2
    w12 = jnp.concatenate([w1, w2], axis=1)                           # (c1, 2c_)

    wm1 = 0.25 * jax.random.normal(ks[1], (9, c_, c_), jnp.float32)
    wm1, bm1 = _fold_bn(wm1, c_, 1.0)
    wm2 = 0.25 * jax.random.normal(ks[2], (9, c_, c_), jnp.float32)
    wm2, bm2 = _fold_bn(wm2, c_, 2.0)

    w3 = 0.4 * jax.random.normal(ks[3], (c_, c_), jnp.float32)        # raw cv3

    gamma, beta, mean, var = _bn_params(2 * c_, 3.0)                  # standalone BN(2c_)
    s = gamma / jnp.sqrt(var + 1e-5)
    t = beta - mean * s

    w4 = 0.4 * jax.random.normal(ks[5], (2 * c_, c2), jnp.float32)
    w4, b4 = _fold_bn(w4, c2, 4.0)

    return {
        # MXU multiplicands stored bf16; biases / BN affine in f32
        "w12": w12.astype(bf16),                        # cv1 | cv2 fused (c1, 2c_)
        "wm1c": wm1.reshape(9 * c_, c_).astype(bf16),   # im2col weight #1
        "wm2c": wm2.reshape(9 * c_, c_).astype(bf16),   # im2col weight #2
        "w3": w3.astype(bf16),
        "w4": w4.astype(bf16),                          # original (2c_, c2)
        "vc": jnp.stack([b1, bm1, bm2]),                # (3, c_)  f32
        "v2c": jnp.stack([s, t]),                       # (2, 2c_) f32
        "b4": b4.reshape(1, c2),                        # (1, c2)  f32
    }


# ----------------------------------------------------------------------------
# Pure-JAX reference (NHWC, same bf16-multiplicand / f32-accumulate policy)
# ----------------------------------------------------------------------------
def bottleneck_csp_ref(x_nhwc, params, shortcut=True):
    f32, bf16 = jnp.float32, jnp.bfloat16
    silu = lambda v: v * jax.nn.sigmoid(v)
    c_ = params["w3"].shape[0]

    w1 = params["w12"][:, :c_]
    w2 = params["w12"][:, c_:]
    b1, bm1, bm2 = params["vc"][0], params["vc"][1], params["vc"][2]
    s, t = params["v2c"][0], params["v2c"][1]

    def pw(inp, w):                                    # 1x1 conv as matmul
        return jnp.einsum("nhwc,cd->nhwd", inp.astype(bf16), w,
                          preferred_element_type=f32)

    def conv3x3(inp, w_col, b):
        ci = w_col.shape[0] // 9
        co = w_col.shape[1]
        w_hwio = w_col.reshape(3, 3, ci, co)
        out = lax.conv_general_dilated(
            inp.astype(bf16), w_hwio, (1, 1), "SAME",
            dimension_numbers=("NHWC", "HWIO", "NHWC"),
            preferred_element_type=f32)
        return silu(out + b)

    x = x_nhwc.astype(f32)
    y = silu(pw(x, w1) + b1)
    tt = conv3x3(y, params["wm1c"], bm1)
    u = conv3x3(tt, params["wm2c"], bm2)
    m_out = y + u if shortcut else u
    y1 = pw(m_out, params["w3"])
    y2 = pw(x, w2)
    ycat = jnp.concatenate([y1, y2], axis=-1)
    z = silu(ycat * s + t)
    return silu(pw(z, params["w4"]) + params["b4"][0])


# ----------------------------------------------------------------------------
if __name__ == "__main__":
    c1, c2 = 4, 4                 # BottleneckCSP(c1=4, c2=4, n=1, e=0.5) -> c_=2
    N, H, W = 2, 16, 16

    params = init_params(c1, c2, e=0.5, seed=0)
    # NHWC activations (kernel-native layout; NCHW parity via the _nchw wrapper)
    x = jax.random.normal(jax.random.PRNGKey(0), (N, H, W, c1), jnp.float32)

    out = bottleneck_csp_pallas(x, params, shortcut=True, tile_h=8)
    out = jax.block_until_ready(out)

    ref = bottleneck_csp_ref(x, params, shortcut=True)
    np.testing.assert_allclose(np.asarray(out), np.asarray(ref),
                               rtol=2e-3, atol=2e-3)
    assert out.shape == (N, H, W, c2)
    print("KERNEL_OK")
</pallas_src>

<mosaic_0001>
module attributes {stable_mosaic.version = 11 : i64} {
  func.func @kernel(%arg0: i32, %arg1: i32, %arg2: memref<1x8x16x4xf32, #tpu.memory_space<vmem>>, %arg3: memref<1x2x16x4xf32, #tpu.memory_space<vmem>>, %arg4: memref<1x2x16x4xf32, #tpu.memory_space<vmem>>, %arg5: memref<4x4xbf16, #tpu.memory_space<vmem>>, %arg6: memref<18x2xbf16, #tpu.memory_space<vmem>>, %arg7: memref<18x2xbf16, #tpu.memory_space<vmem>>, %arg8: memref<2x2xbf16, #tpu.memory_space<vmem>>, %arg9: memref<4x4xbf16, #tpu.memory_space<vmem>>, %arg10: memref<3x2xf32, #tpu.memory_space<vmem>>, %arg11: memref<2x4xf32, #tpu.memory_space<vmem>>, %arg12: memref<1x4xf32, #tpu.memory_space<vmem>>, %arg13: memref<1x8x16x4xf32, #tpu.memory_space<vmem>>, %arg14: memref<12x18x2xbf16, #tpu.memory_space<vmem>>, %arg15: memref<10x18x2xbf16, #tpu.memory_space<vmem>>) attributes {dimension_semantics = [#tpu.dimension_semantics<parallel>, #tpu.dimension_semantics<parallel>], iteration_bounds = array<i64: 2, 2>, scalar_prefetch = 0 : i64, scratch_operands = 2 : i64, tpu.core_type = #tpu.core_type<tc>, window_params = [{transform_indices = @transform_0, window_bounds = array<i64: 1, 8, 16, 4>}, {transform_indices = @transform_1, window_bounds = array<i64: 1, 2, 16, 4>}, {transform_indices = @transform_2, window_bounds = array<i64: 1, 2, 16, 4>}, {pipeline_mode = #tpu.pipeline_mode<synchronous>, transform_indices = @transform_3, window_bounds = array<i64: 4, 4>}, {pipeline_mode = #tpu.pipeline_mode<synchronous>, transform_indices = @transform_4, window_bounds = array<i64: 18, 2>}, {pipeline_mode = #tpu.pipeline_mode<synchronous>, transform_indices = @transform_5, window_bounds = array<i64: 18, 2>}, {pipeline_mode = #tpu.pipeline_mode<synchronous>, transform_indices = @transform_6, window_bounds = array<i64: 2, 2>}, {pipeline_mode = #tpu.pipeline_mode<synchronous>, transform_indices = @transform_7, window_bounds = array<i64: 4, 4>}, {pipeline_mode = #tpu.pipeline_mode<synchronous>, transform_indices = @transform_8, window_bounds = array<i64: 3, 2>}, {pipeline_mode = #tpu.pipeline_mode<synchronous>, transform_indices = @transform_9, window_bounds = array<i64: 2, 4>}, {pipeline_mode = #tpu.pipeline_mode<synchronous>, transform_indices = @transform_10, window_bounds = array<i64: 1, 4>}, {transform_indices = @transform_11, window_bounds = array<i64: 1, 8, 16, 4>}]} {
    %c0 = arith.constant 0 : index
    %c0_0 = arith.constant 0 : index
    %0 = vector.load %arg10[%c0, %c0_0] : memref<3x2xf32, #tpu.memory_space<vmem>>, vector<1x2xf32>
    %c1 = arith.constant 1 : index
    %c0_1 = arith.constant 0 : index
    %1 = vector.load %arg10[%c1, %c0_1] : memref<3x2xf32, #tpu.memory_space<vmem>>, vector<1x2xf32>
    %c2 = arith.constant 2 : index
    %c0_2 = arith.constant 0 : index
    %2 = vector.load %arg10[%c2, %c0_2] : memref<3x2xf32, #tpu.memory_space<vmem>>, vector<1x2xf32>
    %c0_3 = arith.constant 0 : index
    %c0_4 = arith.constant 0 : index
    %c0_5 = arith.constant 0 : index
    %c0_6 = arith.constant 0 : index
    %3 = vector.load %arg2[%c0_3, %c0_4, %c0_5, %c0_6] : memref<1x8x16x4xf32, #tpu.memory_space<vmem>>, vector<1x8x16x4xf32>
    %4 = vector.shape_cast %3 : vector<1x8x16x4xf32> to vector<8x16x4xf32>
    %5 = vector.shape_cast %4 : vector<8x16x4xf32> to vector<128x4xf32>
    %6 = arith.truncf %5 : vector<128x4xf32> to vector<128x4xbf16>
    %c0_7 = arith.constant 0 : index
    %c0_8 = arith.constant 0 : index
    %7 = vector.load %arg5[%c0_7, %c0_8] : memref<4x4xbf16, #tpu.memory_space<vmem>>, vector<4x4xbf16>
    %cst = arith.constant dense<0.000000e+00> : vector<128x4xf32>
    %8 = tpu.matmul %6, %7, %cst {dimension_numbers = #tpu.dot_dimension_numbers<[1], [0], [0], [1], [0, 0, 1, 1], [], []>} : vector<128x4xbf16>, vector<4x4xbf16>, vector<128x4xf32> -> vector<128x4xf32>
    %9 = vector.extract_strided_slice %8 {offsets = [0, 0], sizes = [128, 2], strides = [1, 1]} : vector<128x4xf32> to vector<128x2xf32>
    %10 = vector.broadcast %0 : vector<1x2xf32> to vector<128x2xf32>
    %11 = arith.addf %9, %10 : vector<128x2xf32>
    %12 = arith.negf %11 : vector<128x2xf32>
    %13 = math.exp %12 : vector<128x2xf32>
    %cst_9 = arith.constant 1.000000e+00 : f32
    %14 = vector.broadcast %cst_9 : f32 to vector<128x2xf32>
    %15 = arith.addf %14, %13 : vector<128x2xf32>
    %16 = arith.divf %14, %15 : vector<128x2xf32>
    %17 = arith.mulf %11, %16 : vector<128x2xf32>
    %18 = vector.extract_strided_slice %8 {offsets = [0, 2], sizes = [128, 2], strides = [1, 1]} : vector<128x4xf32> to vector<128x2xf32>
    %c0_i32 = arith.constant 0 : i32
    %19 = arith.cmpi sgt, %arg1, %c0_i32 : i32
    %c0_10 = arith.constant 0 : index
    %c0_11 = arith.constant 0 : index
    %c0_12 = arith.constant 0 : index
    %c0_13 = arith.constant 0 : index
    %20 = vector.load %arg3[%c0_10, %c0_11, %c0_12, %c0_13] : memref<1x2x16x4xf32, #tpu.memory_space<vmem>>, vector<1x2x16x4xf32>
    %21 = vector.shape_cast %20 : vector<1x2x16x4xf32> to vector<2x16x4xf32>
    %22 = vector.shape_cast %21 : vector<2x16x4xf32> to vector<32x4xf32>
    %23 = arith.truncf %22 : vector<32x4xf32> to vector<32x4xbf16>
    %c0_14 = arith.constant 0 : index
    %c0_15 = arith.constant 0 : index
    %24 = vector.load %arg5[%c0_14, %c0_15] : memref<4x4xbf16, #tpu.memory_space<vmem>>, vector<4x4xbf16>
    %cst_16 = arith.constant dense<0.000000e+00> : vector<32x4xf32>
    %25 = tpu.matmul %23, %24, %cst_16 {dimension_numbers = #tpu.dot_dimension_numbers<[1], [0], [0], [1], [0, 0, 1, 1], [], []>} : vector<32x4xbf16>, vector<4x4xbf16>, vector<32x4xf32> -> vector<32x4xf32>
    %26 = vector.extract_strided_slice %25 {offsets = [0, 0], sizes = [32, 2], strides = [1, 1]} : vector<32x4xf32> to vector<32x2xf32>
    %27 = vector.broadcast %0 : vector<1x2xf32> to vector<32x2xf32>
    %28 = arith.addf %26, %27 : vector<32x2xf32>
    %29 = arith.negf %28 : vector<32x2xf32>
    %30 = math.exp %29 : vector<32x2xf32>
    %cst_17 = arith.constant 1.000000e+00 : f32
    %31 = vector.broadcast %cst_17 : f32 to vector<32x2xf32>
    %32 = arith.addf %31, %30 : vector<32x2xf32>
    %33 = arith.divf %31, %32 : vector<32x2xf32>
    %34 = arith.mulf %28, %33 : vector<32x2xf32>
    %cst_18 = arith.constant 0.000000e+00 : f32
    %35 = vector.broadcast %cst_18 : f32 to vector<32x2xf32>
    %36 = arith.select %19, %34, %35 : vector<32x2xf32>
    %c1_i32 = arith.constant 1 : i32
    %37 = arith.cmpi slt, %arg1, %c1_i32 : i32
    %c0_19 = arith.constant 0 : index
    %c0_20 = arith.constant 0 : index
    %c0_21 = arith.constant 0 : index
    %c0_22 = arith.constant 0 : index
    %38 = vector.load %arg4[%c0_19, %c0_20, %c0_21, %c0_22] : memref<1x2x16x4xf32, #tpu.memory_space<vmem>>, vector<1x2x16x4xf32>
    %39 = vector.shape_cast %38 : vector<1x2x16x4xf32> to vector<2x16x4xf32>
    %40 = vector.shape_cast %39 : vector<2x16x4xf32> to vector<32x4xf32>
    %41 = arith.truncf %40 : vector<32x4xf32> to vector<32x4xbf16>
    %c0_23 = arith.constant 0 : index
    %c0_24 = arith.constant 0 : index
    %42 = vector.load %arg5[%c0_23, %c0_24] : memref<4x4xbf16, #tpu.memory_space<vmem>>, vector<4x4xbf16>
    %cst_25 = arith.constant dense<0.000000e+00> : vector<32x4xf32>
    %43 = tpu.matmul %41, %42, %cst_25 {dimension_numbers = #tpu.dot_dimension_numbers<[1], [0], [0], [1], [0, 0, 1, 1], [], []>} : vector<32x4xbf16>, vector<4x4xbf16>, vector<32x4xf32> -> vector<32x4xf32>
    %44 = vector.extract_strided_slice %43 {offsets = [0, 0], sizes = [32, 2], strides = [1, 1]} : vector<32x4xf32> to vector<32x2xf32>
    %45 = vector.broadcast %0 : vector<1x2xf32> to vector<32x2xf32>
    %46 = arith.addf %44, %45 : vector<32x2xf32>
    %47 = arith.negf %46 : vector<32x2xf32>
    %48 = math.exp %47 : vector<32x2xf32>
    %cst_26 = arith.constant 1.000000e+00 : f32
    %49 = vector.broadcast %cst_26 : f32 to vector<32x2xf32>
    %50 = arith.addf %49, %48 : vector<32x2xf32>
    %51 = arith.divf %49, %50 : vector<32x2xf32>
    %52 = arith.mulf %46, %51 : vector<32x2xf32>
    %cst_27 = arith.constant 0.000000e+00 : f32
    %53 = vector.broadcast %cst_27 : f32 to vector<32x2xf32>
    %54 = arith.select %37, %52, %53 : vector<32x2xf32>
    %cst_28 = arith.constant 0.000000e+00 : bf16
    %55 = vector.broadcast %cst_28 : bf16 to vector<12x1x2xbf16>
    %c0_29 = arith.constant 0 : index
    %c0_30 = arith.constant 0 : index
    %c0_31 = arith.constant 0 : index
    %56 = vector.load %arg14[%c0_29, %c0_30, %c0_31] : memref<12x18x2xbf16, #tpu.memory_space<vmem>>, vector<12x1x2xbf16>
    tpu.vector_store %arg14[%c0_29, %c0_30, %c0_31], %55 {strides = array<i32>} : memref<12x18x2xbf16, #tpu.memory_space<vmem>>, vector<12x1x2xbf16>,
    %c0_32 = arith.constant 0 : index
    %c17 = arith.constant 17 : index
    %c0_33 = arith.constant 0 : index
    %57 = vector.load %arg14[%c0_32, %c17, %c0_33] : memref<12x18x2xbf16, #tpu.memory_space<vmem>>, vector<12x1x2xbf16>
    tpu.vector_store %arg14[%c0_32, %c17, %c0_33], %55 {strides = array<i32>} : memref<12x18x2xbf16, #tpu.memory_space<vmem>>, vector<12x1x2xbf16>,
    %58 = vector.shape_cast %36 : vector<32x2xf32> to vector<2x16x2xf32>
    %59 = arith.truncf %58 : vector<2x16x2xf32> to vector<2x16x2xbf16>
    %c0_34 = arith.constant 0 : index
    %c1_35 = arith.constant 1 : index
    %c0_36 = arith.constant 0 : index
    %60 = vector.load %arg14[%c0_34, %c1_35, %c0_36] : memref<12x18x2xbf16, #tpu.memory_space<vmem>>, vector<2x16x2xbf16>
    tpu.vector_store %arg14[%c0_34, %c1_35, %c0_36], %59 {strides = array<i32>} : memref<12x18x2xbf16, #tpu.memory_space<vmem>>, vector<2x16x2xbf16>,
    %61 = vector.shape_cast %17 : vector<128x2xf32> to vector<8x16x2xf32>
    %62 = arith.truncf %61 : vector<8x16x2xf32> to vector<8x16x2xbf16>
    %c2_37 = arith.constant 2 : index
    %c1_38 = arith.constant 1 : index
    %c0_39 = arith.constant 0 : index
    %63 = vector.load %arg14[%c2_37, %c1_38, %c0_39] : memref<12x18x2xbf16, #tpu.memory_space<vmem>>, vector<8x16x2xbf16>
    tpu.vector_store %arg14[%c2_37, %c1_38, %c0_39], %62 {strides = array<i32>} : memref<12x18x2xbf16, #tpu.memory_space<vmem>>, vector<8x16x2xbf16>,
    %64 = vector.shape_cast %54 : vector<32x2xf32> to vector<2x16x2xf32>
    %65 = arith.truncf %64 : vector<2x16x2xf32> to vector<2x16x2xbf16>
    %c10 = arith.constant 10 : index
    %c1_40 = arith.constant 1 : index
    %c0_41 = arith.constant 0 : index
    %66 = vector.load %arg14[%c10, %c1_40, %c0_41] : memref<12x18x2xbf16, #tpu.memory_space<vmem>>, vector<2x16x2xbf16>
    tpu.vector_store %arg14[%c10, %c1_40, %c0_41], %65 {strides = array<i32>} : memref<12x18x2xbf16, #tpu.memory_space<vmem>>, vector<2x16x2xbf16>,
    %c0_42 = arith.constant 0 : index
    %c0_43 = arith.constant 0 : index
    %c0_44 = arith.constant 0 : index
    %67 = vector.load %arg14[%c0_42, %c0_43, %c0_44] : memref<12x18x2xbf16, #tpu.memory_space<vmem>>, vector<10x16x2xbf16>
    %68 = vector.shape_cast %67 : vector<10x16x2xbf16> to vector<160x2xbf16>
    %c0_45 = arith.constant 0 : index
    %c1_46 = arith.constant 1 : index
    %c0_47 = arith.constant 0 : index
    %69 = vector.load %arg14[%c0_45, %c1_46, %c0_47] : memref<12x18x2xbf16, #tpu.memory_space<vmem>>, vector<10x16x2xbf16>
    %70 = vector.shape_cast %69 : vector<10x16x2xbf16> to vector<160x2xbf16>
    %c0_48 = arith.constant 0 : index
    %c2_49 = arith.constant 2 : index
    %c0_50 = arith.constant 0 : index
    %71 = vector.load %arg14[%c0_48, %c2_49, %c0_50] : memref<12x18x2xbf16, #tpu.memory_space<vmem>>, vector<10x16x2xbf16>
    %72 = vector.shape_cast %71 : vector<10x16x2xbf16> to vector<160x2xbf16>
    %c1_51 = arith.constant 1 : index
    %c0_52 = arith.constant 0 : index
    %c0_53 = arith.constant 0 : index
    %73 = vector.load %arg14[%c1_51, %c0_52, %c0_53] : memref<12x18x2xbf16, #tpu.memory_space<vmem>>, vector<10x16x2xbf16>
    %74 = vector.shape_cast %73 : vector<10x16x2xbf16> to vector<160x2xbf16>
    %c1_54 = arith.constant 1 : index
    %c1_55 = arith.constant 1 : index
    %c0_56 = arith.constant 0 : index
    %75 = vector.load %arg14[%c1_54, %c1_55, %c0_56] : memref<12x18x2xbf16, #tpu.memory_space<vmem>>, vector<10x16x2xbf16>
    %76 = vector.shape_cast %75 : vector<10x16x2xbf16> to vector<160x2xbf16>
    %c1_57 = arith.constant 1 : index
    %c2_58 = arith.constant 2 : index
    %c0_59 = arith.constant 0 : index
    %77 = vector.load %arg14[%c1_57, %c2_58, %c0_59] : memref<12x18x2xbf16, #tpu.memory_space<vmem>>, vector<10x16x2xbf16>
    %78 = vector.shape_cast %77 : vector<10x16x2xbf16> to vector<160x2xbf16>
    %c2_60 = arith.constant 2 : index
    %c0_61 = arith.constant 0 : index
    %c0_62 = arith.constant 0 : index
    %79 = vector.load %arg14[%c2_60, %c0_61, %c0_62] : memref<12x18x2xbf16, #tpu.memory_space<vmem>>, vector<10x16x2xbf16>
    %80 = vector.shape_cast %79 : vector<10x16x2xbf16> to vector<160x2xbf16>
    %c2_63 = arith.constant 2 : index
    %c1_64 = arith.constant 1 : index
    %c0_65 = arith.constant 0 : index
    %81 = vector.load %arg14[%c2_63, %c1_64, %c0_65] : memref<12x18x2xbf16, #tpu.memory_space<vmem>>, vector<10x16x2xbf16>
    %82 = vector.shape_cast %81 : vector<10x16x2xbf16> to vector<160x2xbf16>
    %c2_66 = arith.constant 2 : index
    %c2_67 = arith.constant 2 : index
    %c0_68 = arith.constant 0 : index
    %83 = vector.load %arg14[%c2_66, %c2_67, %c0_68] : memref<12x18x2xbf16, #tpu.memory_space<vmem>>, vector<10x16x2xbf16>
    %84 = vector.shape_cast %83 : vector<10x16x2xbf16> to vector<160x2xbf16>
    %85 = tpu.concatenate %68, %70, %72, %74, %76, %78, %80, %82, %84 in 1 : vector<160x2xbf16>, vector<160x2xbf16>, vector<160x2xbf16>, vector<160x2xbf16>, vector<160x2xbf16>, vector<160x2xbf16>, vector<160x2xbf16>, vector<160x2xbf16>, vector<160x2xbf16> -> vector<160x18xbf16>
    %c0_69 = arith.constant 0 : index
    %c0_70 = arith.constant 0 : index
    %86 = vector.load %arg6[%c0_69, %c0_70] : memref<18x2xbf16, #tpu.memory_space<vmem>>, vector<18x2xbf16>
    %cst_71 = arith.constant dense<0.000000e+00> : vector<160x2xf32>
    %87 = tpu.matmul %85, %86, %cst_71 {dimension_numbers = #tpu.dot_dimension_numbers<[1], [0], [0], [1], [0, 0, 1, 1], [], []>} : vector<160x18xbf16>, vector<18x2xbf16>, vector<160x2xf32> -> vector<160x2xf32>
    %88 = vector.broadcast %1 : vector<1x2xf32> to vector<160x2xf32>
    %89 = arith.addf %87, %88 : vector<160x2xf32>
    %90 = arith.negf %89 : vector<160x2xf32>
    %91 = math.exp %90 : vector<160x2xf32>
    %cst_72 = arith.constant 1.000000e+00 : f32
    %92 = vector.broadcast %cst_72 : f32 to vector<160x2xf32>
    %93 = arith.addf %92, %91 : vector<160x2xf32>
    %94 = arith.divf %92, %93 : vector<160x2xf32>
    %95 = arith.mulf %89, %94 : vector<160x2xf32>
    %96 = vector.shape_cast %95 : vector<160x2xf32> to vector<10x16x2xf32>
    %cst_73 = arith.constant 0.000000e+00 : bf16
    %97 = vector.broadcast %cst_73 : bf16 to vector<10x1x2xbf16>
    %c0_74 = arith.constant 0 : index
    %c0_75 = arith.constant 0 : index
    %c0_76 = arith.constant 0 : index
    %98 = vector.load %arg15[%c0_74, %c0_75, %c0_76] : memref<10x18x2xbf16, #tpu.memory_space<vmem>>, vector<10x1x2xbf16>
    tpu.vector_store %arg15[%c0_74, %c0_75, %c0_76], %97 {strides = array<i32>} : memref<10x18x2xbf16, #tpu.memory_space<vmem>>, vector<10x1x2xbf16>,
    %c0_77 = arith.constant 0 : index
    %c17_78 = arith.constant 17 : index
    %c0_79 = arith.constant 0 : index
    %99 = vector.load %arg15[%c0_77, %c17_78, %c0_79] : memref<10x18x2xbf16, #tpu.memory_space<vmem>>, vector<10x1x2xbf16>
    tpu.vector_store %arg15[%c0_77, %c17_78, %c0_79], %97 {strides = array<i32>} : memref<10x18x2xbf16, #tpu.memory_space<vmem>>, vector<10x1x2xbf16>,
    %c0_i32_80 = arith.constant 0 : i32
    %100 = arith.cmpi sgt, %arg1, %c0_i32_80 : i32
    %101 = vector.extract_strided_slice %96 {offsets = [0, 0, 0], sizes = [1, 16, 2], strides = [1, 1, 1]} : vector<10x16x2xf32> to vector<1x16x2xf32>
    %cst_81 = arith.constant 0.000000e+00 : f32
    %102 = vector.broadcast %cst_81 : f32 to vector<1x16x2xf32>
    %103 = arith.select %100, %101, %102 : vector<1x16x2xf32>
    %104 = arith.truncf %103 : vector<1x16x2xf32> to vector<1x16x2xbf16>
    %c0_82 = arith.constant 0 : index
    %c1_83 = arith.constant 1 : index
    %c0_84 = arith.constant 0 : index
    %105 = vector.load %arg15[%c0_82, %c1_83, %c0_84] : memref<10x18x2xbf16, #tpu.memory_space<vmem>>, vector<1x16x2xbf16>
    tpu.vector_store %arg15[%c0_82, %c1_83, %c0_84], %104 {strides = array<i32>} : memref<10x18x2xbf16, #tpu.memory_space<vmem>>, vector<1x16x2xbf16>,
    %106 = vector.extract_strided_slice %96 {offsets = [1, 0, 0], sizes = [8, 16, 2], strides = [1, 1, 1]} : vector<10x16x2xf32> to vector<8x16x2xf32>
    %107 = arith.truncf %106 : vector<8x16x2xf32> to vector<8x16x2xbf16>
    %c1_85 = arith.constant 1 : index
    %c1_86 = arith.constant 1 : index
    %c0_87 = arith.constant 0 : index
    %108 = vector.load %arg15[%c1_85, %c1_86, %c0_87] : memref<10x18x2xbf16, #tpu.memory_space<vmem>>, vector<8x16x2xbf16>
    tpu.vector_store %arg15[%c1_85, %c1_86, %c0_87], %107 {strides = array<i32>} : memref<10x18x2xbf16, #tpu.memory_space<vmem>>, vector<8x16x2xbf16>,
    %c1_i32_88 = arith.constant 1 : i32
    %109 = arith.cmpi slt, %arg1, %c1_i32_88 : i32
    %110 = vector.extract_strided_slice %96 {offsets = [9, 0, 0], sizes = [1, 16, 2], strides = [1, 1, 1]} : vector<10x16x2xf32> to vector<1x16x2xf32>
    %cst_89 = arith.constant 0.000000e+00 : f32
    %111 = vector.broadcast %cst_89 : f32 to vector<1x16x2xf32>
    %112 = arith.select %109, %110, %111 : vector<1x16x2xf32>
    %113 = arith.truncf %112 : vector<1x16x2xf32> to vector<1x16x2xbf16>
    %c9 = arith.constant 9 : index
    %c1_90 = arith.constant 1 : index
    %c0_91 = arith.constant 0 : index
    %114 = vector.load %arg15[%c9, %c1_90, %c0_91] : memref<10x18x2xbf16, #tpu.memory_space<vmem>>, vector<1x16x2xbf16>
    tpu.vector_store %arg15[%c9, %c1_90, %c0_91], %113 {strides = array<i32>} : memref<10x18x2xbf16, #tpu.memory_space<vmem>>, vector<1x16x2xbf16>,
    %c0_92 = arith.constant 0 : index
    %c0_93 = arith.constant 0 : index
    %c0_94 = arith.constant 0 : index
    %115 = vector.load %arg15[%c0_92, %c0_93, %c0_94] : memref<10x18x2xbf16, #tpu.memory_space<vmem>>, vector<8x16x2xbf16>
    %116 = vector.shape_cast %115 : vector<8x16x2xbf16> to vector<128x2xbf16>
    %c0_95 = arith.constant 0 : index
    %c1_96 = arith.constant 1 : index
    %c0_97 = arith.constant 0 : index
    %117 = vector.load %arg15[%c0_95, %c1_96, %c0_97] : memref<10x18x2xbf16, #tpu.memory_space<vmem>>, vector<8x16x2xbf16>
    %118 = vector.shape_cast %117 : vector<8x16x2xbf16> to vector<128x2xbf16>
    %c0_98 = arith.constant 0 : index
    %c2_99 = arith.constant 2 : index
    %c0_100 = arith.constant 0 : index
    %119 = vector.load %arg15[%c0_98, %c2_99, %c0_100] : memref<10x18x2xbf16, #tpu.memory_space<vmem>>, vector<8x16x2xbf16>
    %120 = vector.shape_cast %119 : vector<8x16x2xbf16> to vector<128x2xbf16>
    %c1_101 = arith.constant 1 : index
    %c0_102 = arith.constant 0 : index
    %c0_103 = arith.constant 0 : index
    %121 = vector.load %arg15[%c1_101, %c0_102, %c0_103] : memref<10x18x2xbf16, #tpu.memory_space<vmem>>, vector<8x16x2xbf16>
    %122 = vector.shape_cast %121 : vector<8x16x2xbf16> to vector<128x2xbf16>
    %c1_104 = arith.constant 1 : index
    %c1_105 = arith.constant 1 : index
    %c0_106 = arith.constant 0 : index
    %123 = vector.load %arg15[%c1_104, %c1_105, %c0_106] : memref<10x18x2xbf16, #tpu.memory_space<vmem>>, vector<8x16x2xbf16>
    %124 = vector.shape_cast %123 : vector<8x16x2xbf16> to vector<128x2xbf16>
    %c1_107 = arith.constant 1 : index
    %c2_108 = arith.constant 2 : index
    %c0_109 = arith.constant 0 : index
    %125 = vector.load %arg15[%c1_107, %c2_108, %c0_109] : memref<10x18x2xbf16, #tpu.memory_space<vmem>>, vector<8x16x2xbf16>
    %126 = vector.shape_cast %125 : vector<8x16x2xbf16> to vector<128x2xbf16>
    %c2_110 = arith.constant 2 : index
    %c0_111 = arith.constant 0 : index
    %c0_112 = arith.constant 0 : index
    %127 = vector.load %arg15[%c2_110, %c0_111, %c0_112] : memref<10x18x2xbf16, #tpu.memory_space<vmem>>, vector<8x16x2xbf16>
    %128 = vector.shape_cast %127 : vector<8x16x2xbf16> to vector<128x2xbf16>
    %c2_113 = arith.constant 2 : index
    %c1_114 = arith.constant 1 : index
    %c0_115 = arith.constant 0 : index
    %129 = vector.load %arg15[%c2_113, %c1_114, %c0_115] : memref<10x18x2xbf16, #tpu.memory_space<vmem>>, vector<8x16x2xbf16>
    %130 = vector.shape_cast %129 : vector<8x16x2xbf16> to vector<128x2xbf16>
    %c2_116 = arith.constant 2 : index
    %c2_117 = arith.constant 2 : index
    %c0_118 = arith.constant 0 : index
    %131 = vector.load %arg15[%c2_116, %c2_117, %c0_118] : memref<10x18x2xbf16, #tpu.memory_space<vmem>>, vector<8x16x2xbf16>
    %132 = vector.shape_cast %131 : vector<8x16x2xbf16> to vector<128x2xbf16>
    %133 = tpu.concatenate %116, %118, %120, %122, %124, %126, %128, %130, %132 in 1 : vector<128x2xbf16>, vector<128x2xbf16>, vector<128x2xbf16>, vector<128x2xbf16>, vector<128x2xbf16>, vector<128x2xbf16>, vector<128x2xbf16>, vector<128x2xbf16>, vector<128x2xbf16> -> vector<128x18xbf16>
    %c0_119 = arith.constant 0 : index
    %c0_120 = arith.constant 0 : index
    %134 = vector.load %arg7[%c0_119, %c0_120] : memref<18x2xbf16, #tpu.memory_space<vmem>>, vector<18x2xbf16>
    %cst_121 = arith.constant dense<0.000000e+00> : vector<128x2xf32>
    %135 = tpu.matmul %133, %134, %cst_121 {dimension_numbers = #tpu.dot_dimension_numbers<[1], [0], [0], [1], [0, 0, 1, 1], [], []>} : vector<128x18xbf16>, vector<18x2xbf16>, vector<128x2xf32> -> vector<128x2xf32>
    %136 = vector.broadcast %2 : vector<1x2xf32> to vector<128x2xf32>
    %137 = arith.addf %135, %136 : vector<128x2xf32>
    %138 = arith.negf %137 : vector<128x2xf32>
    %139 = math.exp %138 : vector<128x2xf32>
    %cst_122 = arith.constant 1.000000e+00 : f32
    %140 = vector.broadcast %cst_122 : f32 to vector<128x2xf32>
    %141 = arith.addf %140, %139 : vector<128x2xf32>
    %142 = arith.divf %140, %141 : vector<128x2xf32>
    %143 = arith.mulf %137, %142 : vector<128x2xf32>
    %144 = arith.addf %17, %143 : vector<128x2xf32>
    %145 = arith.truncf %144 : vector<128x2xf32> to vector<128x2xbf16>
    %c0_123 = arith.constant 0 : index
    %c0_124 = arith.constant 0 : index
    %146 = vector.load %arg8[%c0_123, %c0_124] : memref<2x2xbf16, #tpu.memory_space<vmem>>, vector<2x2xbf16>
    %cst_125 = arith.constant dense<0.000000e+00> : vector<128x2xf32>
    %147 = tpu.matmul %145, %146, %cst_125 {dimension_numbers = #tpu.dot_dimension_numbers<[1], [0], [0], [1], [0, 0, 1, 1], [], []>} : vector<128x2xbf16>, vector<2x2xbf16>, vector<128x2xf32> -> vector<128x2xf32>
    %148 = tpu.concatenate %147, %18 in 1 : vector<128x2xf32>, vector<128x2xf32> -> vector<128x4xf32>
    %c0_126 = arith.constant 0 : index
    %c0_127 = arith.constant 0 : index
    %149 = vector.load %arg11[%c0_126, %c0_127] : memref<2x4xf32, #tpu.memory_space<vmem>>, vector<1x4xf32>
    %150 = vector.broadcast %149 : vector<1x4xf32> to vector<128x4xf32>
    %151 = arith.mulf %148, %150 : vector<128x4xf32>
    %c1_128 = arith.constant 1 : index
    %c0_129 = arith.constant 0 : index
    %152 = vector.load %arg11[%c1_128, %c0_129] : memref<2x4xf32, #tpu.memory_space<vmem>>, vector<1x4xf32>
    %153 = vector.broadcast %152 : vector<1x4xf32> to vector<128x4xf32>
    %154 = arith.addf %151, %153 : vector<128x4xf32>
    %155 = arith.negf %154 : vector<128x4xf32>
    %156 = math.exp %155 : vector<128x4xf32>
    %cst_130 = arith.constant 1.000000e+00 : f32
    %157 = vector.broadcast %cst_130 : f32 to vector<128x4xf32>
    %158 = arith.addf %157, %156 : vector<128x4xf32>
    %159 = arith.divf %157, %158 : vector<128x4xf32>
    %160 = arith.mulf %154, %159 : vector<128x4xf32>
    %161 = arith.truncf %160 : vector<128x4xf32> to vector<128x4xbf16>
    %c0_131 = arith.constant 0 : index
    %c0_132 = arith.constant 0 : index
    %162 = vector.load %arg9[%c0_131, %c0_132] : memref<4x4xbf16, #tpu.memory_space<vmem>>, vector<4x4xbf16>
    %cst_133 = arith.constant dense<0.000000e+00> : vector<128x4xf32>
    %163 = tpu.matmul %161, %162, %cst_133 {dimension_numbers = #tpu.dot_dimension_numbers<[1], [0], [0], [1], [0, 0, 1, 1], [], []>} : vector<128x4xbf16>, vector<4x4xbf16>, vector<128x4xf32> -> vector<128x4xf32>
    %c0_134 = arith.constant 0 : index
    %c0_135 = arith.constant 0 : index
    %164 = vector.load %arg12[%c0_134, %c0_135] : memref<1x4xf32, #tpu.memory_space<vmem>>, vector<1x4xf32>
    %165 = vector.broadcast %164 : vector<1x4xf32> to vector<128x4xf32>
    %166 = arith.addf %163, %165 : vector<128x4xf32>
    %167 = arith.negf %166 : vector<128x4xf32>
    %168 = math.exp %167 : vector<128x4xf32>
    %cst_136 = arith.constant 1.000000e+00 : f32
    %169 = vector.broadcast %cst_136 : f32 to vector<128x4xf32>
    %170 = arith.addf %169, %168 : vector<128x4xf32>
    %171 = arith.divf %169, %170 : vector<128x4xf32>
    %172 = arith.mulf %166, %171 : vector<128x4xf32>
    %173 = vector.shape_cast %172 : vector<128x4xf32> to vector<8x16x4xf32>
    %c0_137 = arith.constant 0 : index
    %c0_138 = arith.constant 0 : index
    %c0_139 = arith.constant 0 : index
    %c0_140 = arith.constant 0 : index
    %174 = vector.load %arg13[%c0_137, %c0_138, %c0_139, %c0_140] : memref<1x8x16x4xf32, #tpu.memory_space<vmem>>, vector<1x8x16x4xf32>
    %175 = vector.shape_cast %174 : vector<1x8x16x4xf32> to vector<8x16x4xf32>
    %176 = vector.shape_cast %173 : vector<8x16x4xf32> to vector<1x8x16x4xf32>
    tpu.vector_store %arg13[%c0_137, %c0_138, %c0_139, %c0_140], %176 {strides = array<i32>} : memref<1x8x16x4xf32, #tpu.memory_space<vmem>>, vector<1x8x16x4xf32>,
    return
  }
  func.func @transform_0(%arg0: i32, %arg1: i32) -> (i32, i32, i32, i32) {
    %c0_i32 = arith.constant 0 : i32
    %c0_i32_0 = arith.constant 0 : i32
    %c0_i32_1 = arith.constant 0 : i32
    return %arg0, %arg1, %c0_i32, %c0_i32_0 : i32, i32, i32, i32
  }
  func.func @transform_1(%arg0: i32, %arg1: i32) -> (i32, i32, i32, i32) {
    %c4_i32 = arith.constant 4 : i32
    %0 = arith.muli %arg1, %c4_i32 : i32
    %c1_i32 = arith.constant 1 : i32
    %1 = arith.subi %0, %c1_i32 : i32
    %c0_i32 = arith.constant 0 : i32
    %2 = arith.maxsi %1, %c0_i32 : i32
    %c0_i32_0 = arith.constant 0 : i32
    %c0_i32_1 = arith.constant 0 : i32
    %c0_i32_2 = arith.constant 0 : i32
    return %arg0, %2, %c0_i32_0, %c0_i32_1 : i32, i32, i32, i32
  }
  func.func @transform_2(%arg0: i32, %arg1: i32) -> (i32, i32, i32, i32) {
    %c4_i32 = arith.constant 4 : i32
    %0 = arith.muli %arg1, %c4_i32 : i32
    %c4_i32_0 = arith.constant 4 : i32
    %1 = arith.addi %0, %c4_i32_0 : i32
    %c7_i32 = arith.constant 7 : i32
    %2 = arith.minsi %1, %c7_i32 : i32
    %c0_i32 = arith.constant 0 : i32
    %c0_i32_1 = arith.constant 0 : i32
    %c0_i32_2 = arith.constant 0 : i32
    return %arg0, %2, %c0_i32, %c0_i32_1 : i32, i32, i32, i32
  }
  func.func @transform_3(%arg0: i32, %arg1: i32) -> (i32, i32) {
    %c0_i32 = arith.constant 0 : i32
    %c0_i32_0 = arith.constant 0 : i32
    %c0_i32_1 = arith.constant 0 : i32
    return %c0_i32, %c0_i32_0 : i32, i32
  }
  func.func @transform_4(%arg0: i32, %arg1: i32) -> (i32, i32) {
    %c0_i32 = arith.constant 0 : i32
    %c0_i32_0 = arith.constant 0 : i32
    %c0_i32_1 = arith.constant 0 : i32
    return %c0_i32, %c0_i32_0 : i32, i32
  }
  func.func @transform_5(%arg0: i32, %arg1: i32) -> (i32, i32) {
    %c0_i32 = arith.constant 0 : i32
    %c0_i32_0 = arith.constant 0 : i32
    %c0_i32_1 = arith.constant 0 : i32
    return %c0_i32, %c0_i32_0 : i32, i32
  }
  func.func @transform_6(%arg0: i32, %arg1: i32) -> (i32, i32) {
    %c0_i32 = arith.constant 0 : i32
    %c0_i32_0 = arith.constant 0 : i32
    %c0_i32_1 = arith.constant 0 : i32
    return %c0_i32, %c0_i32_0 : i32, i32
  }
  func.func @transform_7(%arg0: i32, %arg1: i32) -> (i32, i32) {
    %c0_i32 = arith.constant 0 : i32
    %c0_i32_0 = arith.constant 0 : i32
    %c0_i32_1 = arith.constant 0 : i32
    return %c0_i32, %c0_i32_0 : i32, i32
  }
  func.func @transform_8(%arg0: i32, %arg1: i32) -> (i32, i32) {
    %c0_i32 = arith.constant 0 : i32
    %c0_i32_0 = arith.constant 0 : i32
    %c0_i32_1 = arith.constant 0 : i32
    return %c0_i32, %c0_i32_0 : i32, i32
  }
  func.func @transform_9(%arg0: i32, %arg1: i32) -> (i32, i32) {
    %c0_i32 = arith.constant 0 : i32
    %c0_i32_0 = arith.constant 0 : i32
    %c0_i32_1 = arith.constant 0 : i32
    return %c0_i32, %c0_i32_0 : i32, i32
  }
  func.func @transform_10(%arg0: i32, %arg1: i32) -> (i32, i32) {
    %c0_i32 = arith.constant 0 : i32
    %c0_i32_0 = arith.constant 0 : i32
    %c0_i32_1 = arith.constant 0 : i32
    return %c0_i32, %c0_i32_0 : i32, i32
  }
  func.func @transform_11(%arg0: i32, %arg1: i32) -> (i32, i32, i32, i32) {
    %c0_i32 = arith.constant 0 : i32
    %c0_i32_0 = arith.constant 0 : i32
    %c0_i32_1 = arith.constant 0 : i32
    return %arg0, %arg1, %c0_i32, %c0_i32_0 : i32, i32, i32, i32
  }
}

</mosaic_0001>

<llo_original>
// kernel: bottleneck_csp_pallas.1
$region0: #{bottleneck_csp_pallas.1}
  #allocation0 [shape = 'u32[]', space=smem, size = 0x4, offset = 0x4, fixed_abs, tag = 'smem constant byte address 0x4 - core index']
  #allocation1 [shape = 'u32[144,128]{1,0:T(1,128)}', space=vmem, size = 0x12000, scoped, tag = 'internal scratch']
  #allocation2 [shape = 'bf16[12,18,2]{2,1,0:T(8,128)(2,1)}', space=vmem, size = 0x12000, scoped, tag = 'scratch operand']
  #allocation3 [shape = 'bf16[10,18,2]{2,1,0:T(8,128)(2,1)}', space=vmem, size = 0xf000, scoped, tag = 'scratch operand']
  %s0 = inlined_call_operand.vmem [shape: f32[2,16,16,4], index: 0, kind: input, shape index: {}, may-alias: {0,1,2}]
  %s1 = inlined_call_operand.vmem [shape: f32[2,16,16,4], index: 1, kind: input, shape index: {}, may-alias: {0,1,2}]
  %s2 = inlined_call_operand.vmem [shape: f32[2,16,16,4], index: 2, kind: input, shape index: {}, may-alias: {0,1,2}]
  %s3 = inlined_call_operand.vmem [shape: bf16[4,4], index: 3, kind: input, shape index: {}]
  %s4 = inlined_call_operand.vmem [shape: bf16[18,2], index: 4, kind: input, shape index: {}]
  %s5 = inlined_call_operand.vmem [shape: bf16[18,2], index: 5, kind: input, shape index: {}]
  %s6 = inlined_call_operand.vmem [shape: bf16[2,2], index: 6, kind: input, shape index: {}]
  %s7 = inlined_call_operand.vmem [shape: bf16[4,4], index: 7, kind: input, shape index: {}]
  %s8 = inlined_call_operand.vmem [shape: f32[3,2], index: 8, kind: input, shape index: {}]
  %s9 = inlined_call_operand.vmem [shape: f32[2,4], index: 9, kind: input, shape index: {}]
  %s10 = inlined_call_operand.vmem [shape: f32[1,4], index: 10, kind: input, shape index: {}]
  %s11 = inlined_call_operand.vmem [shape: f32[2,16,16,4], index: 11, kind: output, shape index: {}]
  %s12 = sld [smem:[#allocation0]]
  $region77: #{bottleneck_csp_pallas.1} parent=0
    _
  %s14 = ssub.s32 1, %s12
  %s15 = scalar_select 0, %s14, %s12
  loop: start=0, step=1, limit=6
  $region2: #{bottleneck_csp_pallas.1} parent=0 // loop_pre_header
    _
  $region3: #{bottleneck_csp_pallas.1} parent=0 // loop_header
    %s17 = sphi 0, %s21
    %p18 = scmp.ge.s32.totalorder %s17, 6
    %s24 = sphi 0, %s36
    %s25 = sphi 0, %s32
    %s26 = sphi 0, %s24
    %s27 = sphi 0, %s25
    %s28 = sphi 0, %s26
    %s29 = sphi 0, %s27
    %s41 = sphi 0, %s43
    %s44 = sphi 0, %s41
    %s45 = sphi 0, %s44
    %s61 = sphi 0, %s45
    %s77 = sphi 0, %s79
    %s80 = sphi 0, %s77
    %s81 = sphi 0, %s80
    %s97 = sphi 0, %s81
    %s113 = sphi 0, %s115
    %s116 = sphi 0, %s113
    %s117 = sphi 0, %s116
    %s133 = sphi 0, %s117
    %s137 = sphi 0, %s137
    %s139 = sphi 0, %s137
    %s140 = sphi 0, %s139
    %s154 = sphi 0, %s140
    %s158 = sphi 0, %s158
    %s160 = sphi 0, %s158
    %s161 = sphi 0, %s160
    %s175 = sphi 0, %s161
    %s179 = sphi 0, %s179
    %s181 = sphi 0, %s179
    %s182 = sphi 0, %s181
    %s196 = sphi 0, %s182
    %s200 = sphi 0, %s200
    %s202 = sphi 0, %s200
    %s203 = sphi 0, %s202
    %s217 = sphi 0, %s203
    %s221 = sphi 0, %s221
    %s223 = sphi 0, %s221
    %s224 = sphi 0, %s223
    %s238 = sphi 0, %s224
    %s242 = sphi 0, %s242
    %s244 = sphi 0, %s242
    %s245 = sphi 0, %s244
    %s259 = sphi 0, %s245
    %s263 = sphi 0, %s263
    %s265 = sphi 0, %s263
    %s266 = sphi 0, %s265
    %s280 = sphi 0, %s266
    %s284 = sphi 0, %s284
    %s286 = sphi 0, %s284
    %s287 = sphi 0, %s286
    %s301 = sphi 0, %s287
    %s309 = sphi 0, %s311
    %s312 = sphi 0, %s309
    %s313 = sphi 0, %s312
    %s329 = sphi 0, %s313
  $region4: #{bottleneck_csp_pallas.1} parent=0 // loop_header_branch
    %20 = sbr.rel (%p18) target = $region8
  $region5: #{bottleneck_csp_pallas.1} parent=0 // loop_body
    %s22 = ssub.s32 %s17, 1
    %s23 = ssub.s32 %s17, 2
    %s30 = sadd.s32 1, %s25
    %p31 = scmp.ge.s32.totalorder %s30, 2
    %s32 = scalar_select %p31, 0, %s30
    %s33 = sadd.s32 1, %s24
    %s34 = scalar_select %p31, %s33, %s24
    %p35 = scmp.ge.s32.totalorder %s34, 2
    %s36 = scalar_select %p35, 0, %s34
    %s37 = ssub.s32 %s24, %s36
    %s38 = ssub.s32 %s25, %s32
    %s39 = sor.u32 %s37, %s38
    %p40 = scmp.eq.s32.totalorder %s39, 0
    %s42 = sadd.s32 %s41, 1
    %s43 = scalar_select %p40, %s41, %s42
    %p46 = pneg %p40
    %p47 = scmp.eq.s32.totalorder %s17, 3
    %p48 = por %p46, %p47
    %p49 = scmp.ne.s32.totalorder %s41, %s44
    %p50 = scmp.eq.s32.totalorder %s17, 0
    %p51 = por %p49, %p50
    %p52 = scmp.ne.s32.totalorder %s41, %s44
    %p53 = scmp.eq.s32.totalorder %s22, 3
    %p54 = por %p52, %p53
    %p55 = scmp.ne.s32.totalorder %s44, %s45
    %p56 = scmp.eq.s32.totalorder %s22, 0
    %p57 = por %p55, %p56
    %p58 = scmp.ne.s32.totalorder %s44, %s45
    %p59 = scmp.eq.s32.totalorder %s23, 3
    %p60 = por %p58, %p59
    %p62 = scmp.ne.s32.totalorder %s45, %s61
    %p63 = scmp.eq.s32.totalorder %s23, 0
    %p64 = por %p62, %p63
    %s65 = smul.u32 %s25, 4
    %s66 = ssub.s32 %s65, 1
    %p67 = scmp.gt.s32.totalorder %s66, 0
    %s68 = scalar_select %p67, %s66, 0
    %s69 = smul.u32 %s32, 4
    %s70 = ssub.s32 %s69, 1
    %p71 = scmp.gt.s32.totalorder %s70, 0
    %s72 = scalar_select %p71, %s70, 0
    %s73 = ssub.s32 %s24, %s36
    %s74 = ssub.s32 %s68, %s72
    %s75 = sor.u32 %s73, %s74
    %p76 = scmp.eq.s32.totalorder %s75, 0
    %s78 = sadd.s32 %s77, 1
    %s79 = scalar_select %p76, %s77, %s78
    %p82 = pneg %p76
    %p83 = scmp.eq.s32.totalorder %s17, 3
    %p84 = por %p82, %p83
    %p85 = scmp.ne.s32.totalorder %s77, %s80
    %p86 = scmp.eq.s32.totalorder %s17, 0
    %p87 = por %p85, %p86
    %p88 = scmp.ne.s32.totalorder %s77, %s80
    %p89 = scmp.eq.s32.totalorder %s22, 3
    %p90 = por %p88, %p89
    %p91 = scmp.ne.s32.totalorder %s80, %s81
    %p92 = scmp.eq.s32.totalorder %s22, 0
    %p93 = por %p91, %p92
    %p94 = scmp.ne.s32.totalorder %s80, %s81
    %p95 = scmp.eq.s32.totalorder %s23, 3
    %p96 = por %p94, %p95
    %p98 = scmp.ne.s32.totalorder %s81, %s97
    %p99 = scmp.eq.s32.totalorder %s23, 0
    %p100 = por %p98, %p99
    %s101 = smul.u32 %s25, 4
    %s102 = sadd.s32 %s101, 4
    %p103 = scmp.lt.s32.totalorder %s102, 7
    %s104 = scalar_select %p103, %s102, 7
    %s105 = smul.u32 %s32, 4
    %s106 = sadd.s32 %s105, 4
    %p107 = scmp.lt.s32.totalorder %s106, 7
    %s108 = scalar_select %p107, %s106, 7
    %s109 = ssub.s32 %s24, %s36
    %s110 = ssub.s32 %s104, %s108
    %s111 = sor.u32 %s109, %s110
    %p112 = scmp.eq.s32.totalorder %s111, 0
    %s114 = sadd.s32 %s113, 1
    %s115 = scalar_select %p112, %s113, %s114
    %p118 = pneg %p112
    %p119 = scmp.eq.s32.totalorder %s17, 3
    %p120 = por %p118, %p119
    %p121 = scmp.ne.s32.totalorder %s113, %s116
    %p122 = scmp.eq.s32.totalorder %s17, 0
    %p123 = por %p121, %p122
    %p124 = scmp.ne.s32.totalorder %s113, %s116
    %p125 = scmp.eq.s32.totalorder %s22, 3
    %p126 = por %p124, %p125
    %p127 = scmp.ne.s32.totalorder %s116, %s117
    %p128 = scmp.eq.s32.totalorder %s22, 0
    %p129 = por %p127, %p128
    %p130 = scmp.ne.s32.totalorder %s116, %s117
    %p131 = scmp.eq.s32.totalorder %s23, 3
    %p132 = por %p130, %p131
    %p134 = scmp.ne.s32.totalorder %s117, %s133
    %p135 = scmp.eq.s32.totalorder %s23, 0
    %p136 = por %p134, %p135
    %s138 = sadd.s32 %s137, 1
    %p141 = scmp.eq.s32.totalorder %s17, 3
    %p142 = scmp.ne.s32.totalorder %s137, %s139
    %p143 = scmp.eq.s32.totalorder %s17, 0
    %p144 = por %p142, %p143
    %p145 = scmp.ne.s32.totalorder %s137, %s139
    %p146 = scmp.eq.s32.totalorder %s22, 3
    %p147 = por %p145, %p146
    %p148 = scmp.ne.s32.totalorder %s139, %s140
    %p149 = scmp.eq.s32.totalorder %s22, 0
    %p150 = por %p148, %p149
    %p151 = scmp.ne.s32.totalorder %s139, %s140
    %p152 = scmp.eq.s32.totalorder %s23, 3
    %p153 = por %p151, %p152
    %p155 = scmp.ne.s32.totalorder %s140, %s154
    %p156 = scmp.eq.s32.totalorder %s23, 0
    %p157 = por %p155, %p156
    %s159 = sadd.s32 %s158, 1
    %p162 = scmp.eq.s32.totalorder %s17, 3
    %p163 = scmp.ne.s32.totalorder %s158, %s160
    %p164 = scmp.eq.s32.totalorder %s17, 0
    %p165 = por %p163, %p164
    %p166 = scmp.ne.s32.totalorder %s158, %s160
    %p167 = scmp.eq.s32.totalorder %s22, 3
    %p168 = por %p166, %p167
    %p169 = scmp.ne.s32.totalorder %s160, %s161
    %p170 = scmp.eq.s32.totalorder %s22, 0
    %p171 = por %p169, %p170
    %p172 = scmp.ne.s32.totalorder %s160, %s161
    %p173 = scmp.eq.s32.totalorder %s23, 3
    %p174 = por %p172, %p173
    %p176 = scmp.ne.s32.totalorder %s161, %s175
    %p177 = scmp.eq.s32.totalorder %s23, 0
    %p178 = por %p176, %p177
    %s180 = sadd.s32 %s179, 1
    %p183 = scmp.eq.s32.totalorder %s17, 3
    %p184 = scmp.ne.s32.totalorder %s179, %s181
    %p185 = scmp.eq.s32.totalorder %s17, 0
    %p186 = por %p184, %p185
    %p187 = scmp.ne.s32.totalorder %s179, %s181
    %p188 = scmp.eq.s32.totalorder %s22, 3
    %p189 = por %p187, %p188
    %p190 = scmp.ne.s32.totalorder %s181, %s182
    %p191 = scmp.eq.s32.totalorder %s22, 0
    %p192 = por %p190, %p191
    %p193 = scmp.ne.s32.totalorder %s181, %s182
    %p194 = scmp.eq.s32.totalorder %s23, 3
    %p195 = por %p193, %p194
    %p197 = scmp.ne.s32.totalorder %s182, %s196
    %p198 = scmp.eq.s32.totalorder %s23, 0
    %p199 = por %p197, %p198
    %s201 = sadd.s32 %s200, 1
    %p204 = scmp.eq.s32.totalorder %s17, 3
    %p205 = scmp.ne.s32.totalorder %s200, %s202
    %p206 = scmp.eq.s32.totalorder %s17, 0
    %p207 = por %p205, %p206
    %p208 = scmp.ne.s32.totalorder %s200, %s202
    %p209 = scmp.eq.s32.totalorder %s22, 3
    %p210 = por %p208, %p209
    %p211 = scmp.ne.s32.totalorder %s202, %s203
    %p212 = scmp.eq.s32.totalorder %s22, 0
    %p213 = por %p211, %p212
    %p214 = scmp.ne.s32.totalorder %s202, %s203
    %p215 = scmp.eq.s32.totalorder %s23, 3
    %p216 = por %p214, %p215
    %p218 = scmp.ne.s32.totalorder %s203, %s217
    %p219 = scmp.eq.s32.totalorder %s23, 0
    %p220 = por %p218, %p219
    %s222 = sadd.s32 %s221, 1
    %p225 = scmp.eq.s32.totalorder %s17, 3
    %p226 = scmp.ne.s32.totalorder %s221, %s223
    %p227 = scmp.eq.s32.totalorder %s17, 0
    %p228 = por %p226, %p227
    %p229 = scmp.ne.s32.totalorder %s221, %s223
    %p230 = scmp.eq.s32.totalorder %s22, 3
    %p231 = por %p229, %p230
    %p232 = scmp.ne.s32.totalorder %s223, %s224
    %p233 = scmp.eq.s32.totalorder %s22, 0
    %p234 = por %p232, %p233
    %p235 = scmp.ne.s32.totalorder %s223, %s224
    %p236 = scmp.eq.s32.totalorder %s23, 3
    %p237 = por %p235, %p236
    %p239 = scmp.ne.s32.totalorder %s224, %s238
    %p240 = scmp.eq.s32.totalorder %s23, 0
    %p241 = por %p239, %p240
    %s243 = sadd.s32 %s242, 1
    %p246 = scmp.eq.s32.totalorder %s17, 3
    %p247 = scmp.ne.s32.totalorder %s242, %s244
    %p248 = scmp.eq.s32.totalorder %s17, 0
    %p249 = por %p247, %p248
    %p250 = scmp.ne.s32.totalorder %s242, %s244
    %p251 = scmp.eq.s32.totalorder %s22, 3
    %p252 = por %p250, %p251
    %p253 = scmp.ne.s32.totalorder %s244, %s245
    %p254 = scmp.eq.s32.totalorder %s22, 0
    %p255 = por %p253, %p254
    %p256 = scmp.ne.s32.totalorder %s244, %s245
    %p257 = scmp.eq.s32.totalorder %s23, 3
    %p258 = por %p256, %p257
    %p260 = scmp.ne.s32.totalorder %s245, %s259
    %p261 = scmp.eq.s32.totalorder %s23, 0
    %p262 = por %p260, %p261
    %s264 = sadd.s32 %s263, 1
    %p267 = scmp.eq.s32.totalorder %s17, 3
    %p268 = scmp.ne.s32.totalorder %s263, %s265
    %p269 = scmp.eq.s32.totalorder %s17, 0
    %p270 = por %p268, %p269
    %p271 = scmp.ne.s32.totalorder %s263, %s265
    %p272 = scmp.eq.s32.totalorder %s22, 3
    %p273 = por %p271, %p272
    %p274 = scmp.ne.s32.totalorder %s265, %s266
    %p275 = scmp.eq.s32.totalorder %s22, 0
    %p276 = por %p274, %p275
    %p277 = scmp.ne.s32.totalorder %s265, %s266
    %p278 = scmp.eq.s32.totalorder %s23, 3
    %p279 = por %p277, %p278
    %p281 = scmp.ne.s32.totalorder %s266, %s280
    %p282 = scmp.eq.s32.totalorder %s23, 0
    %p283 = por %p281, %p282
    %s285 = sadd.s32 %s284, 1
    %p288 = scmp.eq.s32.totalorder %s17, 3
    %p289 = scmp.ne.s32.totalorder %s284, %s286
    %p290 = scmp.eq.s32.totalorder %s17, 0
    %p291 = por %p289, %p290
    %p292 = scmp.ne.s32.totalorder %s284, %s286
    %p293 = scmp.eq.s32.totalorder %s22, 3
    %p294 = por %p292, %p293
    %p295 = scmp.ne.s32.totalorder %s286, %s287
    %p296 = scmp.eq.s32.totalorder %s22, 0
    %p297 = por %p295, %p296
    %p298 = scmp.ne.s32.totalorder %s286, %s287
    %p299 = scmp.eq.s32.totalorder %s23, 3
    %p300 = por %p298, %p299
    %p302 = scmp.ne.s32.totalorder %s287, %s301
    %p303 = scmp.eq.s32.totalorder %s23, 0
    %p304 = por %p302, %p303
    %s305 = ssub.s32 %s24, %s36
    %s306 = ssub.s32 %s25, %s32
    %s307 = sor.u32 %s305, %s306
    %p308 = scmp.eq.s32.totalorder %s307, 0
    %s310 = sadd.s32 %s309, 1
    %s311 = scalar_select %p308, %s309, %s310
    %p314 = pneg %p308
    %p315 = scmp.eq.s32.totalorder %s17, 3
    %p316 = por %p314, %p315
    %p317 = scmp.ne.s32.totalorder %s309, %s312
    %p318 = scmp.eq.s32.totalorder %s17, 0
    %p319 = por %p317, %p318
    %p320 = scmp.ne.s32.totalorder %s309, %s312
    %p321 = scmp.eq.s32.totalorder %s22, 3
    %p322 = por %p320, %p321
    %p323 = scmp.ne.s32.totalorder %s312, %s313
    %p324 = scmp.eq.s32.totalorder %s22, 0
    %p325 = por %p323, %p324
    %p326 = scmp.ne.s32.totalorder %s312, %s313
    %p327 = scmp.eq.s32.totalorder %s23, 3
    %p328 = por %p326, %p327
    %p330 = scmp.ne.s32.totalorder %s313, %s329
    %p331 = scmp.eq.s32.totalorder %s23, 0
    %p332 = por %p330, %p331
    %p333 = scmp.le.s32.totalorder 1, %s17
    %p334 = scmp.lt.s32.totalorder %s17, 5
    %p335 = pnand %p333, %p334
    %p336 = pneg %p335
    // Predicated region
    $region9: #{bottleneck_csp_pallas.1} parent=5 // pred_check
      _
    $region10: #{bottleneck_csp_pallas.1} parent=5 // pred_check_branch
      %338 = sbr.rel (%p335) target = $region12
    $region11: #{bottleneck_csp_pallas.1} parent=5 // pred_region
      %s339 = ssub.s32 %s17, 1
      // Predicated region
      $region13: #{bottleneck_csp_pallas.1} parent=11 // pred_check
        %p340 = pneg %p150
      $region14: #{bottleneck_csp_pallas.1} parent=11 // pred_check_branch
        %342 = sbr.rel (%p340) target = $region16
      $region15: #{bottleneck_csp_pallas.1} parent=11 // pred_region
        _
      $region16: #{bottleneck_csp_pallas.1} parent=11 // pred_fallthru
        _
      // Predicated region
      $region17: #{bottleneck_csp_pallas.1} parent=11 // pred_check
        %p343 = pneg %p171
      $region18: #{bottleneck_csp_pallas.1} parent=11 // pred_check_branch
        %345 = sbr.rel (%p343) target = $region20
      $region19: #{bottleneck_csp_pallas.1} parent=11 // pred_region
        _
      $region20: #{bottleneck_csp_pallas.1} parent=11 // pred_fallthru
        _
      // Predicated region
      $region21: #{bottleneck_csp_pallas.1} parent=11 // pred_check
        %p346 = pneg %p192
      $region22: #{bottleneck_csp_pallas.1} parent=11 // pred_check_branch
        %348 = sbr.rel (%p346) target = $region24
      $region23: #{bottleneck_csp_pallas.1} parent=11 // pred_region
        _
      $region24: #{bottleneck_csp_pallas.1} parent=11 // pred_fallthru
        _
      // Predicated region
      $region25: #{bottleneck_csp_pallas.1} parent=11 // pred_check
        %p349 = pneg %p213
      $region26: #{bottleneck_csp_pallas.1} parent=11 // pred_check_branch
        %351 = sbr.rel (%p349) target = $region28
      $region27: #{bottleneck_csp_pallas.1} parent=11 // pred_region
        _
      $region28: #{bottleneck_csp_pallas.1} parent=11 // pred_fallthru
        _
      // Predicated region
      $region29: #{bottleneck_csp_pallas.1} parent=11 // pred_check
        %p352 = pneg %p234
      $region30: #{bottleneck_csp_pallas.1} parent=11 // pred_check_branch
        %354 = sbr.rel (%p352) target = $region32
      $region31: #{bottleneck_csp_pallas.1} parent=11 // pred_region
        _
      $region32: #{bottleneck_csp_pallas.1} parent=11 // pred_fallthru
        _
      // Predicated region
      $region33: #{bottleneck_csp_pallas.1} parent=11 // pred_check
        %p355 = pneg %p255
      $region34: #{bottleneck_csp_pallas.1} parent=11 // pred_check_branch
        %357 = sbr.rel (%p355) target = $region36
      $region35: #{bottleneck_csp_pallas.1} parent=11 // pred_region
        _
      $region36: #{bottleneck_csp_pallas.1} parent=11 // pred_fallthru
        _
      // Predicated region
      $region37: #{bottleneck_csp_pallas.1} parent=11 // pred_check
        %p358 = pneg %p276
      $region38: #{bottleneck_csp_pallas.1} parent=11 // pred_check_branch
        %360 = sbr.rel (%p358) target = $region40
      $region39: #{bottleneck_csp_pallas.1} parent=11 // pred_region
        _
      $region40: #{bottleneck_csp_pallas.1} parent=11 // pred_fallthru
        _
      // Predicated region
      $region41: #{bottleneck_csp_pallas.1} parent=11 // pred_check
        %p361 = pneg %p297
      $region42: #{bottleneck_csp_pallas.1} parent=11 // pred_check_branch
        %363 = sbr.rel (%p361) target = $region44
      $region43: #{bottleneck_csp_pallas.1} parent=11 // pred_region
        _
      $region44: #{bottleneck_csp_pallas.1} parent=11 // pred_fallthru
        _
    $region12: #{bottleneck_csp_pallas.1} parent=5 // pred_fallthru
      _
    %p364 = scmp.lt.s32.totalorder %s17, 4
    // Predicated region
    $region45: #{bottleneck_csp_pallas.1} parent=5 // pred_check
      %p365 = pneg %p364
    $region46: #{bottleneck_csp_pallas.1} parent=5 // pred_check_branch
      %367 = sbr.rel (%p365) target = $region48
    $region47: #{bottleneck_csp_pallas.1} parent=5 // pred_region
      // Predicated region
      $region49: #{bottleneck_csp_pallas.1} parent=47 // pred_check
        %p368 = pneg %p51
      $region50: #{bottleneck_csp_pallas.1} parent=47 // pred_check_branch
        %370 = sbr.rel (%p368) target = $region52
      $region51: #{bottleneck_csp_pallas.1} parent=47 // pred_region
        %s371 = smul.u32 8, %s25
        %p372 = scmp.lt.s32.totalorder %s24, 1
        %s373 = scalar_select %p372, %s24, 1
        %p374 = scmp.lt.s32.totalorder %s371, 15
        %s375 = scalar_select %p374, %s371, 15
        %s376 = smul.addr %s375, 2
        %s377 = smul.addr %s373, 32
        %s378 = sadd.s32 %s376, %s377
        %s379 = smul.addr %s378, 8
        %s380 = scalar_lea.vmem %s0, %s379
        %s381 = smul.u32 8, %s25
      $region52: #{bottleneck_csp_pallas.1} parent=47 // pred_fallthru
        _
      // Predicated region
      $region53: #{bottleneck_csp_pallas.1} parent=47 // pred_check
        %p382 = pneg %p87
      $region54: #{bottleneck_csp_pallas.1} parent=47 // pred_check_branch
        %384 = sbr.rel (%p382) target = $region56
      $region55: #{bottleneck_csp_pallas.1} parent=47 // pred_region
        %s385 = smul.u32 %s25, 4
        %s386 = ssub.s32 %s385, 1
        %p387 = scmp.gt.s32.totalorder %s386, 0
        %s388 = scalar_select %p387, %s386, 0
        %s389 = smul.u32 2, %s388
        %p390 = scmp.lt.s32.totalorder %s24, 1
        %s391 = scalar_select %p390, %s24, 1
        %p392 = scmp.lt.s32.totalorder %s389, 15
        %s393 = scalar_select %p392, %s389, 15
        %s394 = smul.addr %s393, 2
        %s395 = smul.addr %s391, 32
        %s396 = sadd.s32 %s394, %s395
        %s397 = smul.addr %s396, 8
        %s398 = scalar_lea.vmem %s1, %s397
        %s399 = smul.u32 %s25, 4
        %s400 = ssub.s32 %s399, 1
        %p401 = scmp.gt.s32.totalorder %s400, 0
        %s402 = scalar_select %p401, %s400, 0
        %s403 = smul.u32 2, %s402
      $region56: #{bottleneck_csp_pallas.1} parent=47 // pred_fallthru
        _
      // Predicated region
      $region57: #{bottleneck_csp_pallas.1} parent=47 // pred_check
        %p404 = pneg %p123
      $region58: #{bottleneck_csp_pallas.1} parent=47 // pred_check_branch
        %406 = sbr.rel (%p404) target = $region60
      $region59: #{bottleneck_csp_pallas.1} parent=47 // pred_region
        %s407 = smul.u32 %s25, 4
        %s408 = sadd.s32 %s407, 4
        %p409 = scmp.lt.s32.totalorder %s408, 7
        %s410 = scalar_select %p409, %s408, 7
        %s411 = smul.u32 2, %s410
        %p412 = scmp.lt.s32.totalorder %s24, 1
        %s413 = scalar_select %p412, %s24, 1
        %p414 = scmp.lt.s32.totalorder %s411, 15
        %s415 = scalar_select %p414, %s411, 15
        %s416 = smul.addr %s415, 2
        %s417 = smul.addr %s413, 32
        %s418 = sadd.s32 %s416, %s417
        %s419 = smul.addr %s418, 8
        %s420 = scalar_lea.vmem %s2, %s419
        %s421 = smul.u32 %s25, 4
        %s422 = sadd.s32 %s421, 4
        %p423 = scmp.lt.s32.totalorder %s422, 7
        %s424 = scalar_select %p423, %s422, 7
        %s425 = smul.u32 2, %s424
      $region60: #{bottleneck_csp_pallas.1} parent=47 // pred_fallthru
        _
    $region48: #{bottleneck_csp_pallas.1} parent=5 // pred_fallthru
      _
    %p426 = scmp.le.s32.totalorder 1, %s17
    %p427 = scmp.lt.s32.totalorder %s17, 5
    %p428 = pnand %p426, %p427
    %p429 = pneg %p428
    // Predicated region
    $region61: #{bottleneck_csp_pallas.1} parent=5 // pred_check
      _
    $region62: #{bottleneck_csp_pallas.1} parent=5 // pred_check_branch
      %431 = sbr.rel (%p428) target = $region64
    $region63: #{bottleneck_csp_pallas.1} parent=5 // pred_region
      %s432 = ssub.s32 %s17, 1
      %s433 = smul.u32 8, %s27
      %p434 = scmp.lt.s32.totalorder %s26, 1
      %s435 = scalar_select %p434, %s26, 1
      %p436 = scmp.lt.s32.totalorder %s433, 15
      %s437 = scalar_select %p436, %s433, 15
      %s438 = smul.addr %s437, 2
      %s439 = smul.addr %s435, 32
      %s440 = sadd.s32 %s438, %s439
      %s441 = smul.addr %s440, 8
      %s442 = scalar_lea.vmem %s0, %s441
      %p443 = pneg %p57
      %p444 = pneg %p54
      %s445 = smul.u32 %s27, 4
      %s446 = ssub.s32 %s445, 1
      %p447 = scmp.gt.s32.totalorder %s446, 0
      %s448 = scalar_select %p447, %s446, 0
      %s449 = smul.u32 2, %s448
      %p450 = scmp.lt.s32.totalorder %s26, 1
      %s451 = scalar_select %p450, %s26, 1
      %p452 = scmp.lt.s32.totalorder %s449, 15
      %s453 = scalar_select %p452, %s449, 15
      %s454 = smul.addr %s453, 2
      %s455 = smul.addr %s451, 32
      %s456 = sadd.s32 %s454, %s455
      %s457 = smul.addr %s456, 8
      %s458 = scalar_lea.vmem %s1, %s457
      %p459 = pneg %p93
      %p460 = pneg %p90
      %s461 = smul.u32 %s27, 4
      %s462 = sadd.s32 %s461, 4
      %p463 = scmp.lt.s32.totalorder %s462, 7
      %s464 = scalar_select %p463, %s462, 7
      %s465 = smul.u32 2, %s464
      %p466 = scmp.lt.s32.totalorder %s26, 1
      %s467 = scalar_select %p466, %s26, 1
      %p468 = scmp.lt.s32.totalorder %s465, 15
      %s469 = scalar_select %p468, %s465, 15
      %s470 = smul.addr %s469, 2
      %s471 = smul.addr %s467, 32
      %s472 = sadd.s32 %s470, %s471
      %s473 = smul.addr %s472, 8
      %s474 = scalar_lea.vmem %s2, %s473
      %p475 = pneg %p129
      %p476 = pneg %p126
      %p477 = pneg %p150
      %p478 = pneg %p147
      %p479 = pneg %p171
      %p480 = pneg %p168
      %p481 = pneg %p192
      %p482 = pneg %p189
      %p483 = pneg %p213
      %p484 = pneg %p210
      %p485 = pneg %p234
      %p486 = pneg %p231
      %p487 = pneg %p255
      %p488 = pneg %p252
      %p489 = pneg %p276
      %p490 = pneg %p273
      %p491 = pneg %p297
      %p492 = pneg %p294
      %p493 = pneg %p325
      %p494 = pneg %p322
      %s495 = smul.u32 8, %s27
      %p496 = scmp.lt.s32.totalorder %s26, 1
      %s497 = scalar_select %p496, %s26, 1
      %p498 = scmp.lt.s32.totalorder %s495, 15
      %s499 = scalar_select %p498, %s495, 15
      %s500 = smul.addr %s499, 2
      %s501 = smul.addr %s497, 32
      %s502 = sadd.s32 %s500, %s501
      %s503 = smul.addr %s502, 8
      %s504 = scalar_lea.vmem %s11, %s503
      %s505 = smul.u32 8, %s27
      %p506 = scmp.lt.s32.totalorder %s26, 1
      %s507 = scalar_select %p506, %s26, 1
      %p508 = scmp.lt.s32.totalorder %s505, 15
      %s509 = scalar_select %p508, %s505, 15
      %s510 = smul.addr %s509, 2
      %s511 = smul.addr %s507, 32
      %s512 = sadd.s32 %s510, %s511
      %s513 = smul.addr %s512, 8
      %s514 = scalar_lea.vmem %s0, %s513
      %s515 = smul.u32 8, %s27
      %s516 = smul.u32 %s27, 4
      %s517 = ssub.s32 %s516, 1
      %p518 = scmp.gt.s32.totalorder %s517, 0
      %s519 = scalar_select %p518, %s517, 0
      %s520 = smul.u32 2, %s519
      %p521 = scmp.lt.s32.totalorder %s26, 1
      %s522 = scalar_select %p521, %s26, 1
      %p523 = scmp.lt.s32.totalorder %s520, 15
      %s524 = scalar_select %p523, %s520, 15
      %s525 = smul.addr %s524, 2
      %s526 = smul.addr %s522, 32
      %s527 = sadd.s32 %s525, %s526
      %s528 = smul.addr %s527, 8
      %s529 = scalar_lea.vmem %s1, %s528
      %s530 = smul.u32 %s27, 4
      %s531 = ssub.s32 %s530, 1
      %p532 = scmp.gt.s32.totalorder %s531, 0
      %s533 = scalar_select %p532, %s531, 0
      %s534 = smul.u32 2, %s533
      %s535 = smul.u32 %s27, 4
      %s536 = sadd.s32 %s535, 4
      %p537 = scmp.lt.s32.totalorder %s536, 7
      %s538 = scalar_select %p537, %s536, 7
      %s539 = smul.u32 2, %s538
      %p540 = scmp.lt.s32.totalorder %s26, 1
      %s541 = scalar_select %p540, %s26, 1
      %p542 = scmp.lt.s32.totalorder %s539, 15
      %s543 = scalar_select %p542, %s539, 15
      %s544 = smul.addr %s543, 2
      %s545 = smul.addr %s541, 32
      %s546 = sadd.s32 %s544, %s545
      %s547 = smul.addr %s546, 8
      %s548 = scalar_lea.vmem %s2, %s547
      %s549 = smul.u32 %s27, 4
      %s550 = sadd.s32 %s549, 4
      %p551 = scmp.lt.s32.totalorder %s550, 7
      %s552 = scalar_select %p551, %s550, 7
      %s553 = smul.u32 2, %s552
      %s554 = smul.u32 8, %s27
      %p555 = scmp.lt.s32.totalorder %s26, 1
      %s556 = scalar_select %p555, %s26, 1
      %p557 = scmp.lt.s32.totalorder %s554, 15
      %s558 = scalar_select %p557, %s554, 15
      %s559 = smul.addr %s558, 2
      %s560 = smul.addr %s556, 32
      %s561 = sadd.s32 %s559, %s560
      %s562 = smul.addr %s561, 8
      %s563 = scalar_lea.vmem %s11, %s562
      %s564 = smul.u32 8, %s27
      %v566 = vld [vmem:[%s8] sm:$0x1]
      %v567 = vld [vmem:[%s8 + $0x1] sm:$0x1]
      %v568 = vld [vmem:[%s8 + $0x2] sm:$0x1]
      %v569 = vld [vmem:[%s514] sm:$0xff]
      %v570 = vld [vmem:[%s514 + $0x8] sm:$0xff]
      %v571 = vld [vmem:[%s514 + $0x10] sm:$0xff]
      %v572 = vld [vmem:[%s514 + $0x18] sm:$0xff]
      %v573 = vld [vmem:[%s514 + $0x20] sm:$0xff]
      %v574 = vld [vmem:[%s514 + $0x28] sm:$0xff]
      %v575 = vld [vmem:[%s514 + $0x30] sm:$0xff]
      %v576 = vld [vmem:[%s514 + $0x38] sm:$0xff]
      %v577 = vld [vmem:[%s514 + $0x40] sm:$0xff]
      %v578 = vld [vmem:[%s514 + $0x48] sm:$0xff]
      %v579 = vld [vmem:[%s514 + $0x50] sm:$0xff]
      %v580 = vld [vmem:[%s514 + $0x58] sm:$0xff]
      %v581 = vld [vmem:[%s514 + $0x60] sm:$0xff]
      %v582 = vld [vmem:[%s514 + $0x68] sm:$0xff]
      %v583 = vld [vmem:[%s514 + $0x70] sm:$0xff]
      %v584 = vld [vmem:[%s514 + $0x78] sm:$0xff]
      %v585 = vpack.c.bf16 %v570, %v569
      %v586 = vpack.c.bf16 %v572, %v571
      %v587 = vpack.c.bf16 %v574, %v573
      %v588 = vpack.c.bf16 %v576, %v575
      %v589 = vpack.c.bf16 %v578, %v577
      %v590 = vpack.c.bf16 %v580, %v579
      %v591 = vpack.c.bf16 %v582, %v581
      %v592 = vpack.c.bf16 %v584, %v583
      %v593 = vld [vmem:[%s3] sm:$0x3]
      %vm594 = vcmask 31744
      %v596 = vsel %vm594, %v585, 0
      %v599 = vsel %vm594, %v586, 0
      %v602 = vsel %vm594, %v587, 0
      %v605 = vsel %vm594, %v588, 0
      %v608 = vsel %vm594, %v589, 0
      %v611 = vsel %vm594, %v590, 0
      %v614 = vsel %vm594, %v591, 0
      %v617 = vsel %vm594, %v592, 0
      %vm619 = vcmask 1041408
      %v621 = vsel %vm619, %v593, 0
      %623 = vmatprep.subr.bf16.mxu0 0
      %624 = vmatpush1.bf16.msra.mxu0 %v621
      %625 = vmatprep.subr.bf16.mxu0 0
      %626 = vmatpush1.bf16.msra.mxu0 0
      %627 = vmatprep.subr.bf16.mxu0 0
      %628 = vmatpush1.bf16.msra.mxu0 0
      %629 = vmatprep.subr.bf16.mxu0 0
      %630 = vmatpush1.bf16.msra.mxu0 0
      %631 = vmatprep.subr.bf16.mxu0 0
      %632 = vmatpush1.bf16.msra.mxu0 0
      %633 = vmatprep.subr.bf16.mxu0 0
      %634 = vmatpush1.bf16.msra.mxu0 0
      %635 = vmatprep.subr.bf16.mxu0 0
      %636 = vmatpush1.bf16.msra.mxu0 0
      %637 = vmatprep.subr.bf16.mxu0 0
      %638 = vmatpush1.bf16.msra.mxu0 0
      %639 = vmatprep.subr.bf16.mxu0 0
      %640 = vmatpush1.bf16.msra.mxu0 0
      %641 = vmatprep.subr.bf16.mxu0 0
      %642 = vmatpush1.bf16.msra.mxu0 0
      %643 = vmatprep.subr.bf16.mxu0 0
      %644 = vmatpush1.bf16.msra.mxu0 0
      %645 = vmatprep.subr.bf16.mxu0 0
      %646 = vmatpush1.bf16.msra.mxu0 0
      %647 = vmatprep.subr.bf16.mxu0 0
      %648 = vmatpush1.bf16.msra.mxu0 0
      %649 = vmatprep.subr.bf16.mxu0 0
      %650 = vmatpush1.bf16.msra.mxu0 0
      %651 = vmatprep.subr.bf16.mxu0 0
      %652 = vmatpush1.bf16.msra.mxu0 0
      %653 = vmatprep.subr.bf16.mxu0 0
      %654 = vmatpush1.bf16.msra.mxu0 0
      %655 = vmatprep.mubr.bf16.mxu0 0
      %656 = vmatmul.mubr.bf16.gmra.mrb[0].mxu0 %v596
      %v657 = vpop.f32.mrb[0].mxu0
      %v658 = vadd.f32 0.0, %v657
      %v659 = vpop.f32.mrb[0].mxu0
      %v660 = vpop.f32.mrb[0].mxu0
      %v661 = vadd.f32 0.0, %v660
      %v662 = vpop.f32.mrb[0].mxu0
      %663 = vmatprep.mubr.bf16.mxu0 0
      %664 = vmatmul.mubr.bf16.gmra.mrb[0].mxu0 %v599
      %v665 = vpop.f32.mrb[0].mxu0
      %v666 = vadd.f32 0.0, %v665
      %v667 = vpop.f32.mrb[0].mxu0
      %v668 = vpop.f32.mrb[0].mxu0
      %v669 = vadd.f32 0.0, %v668
      %v670 = vpop.f32.mrb[0].mxu0
      %671 = vmatprep.mubr.bf16.mxu0 0
      %672 = vmatmul.mubr.bf16.gmra.mrb[0].mxu0 %v602
      %v673 = vpop.f32.mrb[0].mxu0
      %v674 = vadd.f32 0.0, %v673
      %v675 = vpop.f32.mrb[0].mxu0
      %v676 = vpop.f32.mrb[0].mxu0
      %v677 = vadd.f32 0.0, %v676
      %v678 = vpop.f32.mrb[0].mxu0
      %679 = vmatprep.mubr.bf16.mxu0 0
      %680 = vmatmul.mubr.bf16.gmra.mrb[0].mxu0 %v605
      %v681 = vpop.f32.mrb[0].mxu0
      %v682 = vadd.f32 0.0, %v681
      %v683 = vpop.f32.mrb[0].mxu0
      %v684 = vpop.f32.mrb[0].mxu0
      %v685 = vadd.f32 0.0, %v684
      %v686 = vpop.f32.mrb[0].mxu0
      %687 = vmatprep.mubr.bf16.mxu0 0
      %688 = vmatmul.mubr.bf16.gmra.mrb[0].mxu0 %v608
      %v689 = vpop.f32.mrb[0].mxu0
      %v690 = vadd.f32 0.0, %v689
      %v691 = vpop.f32.mrb[0].mxu0
      %v692 = vpop.f32.mrb[0].mxu0
      %v693 = vadd.f32 0.0, %v692
      %v694 = vpop.f32.mrb[0].mxu0
      %695 = vmatprep.mubr.bf16.mxu0 0
      %696 = vmatmul.mubr.bf16.gmra.mrb[0].mxu0 %v611
      %v697 = vpop.f32.mrb[0].mxu0
      %v698 = vadd.f32 0.0, %v697
      %v699 = vpop.f32.mrb[0].mxu0
      %v700 = vpop.f32.mrb[0].mxu0
      %v701 = vadd.f32 0.0, %v700
      %v702 = vpop.f32.mrb[0].mxu0
      %703 = vmatprep.mubr.bf16.mxu0 0
      %704 = vmatmul.mubr.bf16.gmra.mrb[0].mxu0 %v614
      %v705 = vpop.f32.mrb[0].mxu0
      %v706 = vadd.f32 0.0, %v705
      %v707 = vpop.f32.mrb[0].mxu0
      %v708 = vpop.f32.mrb[0].mxu0
      %v709 = vadd.f32 0.0, %v708
      %v710 = vpop.f32.mrb[0].mxu0
      %711 = vmatprep.mubr.bf16.mxu0 0
      %712 = vmatmul.mubr.bf16.gmra.mrb[0].mxu0 %v617
      %v713 = vpop.f32.mrb[0].mxu0
      %v714 = vadd.f32 0.0, %v713
      %v715 = vpop.f32.mrb[0].mxu0
      %v716 = vpop.f32.mrb[0].mxu0
      %v717 = vadd.f32 0.0, %v716
      %v718 = vpop.f32.mrb[0].mxu0
      %719 = vdwg.mxu0
      %v720 = vlaneseq
      %v721 = vshrl.u32 %v720, 7
      %v722 = vsub.s32 0, %v721
      %v723 = vrot.slane %v566, %v722
      %v724 = vadd.f32 %v658, %v723
      %v725 = vadd.f32 %v661, %v723
      %v726 = vadd.f32 %v666, %v723
      %v727 = vadd.f32 %v669, %v723
      %v728 = vadd.f32 %v674, %v723
      %v729 = vadd.f32 %v677, %v723
      %v730 = vadd.f32 %v682, %v723
      %v731 = vadd.f32 %v685, %v723
      %v732 = vadd.f32 %v690, %v723
      %v733 = vadd.f32 %v693, %v723
      %v734 = vadd.f32 %v698, %v723
      %v735 = vadd.f32 %v701, %v723
      %v736 = vadd.f32 %v706, %v723
      %v737 = vadd.f32 %v709, %v723
      %v738 = vadd.f32 %v714, %v723
      %v739 = vadd.f32 %v717, %v723
      %v740 = vxor.u32 %v724, 2147483648
      %v741 = vxor.u32 %v725, 2147483648
      %v742 = vxor.u32 %v726, 2147483648
      %v743 = vxor.u32 %v727, 2147483648
      %v744 = vxor.u32 %v728, 2147483648
      %v745 = vxor.u32 %v729, 2147483648
      %v746 = vxor.u32 %v730, 2147483648
      %v747 = vxor.u32 %v731, 2147483648
      %v748 = vxor.u32 %v732, 2147483648
      %v749 = vxor.u32 %v733, 2147483648
      %v750 = vxor.u32 %v734, 2147483648
      %v751 = vxor.u32 %v735, 2147483648
      %v752 = vxor.u32 %v736, 2147483648
      %v753 = vxor.u32 %v737, 2147483648
      %v754 = vxor.u32 %v738, 2147483648
      %v755 = vxor.u32 %v739, 2147483648
      %v756 = vmul.f32 %v740, 1.442695
      %v757 = vpow.pop %v756
      %v758 = vmul.f32 %v741, 1.442695
      %v759 = vpow.pop %v758
      %v760 = vmul.f32 %v742, 1.442695
      %v761 = vpow.pop %v760
      %v762 = vmul.f32 %v743, 1.442695
      %v763 = vpow.pop %v762
      %v764 = vmul.f32 %v744, 1.442695
      %v765 = vpow.pop %v764
      %v766 = vmul.f32 %v745, 1.442695
      %v767 = vpow.pop %v766
      %v768 = vmul.f32 %v746, 1.442695
      %v769 = vpow.pop %v768
      %v770 = vmul.f32 %v747, 1.442695
      %v771 = vpow.pop %v770
      %v772 = vmul.f32 %v748, 1.442695
      %v773 = vpow.pop %v772
      %v774 = vmul.f32 %v749, 1.442695
      %v775 = vpow.pop %v774
      %v776 = vmul.f32 %v750, 1.442695
      %v777 = vpow.pop %v776
      %v778 = vmul.f32 %v751, 1.442695
      %v779 = vpow.pop %v778
      %v780 = vmul.f32 %v752, 1.442695
      %v781 = vpow.pop %v780
      %v782 = vmul.f32 %v753, 1.442695
      %v783 = vpow.pop %v782
      %v784 = vmul.f32 %v754, 1.442695
      %v785 = vpow.pop %v784
      %v786 = vmul.f32 %v755, 1.442695
      %v787 = vpow.pop %v786
      %v788 = vadd.f32 %v757, 1.0
      %v789 = vadd.f32 %v759, 1.0
      %v790 = vadd.f32 %v761, 1.0
      %v791 = vadd.f32 %v763, 1.0
      %v792 = vadd.f32 %v765, 1.0
      %v793 = vadd.f32 %v767, 1.0
      %v794 = vadd.f32 %v769, 1.0
      %v795 = vadd.f32 %v771, 1.0
      %v796 = vadd.f32 %v773, 1.0
      %v797 = vadd.f32 %v775, 1.0
      %v798 = vadd.f32 %v777, 1.0
      %v799 = vadd.f32 %v779, 1.0
      %v800 = vadd.f32 %v781, 1.0
      %v801 = vadd.f32 %v783, 1.0
      %v802 = vadd.f32 %v785, 1.0
      %v803 = vadd.f32 %v787, 1.0
      %v804 = vrcp.pop %v788
      %v805 = vmul.f32 1.0, %v804
      %v806 = vrcp.pop %v789
      %v807 = vmul.f32 1.0, %v806
      %v808 = vrcp.pop %v790
      %v809 = vmul.f32 1.0, %v808
      %v810 = vrcp.pop %v791
      %v811 = vmul.f32 1.0, %v810
      %v812 = vrcp.pop %v792
      %v813 = vmul.f32 1.0, %v812
      %v814 = vrcp.pop %v793
      %v815 = vmul.f32 1.0, %v814
      %v816 = vrcp.pop %v794
      %v817 = vmul.f32 1.0, %v816
      %v818 = vrcp.pop %v795
      %v819 = vmul.f32 1.0, %v818
      %v820 = vrcp.pop %v796
      %v821 = vmul.f32 1.0, %v820
      %v822 = vrcp.pop %v797
      %v823 = vmul.f32 1.0, %v822
      %v824 = vrcp.pop %v798
      %v825 = vmul.f32 1.0, %v824
      %v826 = vrcp.pop %v799
      %v827 = vmul.f32 1.0, %v826
      %v828 = vrcp.pop %v800
      %v829 = vmul.f32 1.0, %v828
      %v830 = vrcp.pop %v801
      %v831 = vmul.f32 1.0, %v830
      %v832 = vrcp.pop %v802
      %v833 = vmul.f32 1.0, %v832
      %v834 = vrcp.pop %v803
      %v835 = vmul.f32 1.0, %v834
      %v836 = vmul.f32 %v724, %v805
      %v837 = vmul.f32 %v725, %v807
      %v838 = vmul.f32 %v726, %v809
      %v839 = vmul.f32 %v727, %v811
      %v840 = vmul.f32 %v728, %v813
      %v841 = vmul.f32 %v729, %v815
      %v842 = vmul.f32 %v730, %v817
      %v843 = vmul.f32 %v731, %v819
      %v844 = vmul.f32 %v732, %v821
      %v845 = vmul.f32 %v733, %v823
      %v846 = vmul.f32 %v734, %v825
      %v847 = vmul.f32 %v735, %v827
      %v848 = vmul.f32 %v736, %v829
      %v849 = vmul.f32 %v737, %v831
      %v850 = vmul.f32 %v738, %v833
      %v851 = vmul.f32 %v739, %v835
      %p852 = scmp.gt.s32.totalorder %s27, 0
      %v853 = vld [vmem:[%s529] sm:$0xff]
      %v854 = vld [vmem:[%s529 + $0x8] sm:$0xff]
      %v855 = vld [vmem:[%s529 + $0x10] sm:$0xff]
      %v856 = vld [vmem:[%s529 + $0x18] sm:$0xff]
      %v857 = vpack.c.bf16 %v854, %v853
      %v858 = vpack.c.bf16 %v856, %v855
      %v860 = vsel %vm594, %v857, 0
      %v863 = vsel %vm594, %v858, 0
      %865 = vmatprep.subr.bf16.mxu0 0
      %866 = vmatpush1.bf16.msra.mxu0 %v621
      %867 = vmatprep.subr.bf16.mxu0 0
      %868 = vmatpush1.bf16.msra.mxu0 0
      %869 = vmatprep.subr.bf16.mxu0 0
      %870 = vmatpush1.bf16.msra.mxu0 0
      %871 = vmatprep.subr.bf16.mxu0 0
      %872 = vmatpush1.bf16.msra.mxu0 0
      %873 = vmatprep.subr.bf16.mxu0 0
      %874 = vmatpush1.bf16.msra.mxu0 0
      %875 = vmatprep.subr.bf16.mxu0 0
      %876 = vmatpush1.bf16.msra.mxu0 0
      %877 = vmatprep.subr.bf16.mxu0 0
      %878 = vmatpush1.bf16.msra.mxu0 0
      %879 = vmatprep.subr.bf16.mxu0 0
      %880 = vmatpush1.bf16.msra.mxu0 0
      %881 = vmatprep.subr.bf16.mxu0 0
      %882 = vmatpush1.bf16.msra.mxu0 0
      %883 = vmatprep.subr.bf16.mxu0 0
      %884 = vmatpush1.bf16.msra.mxu0 0
      %885 = vmatprep.subr.bf16.mxu0 0
      %886 = vmatpush1.bf16.msra.mxu0 0
      %887 = vmatprep.subr.bf16.mxu0 0
      %888 = vmatpush1.bf16.msra.mxu0 0
      %889 = vmatprep.subr.bf16.mxu0 0
      %890 = vmatpush1.bf16.msra.mxu0 0
      %891 = vmatprep.subr.bf16.mxu0 0
      %892 = vmatpush1.bf16.msra.mxu0 0
      %893 = vmatprep.subr.bf16.mxu0 0
      %894 = vmatpush1.bf16.msra.mxu0 0
      %895 = vmatprep.subr.bf16.mxu0 0
      %896 = vmatpush1.bf16.msra.mxu0 0
      %897 = vmatprep.mubr.bf16.mxu0 0
      %898 = vmatmul.mubr.bf16.gmra.mrb[0].mxu0 %v860
      %v899 = vpop.f32.mrb[0].mxu0
      %v900 = vadd.f32 0.0, %v899
      %v901 = vpop.f32.mrb[0].mxu0
      %v902 = vpop.f32.mrb[0].mxu0
      %v903 = vadd.f32 0.0, %v902
      %v904 = vpop.f32.mrb[0].mxu0
      %905 = vmatprep.mubr.bf16.mxu0 0
      %906 = vmatmul.mubr.bf16.gmra.mrb[0].mxu0 %v863
      %v907 = vpop.f32.mrb[0].mxu0
      %v908 = vadd.f32 0.0, %v907
      %v909 = vpop.f32.mrb[0].mxu0
      %v910 = vpop.f32.mrb[0].mxu0
      %v911 = vadd.f32 0.0, %v910
      %v912 = vpop.f32.mrb[0].mxu0
      %913 = vdwg.mxu0
      %v914 = vadd.f32 %v900, %v723
      %v915 = vadd.f32 %v903, %v723
      %v916 = vadd.f32 %v908, %v723
      %v917 = vadd.f32 %v911, %v723
      %v918 = vxor.u32 %v914, 2147483648
      %v919 = vxor.u32 %v915, 2147483648
      %v920 = vxor.u32 %v916, 2147483648
      %v921 = vxor.u32 %v917, 2147483648
      %v922 = vmul.f32 %v918, 1.442695
      %v923 = vpow.pop %v922
      %v924 = vmul.f32 %v919, 1.442695
      %v925 = vpow.pop %v924
      %v926 = vmul.f32 %v920, 1.442695
      %v927 = vpow.pop %v926
      %v928 = vmul.f32 %v921, 1.442695
      %v929 = vpow.pop %v928
      %v930 = vadd.f32 %v923, 1.0
      %v931 = vadd.f32 %v925, 1.0
      %v932 = vadd.f32 %v927, 1.0
      %v933 = vadd.f32 %v929, 1.0
      %v934 = vrcp.pop %v930
      %v935 = vmul.f32 1.0, %v934
      %v936 = vrcp.pop %v931
      %v937 = vmul.f32 1.0, %v936
      %v938 = vrcp.pop %v932
      %v939 = vmul.f32 1.0, %v938
      %v940 = vrcp.pop %v933
      %v941 = vmul.f32 1.0, %v940
      %v942 = vmul.f32 %v914, %v935
      %v943 = vmul.f32 %v915, %v937
      %v944 = vmul.f32 %v916, %v939
      %v945 = vmul.f32 %v917, %v941
      %s946 = scalar_select %p852, 1, 0
      %v947 = vstv %s946
      %vm948 = vcmp.eq.s32.totalorder %v947, 1
      %v949 = vsel %vm948, %v942, 0.0
      %v950 = vsel %vm948, %v943, 0.0
      %v951 = vsel %vm948, %v944, 0.0
      %v952 = vsel %vm948, %v945, 0.0
      %p953 = scmp.lt.s32.totalorder %s27, 1
      %v954 = vld [vmem:[%s548] sm:$0xff]
      %v955 = vld [vmem:[%s548 + $0x8] sm:$0xff]
      %v956 = vld [vmem:[%s548 + $0x10] sm:$0xff]
      %v957 = vld [vmem:[%s548 + $0x18] sm:$0xff]
      %v958 = vpack.c.bf16 %v955, %v954
      %v959 = vpack.c.bf16 %v957, %v956
      %v961 = vsel %vm594, %v958, 0
      %v964 = vsel %vm594, %v959, 0
      %966 = vmatprep.subr.bf16.mxu0 0
      %967 = vmatpush1.bf16.msra.mxu0 %v621
      %968 = vmatprep.subr.bf16.mxu0 0
      %969 = vmatpush1.bf16.msra.mxu0 0
      %970 = vmatprep.subr.bf16.mxu0 0
      %971 = vmatpush1.bf16.msra.mxu0 0
      %972 = vmatprep.subr.bf16.mxu0 0
      %973 = vmatpush1.bf16.msra.mxu0 0
      %974 = vmatprep.subr.bf16.mxu0 0
      %975 = vmatpush1.bf16.msra.mxu0 0
      %976 = vmatprep.subr.bf16.mxu0 0
      %977 = vmatpush1.bf16.msra.mxu0 0
      %978 = vmatprep.subr.bf16.mxu0 0
      %979 = vmatpush1.bf16.msra.mxu0 0
      %980 = vmatprep.subr.bf16.mxu0 0
      %981 = vmatpush1.bf16.msra.mxu0 0
      %982 = vmatprep.subr.bf16.mxu0 0
      %983 = vmatpush1.bf16.msra.mxu0 0
      %984 = vmatprep.subr.bf16.mxu0 0
      %985 = vmatpush1.bf16.msra.mxu0 0
      %986 = vmatprep.subr.bf16.mxu0 0
      %987 = vmatpush1.bf16.msra.mxu0 0
      %988 = vmatprep.subr.bf16.mxu0 0
      %989 = vmatpush1.bf16.msra.mxu0 0
      %990 = vmatprep.subr.bf16.mxu0 0
      %991 = vmatpush1.bf16.msra.mxu0 0
      %992 = vmatprep.subr.bf16.mxu0 0
      %993 = vmatpush1.bf16.msra.mxu0 0
      %994 = vmatprep.subr.bf16.mxu0 0
      %995 = vmatpush1.bf16.msra.mxu0 0
      %996 = vmatprep.subr.bf16.mxu0 0
      %997 = vmatpush1.bf16.msra.mxu0 0
      %998 = vmatprep.mubr.bf16.mxu0 0
      %999 = vmatmul.mubr.bf16.gmra.mrb[0].mxu0 %v961
      %v1000 = vpop.f32.mrb[0].mxu0
      %v1001 = vadd.f32 0.0, %v1000
      %v1002 = vpop.f32.mrb[0].mxu0
      %v1003 = vpop.f32.mrb[0].mxu0
      %v1004 = vadd.f32 0.0, %v1003
      %v1005 = vpop.f32.mrb[0].mxu0
      %1006 = vmatprep.mubr.bf16.mxu0 0
      %1007 = vmatmul.mubr.bf16.gmra.mrb[0].mxu0 %v964
      %v1008 = vpop.f32.mrb[0].mxu0
      %v1009 = vadd.f32 0.0, %v1008
      %v1010 = vpop.f32.mrb[0].mxu0
      %v1011 = vpop.f32.mrb[0].mxu0
      %v1012 = vadd.f32 0.0, %v1011
      %v1013 = vpop.f32.mrb[0].mxu0
      %1014 = vdwg.mxu0
      %v1015 = vadd.f32 %v1001, %v723
      %v1016 = vadd.f32 %v1004, %v723
      %v1017 = vadd.f32 %v1009, %v723
      %v1018 = vadd.f32 %v1012, %v723
      %v1019 = vxor.u32 %v1015, 2147483648
      %v1020 = vxor.u32 %v1016, 2147483648
      %v1021 = vxor.u32 %v1017, 2147483648
      %v1022 = vxor.u32 %v1018, 2147483648
      %v1023 = vmul.f32 %v1019, 1.442695
      %v1024 = vpow.pop %v1023
      %v1025 = vmul.f32 %v1020, 1.442695
      %v1026 = vpow.pop %v1025
      %v1027 = vmul.f32 %v1021, 1.442695
      %v1028 = vpow.pop %v1027
      %v1029 = vmul.f32 %v1022, 1.442695
      %v1030 = vpow.pop %v1029
      %v1031 = vadd.f32 %v1024, 1.0
      %v1032 = vadd.f32 %v1026, 1.0
      %v1033 = vadd.f32 %v1028, 1.0
      %v1034 = vadd.f32 %v1030, 1.0
      %v1035 = vrcp.pop %v1031
      %v1036 = vmul.f32 1.0, %v1035
      %v1037 = vrcp.pop %v1032
      %v1038 = vmul.f32 1.0, %v1037
      %v1039 = vrcp.pop %v1033
      %v1040 = vmul.f32 1.0, %v1039
      %v1041 = vrcp.pop %v1034
      %v1042 = vmul.f32 1.0, %v1041
      %v1043 = vmul.f32 %v1015, %v1036
      %v1044 = vmul.f32 %v1016, %v1038
      %v1045 = vmul.f32 %v1017, %v1040
      %v1046 = vmul.f32 %v1018, %v1042
      %s1047 = scalar_select %p953, 1, 0
      %v1048 = vstv %s1047
      %vm1049 = vcmp.eq.s32.totalorder %v1048, 1
      %v1050 = vsel %vm1049, %v1043, 0.0
      %v1051 = vsel %vm1049, %v1044, 0.0
      %v1052 = vsel %vm1049, %v1045, 0.0
      %v1053 = vsel %vm1049, %v1046, 0.0
      %vm1054 = vcmask 8192
      %vm1055 = vsmask.f32 256
      %vm1056 = vmand %vm1054, %vm1055
      %v1057 = vld [vmem:[#allocation2] sm:$0x1]
      %v1058 = vsel %vm1056, 0, %v1057
      %1059 = vst [vmem:[#allocation2] sm:$0x1] %v1058
      %v1060 = vld [vmem:[#allocation2 + $0xc] sm:$0x1]
      %v1061 = vsel %vm1056, 0, %v1060
      %1062 = vst [vmem:[#allocation2 + $0xc] sm:$0x1] %v1061
      %v1063 = vld [vmem:[#allocation2 + $0x18] sm:$0x1]
      %v1064 = vsel %vm1056, 0, %v1063
      %1065 = vst [vmem:[#allocation2 + $0x18] sm:$0x1] %v1064
      %v1066 = vld [vmem:[#allocation2 + $0x24] sm:$0x1]
      %v1067 = vsel %vm1056, 0, %v1066
      %1068 = vst [vmem:[#allocation2 + $0x24] sm:$0x1] %v1067
      %v1069 = vld [vmem:[#allocation2 + $0x30] sm:$0x1]
      %v1070 = vsel %vm1056, 0, %v1069
      %1071 = vst [vmem:[#allocation2 + $0x30] sm:$0x1] %v1070
      %v1072 = vld [vmem:[#allocation2 + $0x3c] sm:$0x1]
      %v1073 = vsel %vm1056, 0, %v1072
      %1074 = vst [vmem:[#allocation2 + $0x3c] sm:$0x1] %v1073
      %v1075 = vld [vmem:[#allocation2 + $0x48] sm:$0x1]
      %v1076 = vsel %vm1056, 0, %v1075
      %1077 = vst [vmem:[#allocation2 + $0x48] sm:$0x1] %v1076
      %v1078 = vld [vmem:[#allocation2 + $0x54] sm:$0x1]
      %v1079 = vsel %vm1056, 0, %v1078
      %1080 = vst [vmem:[#allocation2 + $0x54] sm:$0x1] %v1079
      %v1081 = vld [vmem:[#allocation2 + $0x60] sm:$0x1]
      %v1082 = vsel %vm1056, 0, %v1081
      %1083 = vst [vmem:[#allocation2 + $0x60] sm:$0x1] %v1082
      %v1084 = vld [vmem:[#allocation2 + $0x6c] sm:$0x1]
      %v1085 = vsel %vm1056, 0, %v1084
      %1086 = vst [vmem:[#allocation2 + $0x6c] sm:$0x1] %v1085
      %v1087 = vld [vmem:[#allocation2 + $0x78] sm:$0x1]
      %v1088 = vsel %vm1056, 0, %v1087
      %1089 = vst [vmem:[#allocation2 + $0x78] sm:$0x1] %v1088
      %v1090 = vld [vmem:[#allocation2 + $0x84] sm:$0x1]
      %v1091 = vsel %vm1056, 0, %v1090
      %1092 = vst [vmem:[#allocation2 + $0x84] sm:$0x1] %v1091
      %vm1093 = vsmask.f32 7938
      %vm1094 = vmand %vm1054, %vm1093
      %v1095 = vld [vmem:[#allocation2 + $0x8] sm:$0x1]
      %v1096 = vsel %vm1094, 0, %v1095
      %1097 = vst [vmem:[#allocation2 + $0x8] sm:$0x1] %v1096
      %v1098 = vld [vmem:[#allocation2 + $0x14] sm:$0x1]
      %v1099 = vsel %vm1094, 0, %v1098
      %1100 = vst [vmem:[#allocation2 + $0x14] sm:$0x1] %v1099
      %v1101 = vld [vmem:[#allocation2 + $0x20] sm:$0x1]
      %v1102 = vsel %vm1094, 0, %v1101
      %1103 = vst [vmem:[#allocation2 + $0x20] sm:$0x1] %v1102
      %v1104 = vld [vmem:[#allocation2 + $0x2c] sm:$0x1]
      %v1105 = vsel %vm1094, 0, %v1104
      %1106 = vst [vmem:[#allocation2 + $0x2c] sm:$0x1] %v1105
      %v1107 = vld [vmem:[#allocation2 + $0x38] sm:$0x1]
      %v1108 = vsel %vm1094, 0, %v1107
      %1109 = vst [vmem:[#allocation2 + $0x38] sm:$0x1] %v1108
      %v1110 = vld [vmem:[#allocation2 + $0x44] sm:$0x1]
      %v1111 = vsel %vm1094, 0, %v1110
      %1112 = vst [vmem:[#allocation2 + $0x44] sm:$0x1] %v1111
      %v1113 = vld [vmem:[#allocation2 + $0x50] sm:$0x1]
      %v1114 = vsel %vm1094, 0, %v1113
      %1115 = vst [vmem:[#allocation2 + $0x50] sm:$0x1] %v1114
      %v1116 = vld [vmem:[#allocation2 + $0x5c] sm:$0x1]
      %v1117 = vsel %vm1094, 0, %v1116
      %1118 = vst [vmem:[#allocation2 + $0x5c] sm:$0x1] %v1117
      %v1119 = vld [vmem:[#allocation2 + $0x68] sm:$0x1]
      %v1120 = vsel %vm1094, 0, %v1119
      %1121 = vst [vmem:[#allocation2 + $0x68] sm:$0x1] %v1120
      %v1122 = vld [vmem:[#allocation2 + $0x74] sm:$0x1]
      %v1123 = vsel %vm1094, 0, %v1122
      %1124 = vst [vmem:[#allocation2 + $0x74] sm:$0x1] %v1123
      %v1125 = vld [vmem:[#allocation2 + $0x80] sm:$0x1]
      %v1126 = vsel %vm1094, 0, %v1125
      %1127 = vst [vmem:[#allocation2 + $0x80] sm:$0x1] %v1126
      %v1128 = vld [vmem:[#allocation2 + $0x8c] sm:$0x1]
      %v1129 = vsel %vm1094, 0, %v1128
      %1130 = vst [vmem:[#allocation2 + $0x8c] sm:$0x1] %v1129
      %v1131 = vpack.c.bf16 %v950, %v949
      %v1132 = vpack.c.bf16 %v952, %v951
      %v1135 = vunpack.c.l.b16 %v1131
      %v1136 = vunpack.c.h.b16 %v1131
      %v1137 = vunpack.c.l.b16 %v1132
      %v1138 = vunpack.c.h.b16 %v1132
      %v1139 = vpack.c.b16 %v1135, %v1135
      %v1140 = vpack.c.b16 %v1136, %v1136
      %v1141 = vpack.c.b16 %v1137, %v1137
      %v1142 = vpack.c.b16 %v1138, %v1138
      %vm1143 = vsmask.f32 4368
      %vm1144 = vmor %vm1055, %vm1143
      %v1146 = vshrl.u32 %v1139, 16
      %v1148 = vrot.slane %v1146, 7
      %v1149 = vshll.u32 %v1139, 16
      %v1151 = vor.u32 %v1148, %v1149
      %v1152 = vrot.slane %v1148, 4
      %v1154 = vshrl.u32 %v1140, 16
      %v1156 = vrot.slane %v1154, 7
      %v1157 = vshll.u32 %v1140, 16
      %v1159 = vor.u32 %v1156, %v1157
      %v1160 = vsel %vm1144, %v1152, %v1159
      %v1161 = vrot.slane %v1156, 4
      %v1163 = vshrl.u32 %v1141, 16
      %v1165 = vrot.slane %v1163, 7
      %v1166 = vshll.u32 %v1141, 16
      %v1168 = vor.u32 %v1165, %v1166
      %v1169 = vrot.slane %v1165, 4
      %v1171 = vshrl.u32 %v1142, 16
      %v1173 = vrot.slane %v1171, 7
      %v1174 = vshll.u32 %v1142, 16
      %v1176 = vor.u32 %v1173, %v1174
      %v1177 = vsel %vm1144, %v1169, %v1176
      %v1178 = vrot.slane %v1173, 4
      %vm1185 = vcmask 11264
      %vm1186 = vmand %vm1185, %vm1093
      %v1187 = vld [vmem:[#allocation2] sm:$0xf]
      %v1188 = vsel %vm1186, %v1151, %v1187
      %1189 = vst [vmem:[#allocation2] sm:$0xf] %v1188
      %vm1190 = vcmask 11264
      %1191 = vst.msk [vmem:[#allocation2 + $0x4] sm:$0xf] %vm1190, %v1160
      %v1192 = vld [vmem:[#allocation2 + $0x8] sm:$0x1]
      %v1193 = vsel %vm1056, %v1161, %v1192
      %1194 = vst [vmem:[#allocation2 + $0x8] sm:$0x1] %v1193
      %v1195 = vld [vmem:[#allocation2 + $0xc] sm:$0xf]
      %v1196 = vsel %vm1186, %v1168, %v1195
      %1197 = vst [vmem:[#allocation2 + $0xc] sm:$0xf] %v1196
      %1198 = vst.msk [vmem:[#allocation2 + $0x10] sm:$0xf] %vm1190, %v1177
      %v1199 = vld [vmem:[#allocation2 + $0x14] sm:$0x1]
      %v1200 = vsel %vm1056, %v1178, %v1199
      %1201 = vst [vmem:[#allocation2 + $0x14] sm:$0x1] %v1200
      %v1202 = vpack.c.bf16 %v837, %v836
      %v1203 = vpack.c.bf16 %v839, %v838
      %v1204 = vpack.c.bf16 %v841, %v840
      %v1205 = vpack.c.bf16 %v843, %v842
      %v1206 = vpack.c.bf16 %v845, %v844
      %v1207 = vpack.c.bf16 %v847, %v846
      %v1208 = vpack.c.bf16 %v849, %v848
      %v1209 = vpack.c.bf16 %v851, %v850
      %v1218 = vunpack.c.l.b16 %v1202
      %v1219 = vunpack.c.h.b16 %v1202
      %v1220 = vunpack.c.l.b16 %v1203
      %v1221 = vunpack.c.h.b16 %v1203
      %v1222 = vunpack.c.l.b16 %v1204
      %v1223 = vunpack.c.h.b16 %v1204
      %v1224 = vunpack.c.l.b16 %v1205
      %v1225 = vunpack.c.h.b16 %v1205
      %v1226 = vunpack.c.l.b16 %v1206
      %v1227 = vunpack.c.h.b16 %v1206
      %v1228 = vunpack.c.l.b16 %v1207
      %v1229 = vunpack.c.h.b16 %v1207
      %v1230 = vunpack.c.l.b16 %v1208
      %v1231 = vunpack.c.h.b16 %v1208
      %v1232 = vunpack.c.l.b16 %v1209
      %v1233 = vunpack.c.h.b16 %v1209
      %v1234 = vpack.c.b16 %v1218, %v1218
      %v1235 = vpack.c.b16 %v1219, %v1219
      %v1236 = vpack.c.b16 %v1220, %v1220
      %v1237 = vpack.c.b16 %v1221, %v1221
      %v1238 = vpack.c.b16 %v1222, %v1222
      %v1239 = vpack.c.b16 %v1223, %v1223
      %v1240 = vpack.c.b16 %v1224, %v1224
      %v1241 = vpack.c.b16 %v1225, %v1225
      %v1242 = vpack.c.b16 %v1226, %v1226
      %v1243 = vpack.c.b16 %v1227, %v1227
      %v1244 = vpack.c.b16 %v1228, %v1228
      %v1245 = vpack.c.b16 %v1229, %v1229
      %v1246 = vpack.c.b16 %v1230, %v1230
      %v1247 = vpack.c.b16 %v1231, %v1231
      %v1248 = vpack.c.b16 %v1232, %v1232
      %v1249 = vpack.c.b16 %v1233, %v1233
      %v1251 = vshrl.u32 %v1234, 16
      %v1253 = vrot.slane %v1251, 7
      %v1254 = vshll.u32 %v1234, 16
      %v1256 = vor.u32 %v1253, %v1254
      %v1257 = vrot.slane %v1253, 4
      %v1259 = vshrl.u32 %v1235, 16
      %v1261 = vrot.slane %v1259, 7
      %v1262 = vshll.u32 %v1235, 16
      %v1264 = vor.u32 %v1261, %v1262
      %v1265 = vsel %vm1144, %v1257, %v1264
      %v1266 = vrot.slane %v1261, 4
      %v1268 = vshrl.u32 %v1236, 16
      %v1270 = vrot.slane %v1268, 7
      %v1271 = vshll.u32 %v1236, 16
      %v1273 = vor.u32 %v1270, %v1271
      %v1274 = vrot.slane %v1270, 4
      %v1276 = vshrl.u32 %v1237, 16
      %v1278 = vrot.slane %v1276, 7
      %v1279 = vshll.u32 %v1237, 16
      %v1281 = vor.u32 %v1278, %v1279
      %v1282 = vsel %vm1144, %v1274, %v1281
      %v1283 = vrot.slane %v1278, 4
      %v1285 = vshrl.u32 %v1238, 16
      %v1287 = vrot.slane %v1285, 7
      %v1288 = vshll.u32 %v1238, 16
      %v1290 = vor.u32 %v1287, %v1288
      %v1291 = vrot.slane %v1287, 4
      %v1293 = vshrl.u32 %v1239, 16
      %v1295 = vrot.slane %v1293, 7
      %v1296 = vshll.u32 %v1239, 16
      %v1298 = vor.u32 %v1295, %v1296
      %v1299 = vsel %vm1144, %v1291, %v1298
      %v1300 = vrot.slane %v1295, 4
      %v1302 = vshrl.u32 %v1240, 16
      %v1304 = vrot.slane %v1302, 7
      %v1305 = vshll.u32 %v1240, 16
      %v1307 = vor.u32 %v1304, %v1305
      %v1308 = vrot.slane %v1304, 4
      %v1310 = vshrl.u32 %v1241, 16
      %v1312 = vrot.slane %v1310, 7
      %v1313 = vshll.u32 %v1241, 16
      %v1315 = vor.u32 %v1312, %v1313
      %v1316 = vsel %vm1144, %v1308, %v1315
      %v1317 = vrot.slane %v1312, 4
      %v1319 = vshrl.u32 %v1242, 16
      %v1321 = vrot.slane %v1319, 7
      %v1322 = vshll.u32 %v1242, 16
      %v1324 = vor.u32 %v1321, %v1322
      %v1325 = vrot.slane %v1321, 4
      %v1327 = vshrl.u32 %v1243, 16
      %v1329 = vrot.slane %v1327, 7
      %v1330 = vshll.u32 %v1243, 16
      %v1332 = vor.u32 %v1329, %v1330
      %v1333 = vsel %vm1144, %v1325, %v1332
      %v1334 = vrot.slane %v1329, 4
      %v1336 = vshrl.u32 %v1244, 16
      %v1338 = vrot.slane %v1336, 7
      %v1339 = vshll.u32 %v1244, 16
      %v1341 = vor.u32 %v1338, %v1339
      %v1342 = vrot.slane %v1338, 4
      %v1344 = vshrl.u32 %v1245, 16
      %v1346 = vrot.slane %v1344, 7
      %v1347 = vshll.u32 %v1245, 16
      %v1349 = vor.u32 %v1346, %v1347
      %v1350 = vsel %vm1144, %v1342, %v1349
      %v1351 = vrot.slane %v1346, 4
      %v1353 = vshrl.u32 %v1246, 16
      %v1355 = vrot.slane %v1353, 7
      %v1356 = vshll.u32 %v1246, 16
      %v1358 = vor.u32 %v1355, %v1356
      %v1359 = vrot.slane %v1355, 4
      %v1361 = vshrl.u32 %v1247, 16
      %v1363 = vrot.slane %v1361, 7
      %v1364 = vshll.u32 %v1247, 16
      %v1366 = vor.u32 %v1363, %v1364
      %v1367 = vsel %vm1144, %v1359, %v1366
      %v1368 = vrot.slane %v1363, 4
      %v1370 = vshrl.u32 %v1248, 16
      %v1372 = vrot.slane %v1370, 7
      %v1373 = vshll.u32 %v1248, 16
      %v1375 = vor.u32 %v1372, %v1373
      %v1376 = vrot.slane %v1372, 4
      %v1378 = vshrl.u32 %v1249, 16
      %v1380 = vrot.slane %v1378, 7
      %v1381 = vshll.u32 %v1249, 16
      %v1383 = vor.u32 %v1380, %v1381
      %v1384 = vsel %vm1144, %v1376, %v1383
      %v1385 = vrot.slane %v1380, 4
      %s1410 = scalar_lea.vmem [#allocation2], 24
      %v1411 = vld [vmem:[%s1410] sm:$0xf]
      %v1412 = vsel %vm1186, %v1256, %v1411
      %1413 = vst [vmem:[%s1410] sm:$0xf] %v1412
      %1414 = vst.msk [vmem:[%s1410 + $0x4] sm:$0xf] %vm1190, %v1265
      %v1415 = vld [vmem:[%s1410 + $0x8] sm:$0x1]
      %v1416 = vsel %vm1056, %v1266, %v1415
      %1417 = vst [vmem:[%s1410 + $0x8] sm:$0x1] %v1416
      %v1418 = vld [vmem:[%s1410 + $0xc] sm:$0xf]
      %v1419 = vsel %vm1186, %v1273, %v1418
      %1420 = vst [vmem:[%s1410 + $0xc] sm:$0xf] %v1419
      %1421 = vst.msk [vmem:[%s1410 + $0x10] sm:$0xf] %vm1190, %v1282
      %v1422 = vld [vmem:[%s1410 + $0x14] sm:$0x1]
      %v1423 = vsel %vm1056, %v1283, %v1422
      %1424 = vst [vmem:[%s1410 + $0x14] sm:$0x1] %v1423
      %v1425 = vld [vmem:[%s1410 + $0x18] sm:$0xf]
      %v1426 = vsel %vm1186, %v1290, %v1425
      %1427 = vst [vmem:[%s1410 + $0x18] sm:$0xf] %v1426
      %1428 = vst.msk [vmem:[%s1410 + $0x1c] sm:$0xf] %vm1190, %v1299
      %v1429 = vld [vmem:[%s1410 + $0x20] sm:$0x1]
      %v1430 = vsel %vm1056, %v1300, %v1429
      %1431 = vst [vmem:[%s1410 + $0x20] sm:$0x1] %v1430
      %v1432 = vld [vmem:[%s1410 + $0x24] sm:$0xf]
      %v1433 = vsel %vm1186, %v1307, %v1432
      %1434 = vst [vmem:[%s1410 + $0x24] sm:$0xf] %v1433
      %1435 = vst.msk [vmem:[%s1410 + $0x28] sm:$0xf] %vm1190, %v1316
      %v1436 = vld [vmem:[%s1410 + $0x2c] sm:$0x1]
      %v1437 = vsel %vm1056, %v1317, %v1436
      %1438 = vst [vmem:[%s1410 + $0x2c] sm:$0x1] %v1437
      %v1439 = vld [vmem:[%s1410 + $0x30] sm:$0xf]
      %v1440 = vsel %vm1186, %v1324, %v1439
      %1441 = vst [vmem:[%s1410 + $0x30] sm:$0xf] %v1440
      %1442 = vst.msk [vmem:[%s1410 + $0x34] sm:$0xf] %vm1190, %v1333
      %v1443 = vld [vmem:[%s1410 + $0x38] sm:$0x1]
      %v1444 = vsel %vm1056, %v1334, %v1443
      %1445 = vst [vmem:[%s1410 + $0x38] sm:$0x1] %v1444
      %v1446 = vld [vmem:[%s1410 + $0x3c] sm:$0xf]
      %v1447 = vsel %vm1186, %v1341, %v1446
      %1448 = vst [vmem:[%s1410 + $0x3c] sm:$0xf] %v1447
      %1449 = vst.msk [vmem:[%s1410 + $0x40] sm:$0xf] %vm1190, %v1350
      %v1450 = vld [vmem:[%s1410 + $0x44] sm:$0x1]
      %v1451 = vsel %vm1056, %v1351, %v1450
      %1452 = vst [vmem:[%s1410 + $0x44] sm:$0x1] %v1451
      %v1453 = vld [vmem:[%s1410 + $0x48] sm:$0xf]
      %v1454 = vsel %vm1186, %v1358, %v1453
      %1455 = vst [vmem:[%s1410 + $0x48] sm:$0xf] %v1454
      %1456 = vst.msk [vmem:[%s1410 + $0x4c] sm:$0xf] %vm1190, %v1367
      %v1457 = vld [vmem:[%s1410 + $0x50] sm:$0x1]
      %v1458 = vsel %vm1056, %v1368, %v1457
      %1459 = vst [vmem:[%s1410 + $0x50] sm:$0x1] %v1458
      %v1460 = vld [vmem:[%s1410 + $0x54] sm:$0xf]
      %v1461 = vsel %vm1186, %v1375, %v1460
      %1462 = vst [vmem:[%s1410 + $0x54] sm:$0xf] %v1461
      %1463 = vst.msk [vmem:[%s1410 + $0x58] sm:$0xf] %vm1190, %v1384
      %v1464 = vld [vmem:[%s1410 + $0x5c] sm:$0x1]
      %v1465 = vsel %vm1056, %v1385, %v1464
      %1466 = vst [vmem:[%s1410 + $0x5c] sm:$0x1] %v1465
      %v1467 = vpack.c.bf16 %v1051, %v1050
      %v1468 = vpack.c.bf16 %v1053, %v1052
      %v1471 = vunpack.c.l.b16 %v1467
      %v1472 = vunpack.c.h.b16 %v1467
      %v1473 = vunpack.c.l.b16 %v1468
      %v1474 = vunpack.c.h.b16 %v1468
      %v1475 = vpack.c.b16 %v1471, %v1471
      %v1476 = vpack.c.b16 %v1472, %v1472
      %v1477 = vpack.c.b16 %v1473, %v1473
      %v1478 = vpack.c.b16 %v1474, %v1474
      %v1480 = vshrl.u32 %v1475, 16
      %v1482 = vrot.slane %v1480, 7
      %v1483 = vshll.u32 %v1475, 16
      %v1485 = vor.u32 %v1482, %v1483
      %v1486 = vrot.slane %v1482, 4
      %v1488 = vshrl.u32 %v1476, 16
      %v1490 = vrot.slane %v1488, 7
      %v1491 = vshll.u32 %v1476, 16
      %v1493 = vor.u32 %v1490, %v1491
      %v1494 = vsel %vm1144, %v1486, %v1493
      %v1495 = vrot.slane %v1490, 4
      %v1497 = vshrl.u32 %v1477, 16
      %v1499 = vrot.slane %v1497, 7
      %v1500 = vshll.u32 %v1477, 16
      %v1502 = vor.u32 %v1499, %v1500
      %v1503 = vrot.slane %v1499, 4
      %v1505 = vshrl.u32 %v1478, 16
      %v1507 = vrot.slane %v1505, 7
      %v1508 = vshll.u32 %v1478, 16
      %v1510 = vor.u32 %v1507, %v1508
      %v1511 = vsel %vm1144, %v1503, %v1510
      %v1512 = vrot.slane %v1507, 4
      %s1519 = scalar_lea.vmem [#allocation2], 120
      %v1520 = vld [vmem:[%s1519] sm:$0xf]
      %v1521 = vsel %vm1186, %v1485, %v1520
      %1522 = vst [vmem:[%s1519] sm:$0xf] %v1521
      %1523 = vst.msk [vmem:[%s1519 + $0x4] sm:$0xf] %vm1190, %v1494
      %v1524 = vld [vmem:[%s1519 + $0x8] sm:$0x1]
      %v1525 = vsel %vm1056, %v1495, %v1524
      %1526 = vst [vmem:[%s1519 + $0x8] sm:$0x1] %v1525
      %v1527 = vld [vmem:[%s1519 + $0xc] sm:$0xf]
      %v1528 = vsel %vm1186, %v1502, %v1527
      %1529 = vst [vmem:[%s1519 + $0xc] sm:$0xf] %v1528
      %1530 = vst.msk [vmem:[%s1519 + $0x10] sm:$0xf] %vm1190, %v1511
      %v1531 = vld [vmem:[%s1519 + $0x14] sm:$0x1]
      %v1532 = vsel %vm1056, %v1512, %v1531
      %1533 = vst [vmem:[%s1519 + $0x14] sm:$0x1] %v1532
      %v1534 = vld [vmem:[#allocation2] sm:$0xf]
      %v1535 = vld [vmem:[#allocation2 + $0x4] sm:$0xf]
      %v1536 = vld [vmem:[#allocation2 + $0xc] sm:$0xf]
      %v1537 = vld [vmem:[#allocation2 + $0x10] sm:$0xf]
      %v1538 = vld [vmem:[#allocation2 + $0x18] sm:$0xf]
      %v1539 = vld [vmem:[#allocation2 + $0x1c] sm:$0xf]
      %v1540 = vld [vmem:[#allocation2 + $0x24] sm:$0xf]
      %v1541 = vld [vmem:[#allocation2 + $0x28] sm:$0xf]
      %v1542 = vld [vmem:[#allocation2 + $0x30] sm:$0xf]
      %v1543 = vld [vmem:[#allocation2 + $0x34] sm:$0xf]
      %v1544 = vld [vmem:[#allocation2 + $0x3c] sm:$0xf]
      %v1545 = vld [vmem:[#allocation2 + $0x40] sm:$0xf]
      %v1546 = vld [vmem:[#allocation2 + $0x48] sm:$0xf]
      %v1547 = vld [vmem:[#allocation2 + $0x4c] sm:$0xf]
      %v1548 = vld [vmem:[#allocation2 + $0x54] sm:$0xf]
      %v1549 = vld [vmem:[#allocation2 + $0x58] sm:$0xf]
      %v1550 = vld [vmem:[#allocation2 + $0x60] sm:$0xf]
      %v1551 = vld [vmem:[#allocation2 + $0x64] sm:$0xf]
      %v1552 = vld [vmem:[#allocation2 + $0x6c] sm:$0xf]
      %v1553 = vld [vmem:[#allocation2 + $0x70] sm:$0xf]
      %v1554 = vld [vmem:[#allocation2 + $0x8] sm:$0x1]
      %v1555 = vld [vmem:[#allocation2 + $0x14] sm:$0x1]
      %v1556 = vld [vmem:[#allocation2 + $0x20] sm:$0x1]
      %v1557 = vld [vmem:[#allocation2 + $0x2c] sm:$0x1]
      %v1558 = vld [vmem:[#allocation2 + $0x38] sm:$0x1]
      %v1559 = vld [vmem:[#allocation2 + $0x44] sm:$0x1]
      %v1560 = vld [vmem:[#allocation2 + $0x50] sm:$0x1]
      %v1561 = vld [vmem:[#allocation2 + $0x5c] sm:$0x1]
      %v1562 = vld [vmem:[#allocation2 + $0x68] sm:$0x1]
      %v1563 = vld [vmem:[#allocation2 + $0x74] sm:$0x1]
      %vm1564 = vsmask.f32 3328
      %vm1565 = vsmask.f32 7440
      %vm1566 = vmor %vm1564, %vm1565
      %v1568 = vshrl.u32 %v1534, 16
      %v1570 = vrot.slane %v1568, 4
      %v1571 = vshll.u32 %v1534, 16
      %v1573 = vrot.slane %v1571, 5
      %v1574 = vor.u32 %v1570, %v1573
      %v1575 = vrot.slane %v1574, 4
      %v1577 = vshll.u32 %v1535, 16
      %v1579 = vrot.slane %v1577, 5
      %v1580 = vsel %vm1566, %v1575, %v1579
      %v1581 = vshrl.u32 %v1535, 16
      %v1583 = vrot.slane %v1581, 4
      %v1584 = vor.u32 %v1583, %v1579
      %v1585 = vrot.slane %v1584, 4
      %v1587 = vshll.u32 %v1554, 16
      %v1589 = vrot.slane %v1587, 5
      %v1590 = vsel %vm1566, %v1585, %v1589
      %v1592 = vshrl.u32 %v1536, 16
      %v1594 = vrot.slane %v1592, 4
      %v1595 = vshll.u32 %v1536, 16
      %v1597 = vrot.slane %v1595, 5
      %v1598 = vor.u32 %v1594, %v1597
      %v1599 = vrot.slane %v1598, 4
      %v1601 = vshll.u32 %v1537, 16
      %v1603 = vrot.slane %v1601, 5
      %v1604 = vsel %vm1566, %v1599, %v1603
      %v1605 = vshrl.u32 %v1537, 16
      %v1607 = vrot.slane %v1605, 4
      %v1608 = vor.u32 %v1607, %v1603
      %v1609 = vrot.slane %v1608, 4
      %v1611 = vshll.u32 %v1555, 16
      %v1613 = vrot.slane %v1611, 5
      %v1614 = vsel %vm1566, %v1609, %v1613
      %v1616 = vshrl.u32 %v1538, 16
      %v1618 = vrot.slane %v1616, 4
      %v1619 = vshll.u32 %v1538, 16
      %v1621 = vrot.slane %v1619, 5
      %v1622 = vor.u32 %v1618, %v1621
      %v1623 = vrot.slane %v1622, 4
      %v1625 = vshll.u32 %v1539, 16
      %v1627 = vrot.slane %v1625, 5
      %v1628 = vsel %vm1566, %v1623, %v1627
      %v1629 = vshrl.u32 %v1539, 16
      %v1631 = vrot.slane %v1629, 4
      %v1632 = vor.u32 %v1631, %v1627
      %v1633 = vrot.slane %v1632, 4
      %v1635 = vshll.u32 %v1556, 16
      %v1637 = vrot.slane %v1635, 5
      %v1638 = vsel %vm1566, %v1633, %v1637
      %v1640 = vshrl.u32 %v1540, 16
      %v1642 = vrot.slane %v1640, 4
      %v1643 = vshll.u32 %v1540, 16
      %v1645 = vrot.slane %v1643, 5
      %v1646 = vor.u32 %v1642, %v1645
      %v1647 = vrot.slane %v1646, 4
      %v1649 = vshll.u32 %v1541, 16
      %v1651 = vrot.slane %v1649, 5
      %v1652 = vsel %vm1566, %v1647, %v1651
      %v1653 = vshrl.u32 %v1541, 16
      %v1655 = vrot.slane %v1653, 4
      %v1656 = vor.u32 %v1655, %v1651
      %v1657 = vrot.slane %v1656, 4
      %v1659 = vshll.u32 %v1557, 16
      %v1661 = vrot.slane %v1659, 5
      %v1662 = vsel %vm1566, %v1657, %v1661
      %v1664 = vshrl.u32 %v1542, 16
      %v1666 = vrot.slane %v1664, 4
      %v1667 = vshll.u32 %v1542, 16
      %v1669 = vrot.slane %v1667, 5
      %v1670 = vor.u32 %v1666, %v1669
      %v1671 = vrot.slane %v1670, 4
      %v1673 = vshll.u32 %v1543, 16
      %v1675 = vrot.slane %v1673, 5
      %v1676 = vsel %vm1566, %v1671, %v1675
      %v1677 = vshrl.u32 %v1543, 16
      %v1679 = vrot.slane %v1677, 4
      %v1680 = vor.u32 %v1679, %v1675
      %v1681 = vrot.slane %v1680, 4
      %v1683 = vshll.u32 %v1558, 16
      %v1685 = vrot.slane %v1683, 5
      %v1686 = vsel %vm1566, %v1681, %v1685
      %v1688 = vshrl.u32 %v1544, 16
      %v1690 = vrot.slane %v1688, 4
      %v1691 = vshll.u32 %v1544, 16
      %v1693 = vrot.slane %v1691, 5
      %v1694 = vor.u32 %v1690, %v1693
      %v1695 = vrot.slane %v1694, 4
      %v1697 = vshll.u32 %v1545, 16
      %v1699 = vrot.slane %v1697, 5
      %v1700 = vsel %vm1566, %v1695, %v1699
      %v1701 = vshrl.u32 %v1545, 16
      %v1703 = vrot.slane %v1701, 4
      %v1704 = vor.u32 %v1703, %v1699
      %v1705 = vrot.slane %v1704, 4
      %v1707 = vshll.u32 %v1559, 16
      %v1709 = vrot.slane %v1707, 5
      %v1710 = vsel %vm1566, %v1705, %v1709
      %v1712 = vshrl.u32 %v1546, 16
      %v1714 = vrot.slane %v1712, 4
      %v1715 = vshll.u32 %v1546, 16
      %v1717 = vrot.slane %v1715, 5
      %v1718 = vor.u32 %v1714, %v1717
      %v1719 = vrot.slane %v1718, 4
      %v1721 = vshll.u32 %v1547, 16
      %v1723 = vrot.slane %v1721, 5
      %v1724 = vsel %vm1566, %v1719, %v1723
      %v1725 = vshrl.u32 %v1547, 16
      %v1727 = vrot.slane %v1725, 4
      %v1728 = vor.u32 %v1727, %v1723
      %v1729 = vrot.slane %v1728, 4
      %v1731 = vshll.u32 %v1560, 16
      %v1733 = vrot.slane %v1731, 5
      %v1734 = vsel %vm1566, %v1729, %v1733
      %v1736 = vshrl.u32 %v1548, 16
      %v1738 = vrot.slane %v1736, 4
      %v1739 = vshll.u32 %v1548, 16
      %v1741 = vrot.slane %v1739, 5
      %v1742 = vor.u32 %v1738, %v1741
      %v1743 = vrot.slane %v1742, 4
      %v1745 = vshll.u32 %v1549, 16
      %v1747 = vrot.slane %v1745, 5
      %v1748 = vsel %vm1566, %v1743, %v1747
      %v1749 = vshrl.u32 %v1549, 16
      %v1751 = vrot.slane %v1749, 4
      %v1752 = vor.u32 %v1751, %v1747
      %v1753 = vrot.slane %v1752, 4
      %v1755 = vshll.u32 %v1561, 16
      %v1757 = vrot.slane %v1755, 5
      %v1758 = vsel %vm1566, %v1753, %v1757
      %v1760 = vshrl.u32 %v1550, 16
      %v1762 = vrot.slane %v1760, 4
      %v1763 = vshll.u32 %v1550, 16
      %v1765 = vrot.slane %v1763, 5
      %v1766 = vor.u32 %v1762, %v1765
      %v1767 = vrot.slane %v1766, 4
      %v1769 = vshll.u32 %v1551, 16
      %v1771 = vrot.slane %v1769, 5
      %v1772 = vsel %vm1566, %v1767, %v1771
      %v1773 = vshrl.u32 %v1551, 16
      %v1775 = vrot.slane %v1773, 4
      %v1776 = vor.u32 %v1775, %v1771
      %v1777 = vrot.slane %v1776, 4
      %v1779 = vshll.u32 %v1562, 16
      %v1781 = vrot.slane %v1779, 5
      %v1782 = vsel %vm1566, %v1777, %v1781
      %v1784 = vshrl.u32 %v1552, 16
      %v1786 = vrot.slane %v1784, 4
      %v1787 = vshll.u32 %v1552, 16
      %v1789 = vrot.slane %v1787, 5
      %v1790 = vor.u32 %v1786, %v1789
      %v1791 = vrot.slane %v1790, 4
      %v1793 = vshll.u32 %v1553, 16
      %v1795 = vrot.slane %v1793, 5
      %v1796 = vsel %vm1566, %v1791, %v1795
      %v1797 = vshrl.u32 %v1553, 16
      %v1799 = vrot.slane %v1797, 4
      %v1800 = vor.u32 %v1799, %v1795
      %v1801 = vrot.slane %v1800, 4
      %v1803 = vshll.u32 %v1563, 16
      %v1805 = vrot.slane %v1803, 5
      %v1806 = vsel %vm1566, %v1801, %v1805
      %v1807 = vld [vmem:[#allocation2] sm:$0xe]
      %v1808 = vld [vmem:[#allocation2 + $0xc] sm:$0xe]
      %v1809 = vld [vmem:[#allocation2 + $0x18] sm:$0xe]
      %v1810 = vld [vmem:[#allocation2 + $0x24] sm:$0xe]
      %v1811 = vld [vmem:[#allocation2 + $0x30] sm:$0xe]
      %v1812 = vld [vmem:[#allocation2 + $0x3c] sm:$0xe]
      %v1813 = vld [vmem:[#allocation2 + $0x48] sm:$0xe]
      %v1814 = vld [vmem:[#allocation2 + $0x54] sm:$0xe]
      %v1815 = vld [vmem:[#allocation2 + $0x60] sm:$0xe]
      %v1816 = vld [vmem:[#allocation2 + $0x6c] sm:$0xe]
      %vm1847 = vcmask 1042432
      %vm1848 = vcmask 1046532
      %vm1849 = vmor %vm1847, %vm1848
      %v1850 = vrot.slane %v1807, 5
      %v1851 = vrot.slane %v1850, 4
      %v1852 = vrot.slane %v1535, 5
      %v1853 = vsel %vm1849, %v1851, %v1852
      %v1854 = vrot.slane %v1852, 4
      %v1855 = vrot.slane %v1554, 5
      %v1856 = vsel %vm1849, %v1854, %v1855
      %v1857 = vrot.slane %v1808, 5
      %v1858 = vrot.slane %v1857, 4
      %v1859 = vrot.slane %v1537, 5
      %v1860 = vsel %vm1849, %v1858, %v1859
      %v1861 = vrot.slane %v1859, 4
      %v1862 = vrot.slane %v1555, 5
      %v1863 = vsel %vm1849, %v1861, %v1862
      %v1864 = vrot.slane %v1809, 5
      %v1865 = vrot.slane %v1864, 4
      %v1866 = vrot.slane %v1539, 5
      %v1867 = vsel %vm1849, %v1865, %v1866
      %v1868 = vrot.slane %v1866, 4
      %v1869 = vrot.slane %v1556, 5
      %v1870 = vsel %vm1849, %v1868, %v1869
      %v1871 = vrot.slane %v1810, 5
      %v1872 = vrot.slane %v1871, 4
      %v1873 = vrot.slane %v1541, 5
      %v1874 = vsel %vm1849, %v1872, %v1873
      %v1875 = vrot.slane %v1873, 4
      %v1876 = vrot.slane %v1557, 5
      %v1877 = vsel %vm1849, %v1875, %v1876
      %v1878 = vrot.slane %v1811, 5
      %v1879 = vrot.slane %v1878, 4
      %v1880 = vrot.slane %v1543, 5
      %v1881 = vsel %vm1849, %v1879, %v1880
      %v1882 = vrot.slane %v1880, 4
      %v1883 = vrot.slane %v1558, 5
      %v1884 = vsel %vm1849, %v1882, %v1883
      %v1885 = vrot.slane %v1812, 5
      %v1886 = vrot.slane %v1885, 4
      %v1887 = vrot.slane %v1545, 5
      %v1888 = vsel %vm1849, %v1886, %v1887
      %v1889 = vrot.slane %v1887, 4
      %v1890 = vrot.slane %v1559, 5
      %v1891 = vsel %vm1849, %v1889, %v1890
      %v1892 = vrot.slane %v1813, 5
      %v1893 = vrot.slane %v1892, 4
      %v1894 = vrot.slane %v1547, 5
      %v1895 = vsel %vm1849, %v1893, %v1894
      %v1896 = vrot.slane %v1894, 4
      %v1897 = vrot.slane %v1560, 5
      %v1898 = vsel %vm1849, %v1896, %v1897
      %v1899 = vrot.slane %v1814, 5
      %v1900 = vrot.slane %v1899, 4
      %v1901 = vrot.slane %v1549, 5
      %v1902 = vsel %vm1849, %v1900, %v1901
      %v1903 = vrot.slane %v1901, 4
      %v1904 = vrot.slane %v1561, 5
      %v1905 = vsel %vm1849, %v1903, %v1904
      %v1906 = vrot.slane %v1815, 5
      %v1907 = vrot.slane %v1906, 4
      %v1908 = vrot.slane %v1551, 5
      %v1909 = vsel %vm1849, %v1907, %v1908
      %v1910 = vrot.slane %v1908, 4
      %v1911 = vrot.slane %v1562, 5
      %v1912 = vsel %vm1849, %v1910, %v1911
      %v1913 = vrot.slane %v1816, 5
      %v1914 = vrot.slane %v1913, 4
      %v1915 = vrot.slane %v1553, 5
      %v1916 = vsel %vm1849, %v1914, %v1915
      %v1917 = vrot.slane %v1915, 4
      %v1918 = vrot.slane %v1563, 5
      %v1919 = vsel %vm1849, %v1917, %v1918
      %s1920 = scalar_lea.vmem [#allocation2], 12
      %v1921 = vld [vmem:[%s1920] sm:$0xf]
      %v1922 = vld [vmem:[%s1920 + $0x4] sm:$0xf]
      %v1923 = vld [vmem:[%s1920 + $0xc] sm:$0xf]
      %v1924 = vld [vmem:[%s1920 + $0x10] sm:$0xf]
      %v1925 = vld [vmem:[%s1920 + $0x18] sm:$0xf]
      %v1926 = vld [vmem:[%s1920 + $0x1c] sm:$0xf]
      %v1927 = vld [vmem:[%s1920 + $0x24] sm:$0xf]
      %v1928 = vld [vmem:[%s1920 + $0x28] sm:$0xf]
      %v1929 = vld [vmem:[%s1920 + $0x30] sm:$0xf]
      %v1930 = vld [vmem:[%s1920 + $0x34] sm:$0xf]
      %v1931 = vld [vmem:[%s1920 + $0x3c] sm:$0xf]
      %v1932 = vld [vmem:[%s1920 + $0x40] sm:$0xf]
      %v1933 = vld [vmem:[%s1920 + $0x48] sm:$0xf]
      %v1934 = vld [vmem:[%s1920 + $0x4c] sm:$0xf]
      %v1935 = vld [vmem:[%s1920 + $0x54] sm:$0xf]
      %v1936 = vld [vmem:[%s1920 + $0x58] sm:$0xf]
      %v1937 = vld [vmem:[%s1920 + $0x60] sm:$0xf]
      %v1938 = vld [vmem:[%s1920 + $0x64] sm:$0xf]
      %v1939 = vld [vmem:[%s1920 + $0x6c] sm:$0xf]
      %v1940 = vld [vmem:[%s1920 + $0x70] sm:$0xf]
      %v1941 = vld [vmem:[%s1920 + $0x8] sm:$0x1]
      %v1942 = vld [vmem:[%s1920 + $0x14] sm:$0x1]
      %v1943 = vld [vmem:[%s1920 + $0x20] sm:$0x1]
      %v1944 = vld [vmem:[%s1920 + $0x2c] sm:$0x1]
      %v1945 = vld [vmem:[%s1920 + $0x38] sm:$0x1]
      %v1946 = vld [vmem:[%s1920 + $0x44] sm:$0x1]
      %v1947 = vld [vmem:[%s1920 + $0x50] sm:$0x1]
      %v1948 = vld [vmem:[%s1920 + $0x5c] sm:$0x1]
      %v1949 = vld [vmem:[%s1920 + $0x68] sm:$0x1]
      %v1950 = vld [vmem:[%s1920 + $0x74] sm:$0x1]
      %v1952 = vshrl.u32 %v1921, 16
      %v1954 = vrot.slane %v1952, 4
      %v1955 = vshll.u32 %v1921, 16
      %v1957 = vrot.slane %v1955, 5
      %v1958 = vor.u32 %v1954, %v1957
      %v1959 = vrot.slane %v1958, 4
      %v1961 = vshll.u32 %v1922, 16
      %v1963 = vrot.slane %v1961, 5
      %v1964 = vsel %vm1566, %v1959, %v1963
      %v1965 = vshrl.u32 %v1922, 16
      %v1967 = vrot.slane %v1965, 4
      %v1968 = vor.u32 %v1967, %v1963
      %v1969 = vrot.slane %v1968, 4
      %v1971 = vshll.u32 %v1941, 16
      %v1973 = vrot.slane %v1971, 5
      %v1974 = vsel %vm1566, %v1969, %v1973
      %v1976 = vshrl.u32 %v1923, 16
      %v1978 = vrot.slane %v1976, 4
      %v1979 = vshll.u32 %v1923, 16
      %v1981 = vrot.slane %v1979, 5
      %v1982 = vor.u32 %v1978, %v1981
      %v1983 = vrot.slane %v1982, 4
      %v1985 = vshll.u32 %v1924, 16
      %v1987 = vrot.slane %v1985, 5
      %v1988 = vsel %vm1566, %v1983, %v1987
      %v1989 = vshrl.u32 %v1924, 16
      %v1991 = vrot.slane %v1989, 4
      %v1992 = vor.u32 %v1991, %v1987
      %v1993 = vrot.slane %v1992, 4
      %v1995 = vshll.u32 %v1942, 16
      %v1997 = vrot.slane %v1995, 5
      %v1998 = vsel %vm1566, %v1993, %v1997
      %v2000 = vshrl.u32 %v1925, 16
      %v2002 = vrot.slane %v2000, 4
      %v2003 = vshll.u32 %v1925, 16
      %v2005 = vrot.slane %v2003, 5
      %v2006 = vor.u32 %v2002, %v2005
      %v2007 = vrot.slane %v2006, 4
      %v2009 = vshll.u32 %v1926, 16
      %v2011 = vrot.slane %v2009, 5
      %v2012 = vsel %vm1566, %v2007, %v2011
      %v2013 = vshrl.u32 %v1926, 16
      %v2015 = vrot.slane %v2013, 4
      %v2016 = vor.u32 %v2015, %v2011
      %v2017 = vrot.slane %v2016, 4
      %v2019 = vshll.u32 %v1943, 16
      %v2021 = vrot.slane %v2019, 5
      %v2022 = vsel %vm1566, %v2017, %v2021
      %v2024 = vshrl.u32 %v1927, 16
      %v2026 = vrot.slane %v2024, 4
      %v2027 = vshll.u32 %v1927, 16
      %v2029 = vrot.slane %v2027, 5
      %v2030 = vor.u32 %v2026, %v2029
      %v2031 = vrot.slane %v2030, 4
      %v2033 = vshll.u32 %v1928, 16
      %v2035 = vrot.slane %v2033, 5
      %v2036 = vsel %vm1566, %v2031, %v2035
      %v2037 = vshrl.u32 %v1928, 16
      %v2039 = vrot.slane %v2037, 4
      %v2040 = vor.u32 %v2039, %v2035
      %v2041 = vrot.slane %v2040, 4
      %v2043 = vshll.u32 %v1944, 16
      %v2045 = vrot.slane %v2043, 5
      %v2046 = vsel %vm1566, %v2041, %v2045
      %v2048 = vshrl.u32 %v1929, 16
      %v2050 = vrot.slane %v2048, 4
      %v2051 = vshll.u32 %v1929, 16
      %v2053 = vrot.slane %v2051, 5
      %v2054 = vor.u32 %v2050, %v2053
      %v2055 = vrot.slane %v2054, 4
      %v2057 = vshll.u32 %v1930, 16
      %v2059 = vrot.slane %v2057, 5
      %v2060 = vsel %vm1566, %v2055, %v2059
      %v2061 = vshrl.u32 %v1930, 16
      %v2063 = vrot.slane %v2061, 4
      %v2064 = vor.u32 %v2063, %v2059
      %v2065 = vrot.slane %v2064, 4
      %v2067 = vshll.u32 %v1945, 16
      %v2069 = vrot.slane %v2067, 5
      %v2070 = vsel %vm1566, %v2065, %v2069
      %v2072 = vshrl.u32 %v1931, 16
      %v2074 = vrot.slane %v2072, 4
      %v2075 = vshll.u32 %v1931, 16
      %v2077 = vrot.slane %v2075, 5
      %v2078 = vor.u32 %v2074, %v2077
      %v2079 = vrot.slane %v2078, 4
      %v2081 = vshll.u32 %v1932, 16
      %v2083 = vrot.slane %v2081, 5
      %v2084 = vsel %vm1566, %v2079, %v2083
      %v2085 = vshrl.u32 %v1932, 16
      %v2087 = vrot.slane %v2085, 4
      %v2088 = vor.u32 %v2087, %v2083
      %v2089 = vrot.slane %v2088, 4
      %v2091 = vshll.u32 %v1946, 16
      %v2093 = vrot.slane %v2091, 5
      %v2094 = vsel %vm1566, %v2089, %v2093
      %v2096 = vshrl.u32 %v1933, 16
      %v2098 = vrot.slane %v2096, 4
      %v2099 = vshll.u32 %v1933, 16
      %v2101 = vrot.slane %v2099, 5
      %v2102 = vor.u32 %v2098, %v2101
      %v2103 = vrot.slane %v2102, 4
      %v2105 = vshll.u32 %v1934, 16
      %v2107 = vrot.slane %v2105, 5
      %v2108 = vsel %vm1566, %v2103, %v2107
      %v2109 = vshrl.u32 %v1934, 16
      %v2111 = vrot.slane %v2109, 4
      %v2112 = vor.u32 %v2111, %v2107
      %v2113 = vrot.slane %v2112, 4
      %v2115 = vshll.u32 %v1947, 16
      %v2117 = vrot.slane %v2115, 5
      %v2118 = vsel %vm1566, %v2113, %v2117
      %v2120 = vshrl.u32 %v1935, 16
      %v2122 = vrot.slane %v2120, 4
      %v2123 = vshll.u32 %v1935, 16
      %v2125 = vrot.slane %v2123, 5
      %v2126 = vor.u32 %v2122, %v2125
      %v2127 = vrot.slane %v2126, 4
      %v2129 = vshll.u32 %v1936, 16
      %v2131 = vrot.slane %v2129, 5
      %v2132 = vsel %vm1566, %v2127, %v2131
      %v2133 = vshrl.u32 %v1936, 16
      %v2135 = vrot.slane %v2133, 4
      %v2136 = vor.u32 %v2135, %v2131
      %v2137 = vrot.slane %v2136, 4
      %v2139 = vshll.u32 %v1948, 16
      %v2141 = vrot.slane %v2139, 5
      %v2142 = vsel %vm1566, %v2137, %v2141
      %v2144 = vshrl.u32 %v1937, 16
      %v2146 = vrot.slane %v2144, 4
      %v2147 = vshll.u32 %v1937, 16
      %v2149 = vrot.slane %v2147, 5
      %v2150 = vor.u32 %v2146, %v2149
      %v2151 = vrot.slane %v2150, 4
      %v2153 = vshll.u32 %v1938, 16
      %v2155 = vrot.slane %v2153, 5
      %v2156 = vsel %vm1566, %v2151, %v2155
      %v2157 = vshrl.u32 %v1938, 16
      %v2159 = vrot.slane %v2157, 4
      %v2160 = vor.u32 %v2159, %v2155
      %v2161 = vrot.slane %v2160, 4
      %v2163 = vshll.u32 %v1949, 16
      %v2165 = vrot.slane %v2163, 5
      %v2166 = vsel %vm1566, %v2161, %v2165
      %v2168 = vshrl.u32 %v1939, 16
      %v2170 = vrot.slane %v2168, 4
      %v2171 = vshll.u32 %v1939, 16
      %v2173 = vrot.slane %v2171, 5
      %v2174 = vor.u32 %v2170, %v2173
      %v2175 = vrot.slane %v2174, 4
      %v2177 = vshll.u32 %v1940, 16
      %v2179 = vrot.slane %v2177, 5
      %v2180 = vsel %vm1566, %v2175, %v2179
      %v2181 = vshrl.u32 %v1940, 16
      %v2183 = vrot.slane %v2181, 4
      %v2184 = vor.u32 %v2183, %v2179
      %v2185 = vrot.slane %v2184, 4
      %v2187 = vshll.u32 %v1950, 16
      %v2189 = vrot.slane %v2187, 5
      %v2190 = vsel %vm1566, %v2185, %v2189
      %v2191 = vld [vmem:[%s1920] sm:$0xe]
      %v2192 = vld [vmem:[%s1920 + $0xc] sm:$0xe]
      %v2193 = vld [vmem:[%s1920 + $0x18] sm:$0xe]
      %v2194 = vld [vmem:[%s1920 + $0x24] sm:$0xe]
      %v2195 = vld [vmem:[%s1920 + $0x30] sm:$0xe]
      %v2196 = vld [vmem:[%s1920 + $0x3c] sm:$0xe]
      %v2197 = vld [vmem:[%s1920 + $0x48] sm:$0xe]
      %v2198 = vld [vmem:[%s1920 + $0x54] sm:$0xe]
      %v2199 = vld [vmem:[%s1920 + $0x60] sm:$0xe]
      %v2200 = vld [vmem:[%s1920 + $0x6c] sm:$0xe]
      %v2231 = vrot.slane %v2191, 5
      %v2232 = vrot.slane %v2231, 4
      %v2233 = vrot.slane %v1922, 5
      %v2234 = vsel %vm1849, %v2232, %v2233
      %v2235 = vrot.slane %v2233, 4
      %v2236 = vrot.slane %v1941, 5
      %v2237 = vsel %vm1849, %v2235, %v2236
      %v2238 = vrot.slane %v2192, 5
      %v2239 = vrot.slane %v2238, 4
      %v2240 = vrot.slane %v1924, 5
      %v2241 = vsel %vm1849, %v2239, %v2240
      %v2242 = vrot.slane %v2240, 4
      %v2243 = vrot.slane %v1942, 5
      %v2244 = vsel %vm1849, %v2242, %v2243
      %v2245 = vrot.slane %v2193, 5
      %v2246 = vrot.slane %v2245, 4
      %v2247 = vrot.slane %v1926, 5
      %v2248 = vsel %vm1849, %v2246, %v2247
      %v2249 = vrot.slane %v2247, 4
      %v2250 = vrot.slane %v1943, 5
      %v2251 = vsel %vm1849, %v2249, %v2250
      %v2252 = vrot.slane %v2194, 5
      %v2253 = vrot.slane %v2252, 4
      %v2254 = vrot.slane %v1928, 5
      %v2255 = vsel %vm1849, %v2253, %v2254
      %v2256 = vrot.slane %v2254, 4
      %v2257 = vrot.slane %v1944, 5
      %v2258 = vsel %vm1849, %v2256, %v2257
      %v2259 = vrot.slane %v2195, 5
      %v2260 = vrot.slane %v2259, 4
      %v2261 = vrot.slane %v1930, 5
      %v2262 = vsel %vm1849, %v2260, %v2261
      %v2263 = vrot.slane %v2261, 4
      %v2264 = vrot.slane %v1945, 5
      %v2265 = vsel %vm1849, %v2263, %v2264
      %v2266 = vrot.slane %v2196, 5
      %v2267 = vrot.slane %v2266, 4
      %v2268 = vrot.slane %v1932, 5
      %v2269 = vsel %vm1849, %v2267, %v2268
      %v2270 = vrot.slane %v2268, 4
      %v2271 = vrot.slane %v1946, 5
      %v2272 = vsel %vm1849, %v2270, %v2271
      %v2273 = vrot.slane %v2197, 5
      %v2274 = vrot.slane %v2273, 4
      %v2275 = vrot.slane %v1934, 5
      %v2276 = vsel %vm1849, %v2274, %v2275
      %v2277 = vrot.slane %v2275, 4
      %v2278 = vrot.slane %v1947, 5
      %v2279 = vsel %vm1849, %v2277, %v2278
      %v2280 = vrot.slane %v2198, 5
      %v2281 = vrot.slane %v2280, 4
      %v2282 = vrot.slane %v1936, 5
      %v2283 = vsel %vm1849, %v2281, %v2282
      %v2284 = vrot.slane %v2282, 4
      %v2285 = vrot.slane %v1948, 5
      %v2286 = vsel %vm1849, %v2284, %v2285
      %v2287 = vrot.slane %v2199, 5
      %v2288 = vrot.slane %v2287, 4
      %v2289 = vrot.slane %v1938, 5
      %v2290 = vsel %vm1849, %v2288, %v2289
      %v2291 = vrot.slane %v2289, 4
      %v2292 = vrot.slane %v1949, 5
      %v2293 = vsel %vm1849, %v2291, %v2292
      %v2294 = vrot.slane %v2200, 5
      %v2295 = vrot.slane %v2294, 4
      %v2296 = vrot.slane %v1940, 5
      %v2297 = vsel %vm1849, %v2295, %v2296
      %v2298 = vrot.slane %v2296, 4
      %v2299 = vrot.slane %v1950, 5
      %v2300 = vsel %vm1849, %v2298, %v2299
      %v2301 = vld [vmem:[%s1410] sm:$0xf]
      %v2302 = vld [vmem:[%s1410 + $0x4] sm:$0xf]
      %v2303 = vld [vmem:[%s1410 + $0xc] sm:$0xf]
      %v2304 = vld [vmem:[%s1410 + $0x10] sm:$0xf]
      %v2305 = vld [vmem:[%s1410 + $0x18] sm:$0xf]
      %v2306 = vld [vmem:[%s1410 + $0x1c] sm:$0xf]
      %v2307 = vld [vmem:[%s1410 + $0x24] sm:$0xf]
      %v2308 = vld [vmem:[%s1410 + $0x28] sm:$0xf]
      %v2309 = vld [vmem:[%s1410 + $0x30] sm:$0xf]
      %v2310 = vld [vmem:[%s1410 + $0x34] sm:$0xf]
      %v2311 = vld [vmem:[%s1410 + $0x3c] sm:$0xf]
      %v2312 = vld [vmem:[%s1410 + $0x40] sm:$0xf]
      %v2313 = vld [vmem:[%s1410 + $0x48] sm:$0xf]
      %v2314 = vld [vmem:[%s1410 + $0x4c] sm:$0xf]
      %v2315 = vld [vmem:[%s1410 + $0x54] sm:$0xf]
      %v2316 = vld [vmem:[%s1410 + $0x58] sm:$0xf]
      %v2317 = vld [vmem:[%s1410 + $0x60] sm:$0xf]
      %v2318 = vld [vmem:[%s1410 + $0x64] sm:$0xf]
      %v2319 = vld [vmem:[%s1410 + $0x6c] sm:$0xf]
      %v2320 = vld [vmem:[%s1410 + $0x70] sm:$0xf]
      %v2321 = vld [vmem:[%s1410 + $0x8] sm:$0x1]
      %v2322 = vld [vmem:[%s1410 + $0x14] sm:$0x1]
      %v2323 = vld [vmem:[%s1410 + $0x20] sm:$0x1]
      %v2324 = vld [vmem:[%s1410 + $0x2c] sm:$0x1]
      %v2325 = vld [vmem:[%s1410 + $0x38] sm:$0x1]
      %v2326 = vld [vmem:[%s1410 + $0x44] sm:$0x1]
      %v2327 = vld [vmem:[%s1410 + $0x50] sm:$0x1]
      %v2328 = vld [vmem:[%s1410 + $0x5c] sm:$0x1]
      %v2329 = vld [vmem:[%s1410 + $0x68] sm:$0x1]
      %v2330 = vld [vmem:[%s1410 + $0x74] sm:$0x1]
      %v2332 = vshrl.u32 %v2301, 16
      %v2334 = vrot.slane %v2332, 4
      %v2335 = vshll.u32 %v2301, 16
      %v2337 = vrot.slane %v2335, 5
      %v2338 = vor.u32 %v2334, %v2337
      %v2339 = vrot.slane %v2338, 4
      %v2341 = vshll.u32 %v2302, 16
      %v2343 = vrot.slane %v2341, 5
      %v2344 = vsel %vm1566, %v2339, %v2343
      %v2345 = vshrl.u32 %v2302, 16
      %v2347 = vrot.slane %v2345, 4
      %v2348 = vor.u32 %v2347, %v2343
      %v2349 = vrot.slane %v2348, 4
      %v2351 = vshll.u32 %v2321, 16
      %v2353 = vrot.slane %v2351, 5
      %v2354 = vsel %vm1566, %v2349, %v2353
      %v2356 = vshrl.u32 %v2303, 16
      %v2358 = vrot.slane %v2356, 4
      %v2359 = vshll.u32 %v2303, 16
      %v2361 = vrot.slane %v2359, 5
      %v2362 = vor.u32 %v2358, %v2361
      %v2363 = vrot.slane %v2362, 4
      %v2365 = vshll.u32 %v2304, 16
      %v2367 = vrot.slane %v2365, 5
      %v2368 = vsel %vm1566, %v2363, %v2367
      %v2369 = vshrl.u32 %v2304, 16
      %v2371 = vrot.slane %v2369, 4
      %v2372 = vor.u32 %v2371, %v2367
      %v2373 = vrot.slane %v2372, 4
      %v2375 = vshll.u32 %v2322, 16
      %v2377 = vrot.slane %v2375, 5
      %v2378 = vsel %vm1566, %v2373, %v2377
      %v2380 = vshrl.u32 %v2305, 16
      %v2382 = vrot.slane %v2380, 4
      %v2383 = vshll.u32 %v2305, 16
      %v2385 = vrot.slane %v2383, 5
      %v2386 = vor.u32 %v2382, %v2385
      %v2387 = vrot.slane %v2386, 4
      %v2389 = vshll.u32 %v2306, 16
      %v2391 = vrot.slane %v2389, 5
      %v2392 = vsel %vm1566, %v2387, %v2391
      %v2393 = vshrl.u32 %v2306, 16
      %v2395 = vrot.slane %v2393, 4
      %v2396 = vor.u32 %v2395, %v2391
      %v2397 = vrot.slane %v2396, 4
      %v2399 = vshll.u32 %v2323, 16
      %v2401 = vrot.slane %v2399, 5
      %v2402 = vsel %vm1566, %v2397, %v2401
      %v2404 = vshrl.u32 %v2307, 16
      %v2406 = vrot.slane %v2404, 4
      %v2407 = vshll.u32 %v2307, 16
      %v2409 = vrot.slane %v2407, 5
      %v2410 = vor.u32 %v2406, %v2409
      %v2411 = vrot.slane %v2410, 4
      %v2413 = vshll.u32 %v2308, 16
      %v2415 = vrot.slane %v2413, 5
      %v2416 = vsel %vm1566, %v2411, %v2415
      %v2417 = vshrl.u32 %v2308, 16
      %v2419 = vrot.slane %v2417, 4
      %v2420 = vor.u32 %v2419, %v2415
      %v2421 = vrot.slane %v2420, 4
      %v2423 = vshll.u32 %v2324, 16
      %v2425 = vrot.slane %v2423, 5
      %v2426 = vsel %vm1566, %v2421, %v2425
      %v2428 = vshrl.u32 %v2309, 16
      %v2430 = vrot.slane %v2428, 4
      %v2431 = vshll.u32 %v2309, 16
      %v2433 = vrot.slane %v2431, 5
      %v2434 = vor.u32 %v2430, %v2433
      %v2435 = vrot.slane %v2434, 4
      %v2437 = vshll.u32 %v2310, 16
      %v2439 = vrot.slane %v2437, 5
      %v2440 = vsel %vm1566, %v2435, %v2439
      %v2441 = vshrl.u32 %v2310, 16
      %v2443 = vrot.slane %v2441, 4
      %v2444 = vor.u32 %v2443, %v2439
      %v2445 = vrot.slane %v2444, 4
      %v2447 = vshll.u32 %v2325, 16
      %v2449 = vrot.slane %v2447, 5
      %v2450 = vsel %vm1566, %v2445, %v2449
      %v2452 = vshrl.u32 %v2311, 16
      %v2454 = vrot.slane %v2452, 4
      %v2455 = vshll.u32 %v2311, 16
      %v2457 = vrot.slane %v2455, 5
      %v2458 = vor.u32 %v2454, %v2457
      %v2459 = vrot.slane %v2458, 4
      %v2461 = vshll.u32 %v2312, 16
      %v2463 = vrot.slane %v2461, 5
      %v2464 = vsel %vm1566, %v2459, %v2463
      %v2465 = vshrl.u32 %v2312, 16
      %v2467 = vrot.slane %v2465, 4
      %v2468 = vor.u32 %v2467, %v2463
      %v2469 = vrot.slane %v2468, 4
      %v2471 = vshll.u32 %v2326, 16
      %v2473 = vrot.slane %v2471, 5
      %v2474 = vsel %vm1566, %v2469, %v2473
      %v2476 = vshrl.u32 %v2313, 16
      %v2478 = vrot.slane %v2476, 4
      %v2479 = vshll.u32 %v2313, 16
      %v2481 = vrot.slane %v2479, 5
      %v2482 = vor.u32 %v2478, %v2481
      %v2483 = vrot.slane %v2482, 4
      %v2485 = vshll.u32 %v2314, 16
      %v2487 = vrot.slane %v2485, 5
      %v2488 = vsel %vm1566, %v2483, %v2487
      %v2489 = vshrl.u32 %v2314, 16
      %v2491 = vrot.slane %v2489, 4
      %v2492 = vor.u32 %v2491, %v2487
      %v2493 = vrot.slane %v2492, 4
      %v2495 = vshll.u32 %v2327, 16
      %v2497 = vrot.slane %v2495, 5
      %v2498 = vsel %vm1566, %v2493, %v2497
      %v2500 = vshrl.u32 %v2315, 16
      %v2502 = vrot.slane %v2500, 4
      %v2503 = vshll.u32 %v2315, 16
      %v2505 = vrot.slane %v2503, 5
      %v2506 = vor.u32 %v2502, %v2505
      %v2507 = vrot.slane %v2506, 4
      %v2509 = vshll.u32 %v2316, 16
      %v2511 = vrot.slane %v2509, 5
      %v2512 = vsel %vm1566, %v2507, %v2511
      %v2513 = vshrl.u32 %v2316, 16
      %v2515 = vrot.slane %v2513, 4
      %v2516 = vor.u32 %v2515, %v2511
      %v2517 = vrot.slane %v2516, 4
      %v2519 = vshll.u32 %v2328, 16
      %v2521 = vrot.slane %v2519, 5
      %v2522 = vsel %vm1566, %v2517, %v2521
      %v2524 = vshrl.u32 %v2317, 16
      %v2526 = vrot.slane %v2524, 4
      %v2527 = vshll.u32 %v2317, 16
      %v2529 = vrot.slane %v2527, 5
      %v2530 = vor.u32 %v2526, %v2529
      %v2531 = vrot.slane %v2530, 4
      %v2533 = vshll.u32 %v2318, 16
      %v2535 = vrot.slane %v2533, 5
      %v2536 = vsel %vm1566, %v2531, %v2535
      %v2537 = vshrl.u32 %v2318, 16
      %v2539 = vrot.slane %v2537, 4
      %v2540 = vor.u32 %v2539, %v2535
      %v2541 = vrot.slane %v2540, 4
      %v2543 = vshll.u32 %v2329, 16
      %v2545 = vrot.slane %v2543, 5
      %v2546 = vsel %vm1566, %v2541, %v2545
      %v2548 = vshrl.u32 %v2319, 16
      %v2550 = vrot.slane %v2548, 4
      %v2551 = vshll.u32 %v2319, 16
      %v2553 = vrot.slane %v2551, 5
      %v2554 = vor.u32 %v2550, %v2553
      %v2555 = vrot.slane %v2554, 4
      %v2557 = vshll.u32 %v2320, 16
      %v2559 = vrot.slane %v2557, 5
      %v2560 = vsel %vm1566, %v2555, %v2559
      %v2561 = vshrl.u32 %v2320, 16
      %v2563 = vrot.slane %v2561, 4
      %v2564 = vor.u32 %v2563, %v2559
      %v2565 = vrot.slane %v2564, 4
      %v2567 = vshll.u32 %v2330, 16
      %v2569 = vrot.slane %v2567, 5
      %v2570 = vsel %vm1566, %v2565, %v2569
      %v2571 = vld [vmem:[%s1410] sm:$0xe]
      %v2572 = vld [vmem:[%s1410 + $0xc] sm:$0xe]
      %v2573 = vld [vmem:[%s1410 + $0x18] sm:$0xe]
      %v2574 = vld [vmem:[%s1410 + $0x24] sm:$0xe]
      %v2575 = vld [vmem:[%s1410 + $0x30] sm:$0xe]
      %v2576 = vld [vmem:[%s1410 + $0x3c] sm:$0xe]
      %v2577 = vld [vmem:[%s1410 + $0x48] sm:$0xe]
      %v2578 = vld [vmem:[%s1410 + $0x54] sm:$0xe]
      %v2579 = vld [vmem:[%s1410 + $0x60] sm:$0xe]
      %v2580 = vld [vmem:[%s1410 + $0x6c] sm:$0xe]
      %v2611 = vrot.slane %v2571, 5
      %v2612 = vrot.slane %v2611, 4
      %v2613 = vrot.slane %v2302, 5
      %v2614 = vsel %vm1849, %v2612, %v2613
      %v2615 = vrot.slane %v2613, 4
      %v2616 = vrot.slane %v2321, 5
      %v2617 = vsel %vm1849, %v2615, %v2616
      %v2618 = vrot.slane %v2572, 5
      %v2619 = vrot.slane %v2618, 4
      %v2620 = vrot.slane %v2304, 5
      %v2621 = vsel %vm1849, %v2619, %v2620
      %v2622 = vrot.slane %v2620, 4
      %v2623 = vrot.slane %v2322, 5
      %v2624 = vsel %vm1849, %v2622, %v2623
      %v2625 = vrot.slane %v2573, 5
      %v2626 = vrot.slane %v2625, 4
      %v2627 = vrot.slane %v2306, 5
      %v2628 = vsel %vm1849, %v2626, %v2627
      %v2629 = vrot.slane %v2627, 4
      %v2630 = vrot.slane %v2323, 5
      %v2631 = vsel %vm1849, %v2629, %v2630
      %v2632 = vrot.slane %v2574, 5
      %v2633 = vrot.slane %v2632, 4
      %v2634 = vrot.slane %v2308, 5
      %v2635 = vsel %vm1849, %v2633, %v2634
      %v2636 = vrot.slane %v2634, 4
      %v2637 = vrot.slane %v2324, 5
      %v2638 = vsel %vm1849, %v2636, %v2637
      %v2639 = vrot.slane %v2575, 5
      %v2640 = vrot.slane %v2639, 4
      %v2641 = vrot.slane %v2310, 5
      %v2642 = vsel %vm1849, %v2640, %v2641
      %v2643 = vrot.slane %v2641, 4
      %v2644 = vrot.slane %v2325, 5
      %v2645 = vsel %vm1849, %v2643, %v2644
      %v2646 = vrot.slane %v2576, 5
      %v2647 = vrot.slane %v2646, 4
      %v2648 = vrot.slane %v2312, 5
      %v2649 = vsel %vm1849, %v2647, %v2648
      %v2650 = vrot.slane %v2648, 4
      %v2651 = vrot.slane %v2326, 5
      %v2652 = vsel %vm1849, %v2650, %v2651
      %v2653 = vrot.slane %v2577, 5
      %v2654 = vrot.slane %v2653, 4
      %v2655 = vrot.slane %v2314, 5
      %v2656 = vsel %vm1849, %v2654, %v2655
      %v2657 = vrot.slane %v2655, 4
      %v2658 = vrot.slane %v2327, 5
      %v2659 = vsel %vm1849, %v2657, %v2658
      %v2660 = vrot.slane %v2578, 5
      %v2661 = vrot.slane %v2660, 4
      %v2662 = vrot.slane %v2316, 5
      %v2663 = vsel %vm1849, %v2661, %v2662
      %v2664 = vrot.slane %v2662, 4
      %v2665 = vrot.slane %v2328, 5
      %v2666 = vsel %vm1849, %v2664, %v2665
      %v2667 = vrot.slane %v2579, 5
      %v2668 = vrot.slane %v2667, 4
      %v2669 = vrot.slane %v2318, 5
      %v2670 = vsel %vm1849, %v2668, %v2669
      %v2671 = vrot.slane %v2669, 4
      %v2672 = vrot.slane %v2329, 5
      %v2673 = vsel %vm1849, %v2671, %v2672
      %v2674 = vrot.slane %v2580, 5
      %v2675 = vrot.slane %v2674, 4
      %v2676 = vrot.slane %v2320, 5
      %v2677 = vsel %vm1849, %v2675, %v2676
      %v2678 = vrot.slane %v2676, 4
      %v2679 = vrot.slane %v2330, 5
      %v2680 = vsel %vm1849, %v2678, %v2679
      %v2691 = vunpack.c.l.b16 %v1534
      %v2692 = vunpack.c.l.b16 %v1535
      %v2693 = vunpack.c.l.b16 %v1536
      %v2694 = vunpack.c.l.b16 %v1537
      %v2695 = vunpack.c.l.b16 %v1538
      %v2696 = vunpack.c.l.b16 %v1539
      %v2697 = vunpack.c.l.b16 %v1540
      %v2698 = vunpack.c.l.b16 %v1541
      %v2699 = vunpack.c.l.b16 %v1542
      %v2700 = vunpack.c.l.b16 %v1543
      %v2701 = vunpack.c.l.b16 %v1544
      %v2702 = vunpack.c.l.b16 %v1545
      %v2703 = vunpack.c.l.b16 %v1546
      %v2704 = vunpack.c.l.b16 %v1547
      %v2705 = vunpack.c.l.b16 %v1548
      %v2706 = vunpack.c.l.b16 %v1549
      %v2707 = vunpack.c.l.b16 %v1550
      %v2708 = vunpack.c.l.b16 %v1551
      %v2709 = vunpack.c.l.b16 %v1552
      %v2710 = vunpack.c.l.b16 %v1553
      %v2711 = vpack.c.b16 %v2692, %v2691
      %v2712 = vpack.c.b16 %v2694, %v2693
      %v2713 = vpack.c.b16 %v2696, %v2695
      %v2714 = vpack.c.b16 %v2698, %v2697
      %v2715 = vpack.c.b16 %v2700, %v2699
      %v2716 = vpack.c.b16 %v2702, %v2701
      %v2717 = vpack.c.b16 %v2704, %v2703
      %v2718 = vpack.c.b16 %v2706, %v2705
      %v2719 = vpack.c.b16 %v2708, %v2707
      %v2720 = vpack.c.b16 %v2710, %v2709
      %v2721 = vunpack.c.l.b16 %v1580
      %v2722 = vunpack.c.l.b16 %v1590
      %v2723 = vunpack.c.l.b16 %v1604
      %v2724 = vunpack.c.l.b16 %v1614
      %v2725 = vunpack.c.l.b16 %v1628
      %v2726 = vunpack.c.l.b16 %v1638
      %v2727 = vunpack.c.l.b16 %v1652
      %v2728 = vunpack.c.l.b16 %v1662
      %v2729 = vunpack.c.l.b16 %v1676
      %v2730 = vunpack.c.l.b16 %v1686
      %v2731 = vunpack.c.l.b16 %v1700
      %v2732 = vunpack.c.l.b16 %v1710
      %v2733 = vunpack.c.l.b16 %v1724
      %v2734 = vunpack.c.l.b16 %v1734
      %v2735 = vunpack.c.l.b16 %v1748
      %v2736 = vunpack.c.l.b16 %v1758
      %v2737 = vunpack.c.l.b16 %v1772
      %v2738 = vunpack.c.l.b16 %v1782
      %v2739 = vunpack.c.l.b16 %v1796
      %v2740 = vunpack.c.l.b16 %v1806
      %v2741 = vpack.c.b16 %v2722, %v2721
      %v2742 = vpack.c.b16 %v2724, %v2723
      %v2743 = vpack.c.b16 %v2726, %v2725
      %v2744 = vpack.c.b16 %v2728, %v2727
      %v2745 = vpack.c.b16 %v2730, %v2729
      %v2746 = vpack.c.b16 %v2732, %v2731
      %v2747 = vpack.c.b16 %v2734, %v2733
      %v2748 = vpack.c.b16 %v2736, %v2735
      %v2749 = vpack.c.b16 %v2738, %v2737
      %v2750 = vpack.c.b16 %v2740, %v2739
      %2751 = vrot.lane.b32.xlu0 %v2741, 2
      %v2752 = vpop.permute.xlu0 %2751
      %2753 = vrot.lane.b32.xlu0 %v2742, 2
      %v2754 = vpop.permute.xlu0 %2753
      %2755 = vrot.lane.b32.xlu0 %v2743, 2
      %v2756 = vpop.permute.xlu0 %2755
      %2757 = vrot.lane.b32.xlu0 %v2744, 2
      %v2758 = vpop.permute.xlu0 %2757
      %2759 = vrot.lane.b32.xlu0 %v2745, 2
      %v2760 = vpop.permute.xlu0 %2759
      %2761 = vrot.lane.b32.xlu0 %v2746, 2
      %v2762 = vpop.permute.xlu0 %2761
      %2763 = vrot.lane.b32.xlu0 %v2747, 2
      %v2764 = vpop.permute.xlu0 %2763
      %2765 = vrot.lane.b32.xlu0 %v2748, 2
      %v2766 = vpop.permute.xlu0 %2765
      %2767 = vrot.lane.b32.xlu0 %v2749, 2
      %v2768 = vpop.permute.xlu0 %2767
      %2769 = vrot.lane.b32.xlu0 %v2750, 2
      %v2770 = vpop.permute.xlu0 %2769
      %v2771 = vunpack.c.l.b16 %v1853
      %v2772 = vunpack.c.l.b16 %v1856
      %v2773 = vunpack.c.l.b16 %v1860
      %v2774 = vunpack.c.l.b16 %v1863
      %v2775 = vunpack.c.l.b16 %v1867
      %v2776 = vunpack.c.l.b16 %v1870
      %v2777 = vunpack.c.l.b16 %v1874
      %v2778 = vunpack.c.l.b16 %v1877
      %v2779 = vunpack.c.l.b16 %v1881
      %v2780 = vunpack.c.l.b16 %v1884
      %v2781 = vunpack.c.l.b16 %v1888
      %v2782 = vunpack.c.l.b16 %v1891
      %v2783 = vunpack.c.l.b16 %v1895
      %v2784 = vunpack.c.l.b16 %v1898
      %v2785 = vunpack.c.l.b16 %v1902
      %v2786 = vunpack.c.l.b16 %v1905
      %v2787 = vunpack.c.l.b16 %v1909
      %v2788 = vunpack.c.l.b16 %v1912
      %v2789 = vunpack.c.l.b16 %v1916
      %v2790 = vunpack.c.l.b16 %v1919
      %v2791 = vpack.c.b16 %v2772, %v2771
      %v2792 = vpack.c.b16 %v2774, %v2773
      %v2793 = vpack.c.b16 %v2776, %v2775
      %v2794 = vpack.c.b16 %v2778, %v2777
      %v2795 = vpack.c.b16 %v2780, %v2779
      %v2796 = vpack.c.b16 %v2782, %v2781
      %v2797 = vpack.c.b16 %v2784, %v2783
      %v2798 = vpack.c.b16 %v2786, %v2785
      %v2799 = vpack.c.b16 %v2788, %v2787
      %v2800 = vpack.c.b16 %v2790, %v2789
      %2801 = vrot.lane.b32.xlu0 %v2791, 4
      %v2802 = vpop.permute.xlu0 %2801
      %2803 = vrot.lane.b32.xlu0 %v2792, 4
      %v2804 = vpop.permute.xlu0 %2803
      %2805 = vrot.lane.b32.xlu0 %v2793, 4
      %v2806 = vpop.permute.xlu0 %2805
      %2807 = vrot.lane.b32.xlu0 %v2794, 4
      %v2808 = vpop.permute.xlu0 %2807
      %2809 = vrot.lane.b32.xlu0 %v2795, 4
      %v2810 = vpop.permute.xlu0 %2809
      %2811 = vrot.lane.b32.xlu0 %v2796, 4
      %v2812 = vpop.permute.xlu0 %2811
      %2813 = vrot.lane.b32.xlu0 %v2797, 4
      %v2814 = vpop.permute.xlu0 %2813
      %2815 = vrot.lane.b32.xlu0 %v2798, 4
      %v2816 = vpop.permute.xlu0 %2815
      %2817 = vrot.lane.b32.xlu0 %v2799, 4
      %v2818 = vpop.permute.xlu0 %2817
      %2819 = vrot.lane.b32.xlu0 %v2800, 4
      %v2820 = vpop.permute.xlu0 %2819
      %v2831 = vunpack.c.l.b16 %v1921
      %v2832 = vunpack.c.l.b16 %v1922
      %v2833 = vunpack.c.l.b16 %v1923
      %v2834 = vunpack.c.l.b16 %v1924
      %v2835 = vunpack.c.l.b16 %v1925
      %v2836 = vunpack.c.l.b16 %v1926
      %v2837 = vunpack.c.l.b16 %v1927
      %v2838 = vunpack.c.l.b16 %v1928
      %v2839 = vunpack.c.l.b16 %v1929
      %v2840 = vunpack.c.l.b16 %v1930
      %v2841 = vunpack.c.l.b16 %v1931
      %v2842 = vunpack.c.l.b16 %v1932
      %v2843 = vunpack.c.l.b16 %v1933
      %v2844 = vunpack.c.l.b16 %v1934
      %v2845 = vunpack.c.l.b16 %v1935
      %v2846 = vunpack.c.l.b16 %v1936
      %v2847 = vunpack.c.l.b16 %v1937
      %v2848 = vunpack.c.l.b16 %v1938
      %v2849 = vunpack.c.l.b16 %v1939
      %v2850 = vunpack.c.l.b16 %v1940
      %v2851 = vpack.c.b16 %v2832, %v2831
      %v2852 = vpack.c.b16 %v2834, %v2833
      %v2853 = vpack.c.b16 %v2836, %v2835
      %v2854 = vpack.c.b16 %v2838, %v2837
      %v2855 = vpack.c.b16 %v2840, %v2839
      %v2856 = vpack.c.b16 %v2842, %v2841
      %v2857 = vpack.c.b16 %v2844, %v2843
      %v2858 = vpack.c.b16 %v2846, %v2845
      %v2859 = vpack.c.b16 %v2848, %v2847
      %v2860 = vpack.c.b16 %v2850, %v2849
      %2861 = vrot.lane.b32.xlu0 %v2851, 6
      %v2862 = vpop.permute.xlu0 %2861
      %2863 = vrot.lane.b32.xlu0 %v2852, 6
      %v2864 = vpop.permute.xlu0 %2863
      %2865 = vrot.lane.b32.xlu0 %v2853, 6
      %v2866 = vpop.permute.xlu0 %2865
      %2867 = vrot.lane.b32.xlu0 %v2854, 6
      %v2868 = vpop.permute.xlu0 %2867
      %2869 = vrot.lane.b32.xlu0 %v2855, 6
      %v2870 = vpop.permute.xlu0 %2869
      %2871 = vrot.lane.b32.xlu0 %v2856, 6
      %v2872 = vpop.permute.xlu0 %2871
      %2873 = vrot.lane.b32.xlu0 %v2857, 6
      %v2874 = vpop.permute.xlu0 %2873
      %2875 = vrot.lane.b32.xlu0 %v2858, 6
      %v2876 = vpop.permute.xlu0 %2875
      %2877 = vrot.lane.b32.xlu0 %v2859, 6
      %v2878 = vpop.permute.xlu0 %2877
      %2879 = vrot.lane.b32.xlu0 %v2860, 6
      %v2880 = vpop.permute.xlu0 %2879
      %v2881 = vunpack.c.l.b16 %v1964
      %v2882 = vunpack.c.l.b16 %v1974
      %v2883 = vunpack.c.l.b16 %v1988
      %v2884 = vunpack.c.l.b16 %v1998
      %v2885 = vunpack.c.l.b16 %v2012
      %v2886 = vunpack.c.l.b16 %v2022
      %v2887 = vunpack.c.l.b16 %v2036
      %v2888 = vunpack.c.l.b16 %v2046
      %v2889 = vunpack.c.l.b16 %v2060
      %v2890 = vunpack.c.l.b16 %v2070
      %v2891 = vunpack.c.l.b16 %v2084
      %v2892 = vunpack.c.l.b16 %v2094
      %v2893 = vunpack.c.l.b16 %v2108
      %v2894 = vunpack.c.l.b16 %v2118
      %v2895 = vunpack.c.l.b16 %v2132
      %v2896 = vunpack.c.l.b16 %v2142
      %v2897 = vunpack.c.l.b16 %v2156
      %v2898 = vunpack.c.l.b16 %v2166
      %v2899 = vunpack.c.l.b16 %v2180
      %v2900 = vunpack.c.l.b16 %v2190
      %v2901 = vpack.c.b16 %v2882, %v2881
      %v2902 = vpack.c.b16 %v2884, %v2883
      %v2903 = vpack.c.b16 %v2886, %v2885
      %v2904 = vpack.c.b16 %v2888, %v2887
      %v2905 = vpack.c.b16 %v2890, %v2889
      %v2906 = vpack.c.b16 %v2892, %v2891
      %v2907 = vpack.c.b16 %v2894, %v2893
      %v2908 = vpack.c.b16 %v2896, %v2895
      %v2909 = vpack.c.b16 %v2898, %v2897
      %v2910 = vpack.c.b16 %v2900, %v2899
      %2911 = vrot.lane.b32.xlu0 %v2901, 8
      %v2912 = vpop.permute.xlu0 %2911
      %2913 = vrot.lane.b32.xlu0 %v2902, 8
      %v2914 = vpop.permute.xlu0 %2913
      %2915 = vrot.lane.b32.xlu0 %v2903, 8
      %v2916 = vpop.permute.xlu0 %2915
      %2917 = vrot.lane.b32.xlu0 %v2904, 8
      %v2918 = vpop.permute.xlu0 %2917
      %2919 = vrot.lane.b32.xlu0 %v2905, 8
      %v2920 = vpop.permute.xlu0 %2919
      %2921 = vrot.lane.b32.xlu0 %v2906, 8
      %v2922 = vpop.permute.xlu0 %2921
      %2923 = vrot.lane.b32.xlu0 %v2907, 8
      %v2924 = vpop.permute.xlu0 %2923
      %2925 = vrot.lane.b32.xlu0 %v2908, 8
      %v2926 = vpop.permute.xlu0 %2925
      %2927 = vrot.lane.b32.xlu0 %v2909, 8
      %v2928 = vpop.permute.xlu0 %2927
      %2929 = vrot.lane.b32.xlu0 %v2910, 8
      %v2930 = vpop.permute.xlu0 %2929
      %v2931 = vunpack.c.l.b16 %v2234
      %v2932 = vunpack.c.l.b16 %v2237
      %v2933 = vunpack.c.l.b16 %v2241
      %v2934 = vunpack.c.l.b16 %v2244
      %v2935 = vunpack.c.l.b16 %v2248
      %v2936 = vunpack.c.l.b16 %v2251
      %v2937 = vunpack.c.l.b16 %v2255
      %v2938 = vunpack.c.l.b16 %v2258
      %v2939 = vunpack.c.l.b16 %v2262
      %v2940 = vunpack.c.l.b16 %v2265
      %v2941 = vunpack.c.l.b16 %v2269
      %v2942 = vunpack.c.l.b16 %v2272
      %v2943 = vunpack.c.l.b16 %v2276
      %v2944 = vunpack.c.l.b16 %v2279
      %v2945 = vunpack.c.l.b16 %v2283
      %v2946 = vunpack.c.l.b16 %v2286
      %v2947 = vunpack.c.l.b16 %v2290
      %v2948 = vunpack.c.l.b16 %v2293
      %v2949 = vunpack.c.l.b16 %v2297
      %v2950 = vunpack.c.l.b16 %v2300
      %v2951 = vpack.c.b16 %v2932, %v2931
      %v2952 = vpack.c.b16 %v2934, %v2933
      %v2953 = vpack.c.b16 %v2936, %v2935
      %v2954 = vpack.c.b16 %v2938, %v2937
      %v2955 = vpack.c.b16 %v2940, %v2939
      %v2956 = vpack.c.b16 %v2942, %v2941
      %v2957 = vpack.c.b16 %v2944, %v2943
      %v2958 = vpack.c.b16 %v2946, %v2945
      %v2959 = vpack.c.b16 %v2948, %v2947
      %v2960 = vpack.c.b16 %v2950, %v2949
      %2961 = vrot.lane.b32.xlu0 %v2951, 10
      %v2962 = vpop.permute.xlu0 %2961
      %2963 = vrot.lane.b32.xlu0 %v2952, 10
      %v2964 = vpop.permute.xlu0 %2963
      %2965 = vrot.lane.b32.xlu0 %v2953, 10
      %v2966 = vpop.permute.xlu0 %2965
      %2967 = vrot.lane.b32.xlu0 %v2954, 10
      %v2968 = vpop.permute.xlu0 %2967
      %2969 = vrot.lane.b32.xlu0 %v2955, 10
      %v2970 = vpop.permute.xlu0 %2969
      %2971 = vrot.lane.b32.xlu0 %v2956, 10
      %v2972 = vpop.permute.xlu0 %2971
      %2973 = vrot.lane.b32.xlu0 %v2957, 10
      %v2974 = vpop.permute.xlu0 %2973
      %2975 = vrot.lane.b32.xlu0 %v2958, 10
      %v2976 = vpop.permute.xlu0 %2975
      %2977 = vrot.lane.b32.xlu0 %v2959, 10
      %v2978 = vpop.permute.xlu0 %2977
      %2979 = vrot.lane.b32.xlu0 %v2960, 10
      %v2980 = vpop.permute.xlu0 %2979
      %v2991 = vunpack.c.l.b16 %v2301
      %v2992 = vunpack.c.l.b16 %v2302
      %v2993 = vunpack.c.l.b16 %v2303
      %v2994 = vunpack.c.l.b16 %v2304
      %v2995 = vunpack.c.l.b16 %v2305
      %v2996 = vunpack.c.l.b16 %v2306
      %v2997 = vunpack.c.l.b16 %v2307
      %v2998 = vunpack.c.l.b16 %v2308
      %v2999 = vunpack.c.l.b16 %v2309
      %v3000 = vunpack.c.l.b16 %v2310
      %v3001 = vunpack.c.l.b16 %v2311
      %v3002 = vunpack.c.l.b16 %v2312
      %v3003 = vunpack.c.l.b16 %v2313
      %v3004 = vunpack.c.l.b16 %v2314
      %v3005 = vunpack.c.l.b16 %v2315
      %v3006 = vunpack.c.l.b16 %v2316
      %v3007 = vunpack.c.l.b16 %v2317
      %v3008 = vunpack.c.l.b16 %v2318
      %v3009 = vunpack.c.l.b16 %v2319
      %v3010 = vunpack.c.l.b16 %v2320
      %v3011 = vpack.c.b16 %v2992, %v2991
      %v3012 = vpack.c.b16 %v2994, %v2993
      %v3013 = vpack.c.b16 %v2996, %v2995
      %v3014 = vpack.c.b16 %v2998, %v2997
      %v3015 = vpack.c.b16 %v3000, %v2999
      %v3016 = vpack.c.b16 %v3002, %v3001
      %v3017 = vpack.c.b16 %v3004, %v3003
      %v3018 = vpack.c.b16 %v3006, %v3005
      %v3019 = vpack.c.b16 %v3008, %v3007
      %v3020 = vpack.c.b16 %v3010, %v3009
      %3021 = vrot.lane.b32.xlu0 %v3011, 12
      %v3022 = vpop.permute.xlu0 %3021
      %3023 = vrot.lane.b32.xlu0 %v3012, 12
      %v3024 = vpop.permute.xlu0 %3023
      %3025 = vrot.lane.b32.xlu0 %v3013, 12
      %v3026 = vpop.permute.xlu0 %3025
      %3027 = vrot.lane.b32.xlu0 %v3014, 12
      %v3028 = vpop.permute.xlu0 %3027
      %3029 = vrot.lane.b32.xlu0 %v3015, 12
      %v3030 = vpop.permute.xlu0 %3029
      %3031 = vrot.lane.b32.xlu0 %v3016, 12
      %v3032 = vpop.permute.xlu0 %3031
      %3033 = vrot.lane.b32.xlu0 %v3017, 12
      %v3034 = vpop.permute.xlu0 %3033
      %3035 = vrot.lane.b32.xlu0 %v3018, 12
      %v3036 = vpop.permute.xlu0 %3035
      %3037 = vrot.lane.b32.xlu0 %v3019, 12
      %v3038 = vpop.permute.xlu0 %3037
      %3039 = vrot.lane.b32.xlu0 %v3020, 12
      %v3040 = vpop.permute.xlu0 %3039
      %v3041 = vunpack.c.l.b16 %v2344
      %v3042 = vunpack.c.l.b16 %v2354
      %v3043 = vunpack.c.l.b16 %v2368
      %v3044 = vunpack.c.l.b16 %v2378
      %v3045 = vunpack.c.l.b16 %v2392
      %v3046 = vunpack.c.l.b16 %v2402
      %v3047 = vunpack.c.l.b16 %v2416
      %v3048 = vunpack.c.l.b16 %v2426
      %v3049 = vunpack.c.l.b16 %v2440
      %v3050 = vunpack.c.l.b16 %v2450
      %v3051 = vunpack.c.l.b16 %v2464
      %v3052 = vunpack.c.l.b16 %v2474
      %v3053 = vunpack.c.l.b16 %v2488
      %v3054 = vunpack.c.l.b16 %v2498
      %v3055 = vunpack.c.l.b16 %v2512
      %v3056 = vunpack.c.l.b16 %v2522
      %v3057 = vunpack.c.l.b16 %v2536
      %v3058 = vunpack.c.l.b16 %v2546
      %v3059 = vunpack.c.l.b16 %v2560
      %v3060 = vunpack.c.l.b16 %v2570
      %v3061 = vpack.c.b16 %v3042, %v3041
      %v3062 = vpack.c.b16 %v3044, %v3043
      %v3063 = vpack.c.b16 %v3046, %v3045
      %v3064 = vpack.c.b16 %v3048, %v3047
      %v3065 = vpack.c.b16 %v3050, %v3049
      %v3066 = vpack.c.b16 %v3052, %v3051
      %v3067 = vpack.c.b16 %v3054, %v3053
      %v3068 = vpack.c.b16 %v3056, %v3055
      %v3069 = vpack.c.b16 %v3058, %v3057
      %v3070 = vpack.c.b16 %v3060, %v3059
      %3071 = vrot.lane.b32.xlu0 %v3061, 14
      %v3072 = vpop.permute.xlu0 %3071
      %3073 = vrot.lane.b32.xlu0 %v3062, 14
      %v3074 = vpop.permute.xlu0 %3073
      %3075 = vrot.lane.b32.xlu0 %v3063, 14
      %v3076 = vpop.permute.xlu0 %3075
      %3077 = vrot.lane.b32.xlu0 %v3064, 14
      %v3078 = vpop.permute.xlu0 %3077
      %3079 = vrot.lane.b32.xlu0 %v3065, 14
      %v3080 = vpop.permute.xlu0 %3079
      %3081 = vrot.lane.b32.xlu0 %v3066, 14
      %v3082 = vpop.permute.xlu0 %3081
      %3083 = vrot.lane.b32.xlu0 %v3067, 14
      %v3084 = vpop.permute.xlu0 %3083
      %3085 = vrot.lane.b32.xlu0 %v3068, 14
      %v3086 = vpop.permute.xlu0 %3085
      %3087 = vrot.lane.b32.xlu0 %v3069, 14
      %v3088 = vpop.permute.xlu0 %3087
      %3089 = vrot.lane.b32.xlu0 %v3070, 14
      %v3090 = vpop.permute.xlu0 %3089
      %v3091 = vunpack.c.l.b16 %v2614
      %v3092 = vunpack.c.l.b16 %v2617
      %v3093 = vunpack.c.l.b16 %v2621
      %v3094 = vunpack.c.l.b16 %v2624
      %v3095 = vunpack.c.l.b16 %v2628
      %v3096 = vunpack.c.l.b16 %v2631
      %v3097 = vunpack.c.l.b16 %v2635
      %v3098 = vunpack.c.l.b16 %v2638
      %v3099 = vunpack.c.l.b16 %v2642
      %v3100 = vunpack.c.l.b16 %v2645
      %v3101 = vunpack.c.l.b16 %v2649
      %v3102 = vunpack.c.l.b16 %v2652
      %v3103 = vunpack.c.l.b16 %v2656
      %v3104 = vunpack.c.l.b16 %v2659
      %v3105 = vunpack.c.l.b16 %v2663
      %v3106 = vunpack.c.l.b16 %v2666
      %v3107 = vunpack.c.l.b16 %v2670
      %v3108 = vunpack.c.l.b16 %v2673
      %v3109 = vunpack.c.l.b16 %v2677
      %v3110 = vunpack.c.l.b16 %v2680
      %v3111 = vpack.c.b16 %v3092, %v3091
      %v3112 = vpack.c.b16 %v3094, %v3093
      %v3113 = vpack.c.b16 %v3096, %v3095
      %v3114 = vpack.c.b16 %v3098, %v3097
      %v3115 = vpack.c.b16 %v3100, %v3099
      %v3116 = vpack.c.b16 %v3102, %v3101
      %v3117 = vpack.c.b16 %v3104, %v3103
      %v3118 = vpack.c.b16 %v3106, %v3105
      %v3119 = vpack.c.b16 %v3108, %v3107
      %v3120 = vpack.c.b16 %v3110, %v3109
      %3121 = vrot.lane.b32.xlu0 %v3111, 16
      %v3122 = vpop.permute.xlu0 %3121
      %3123 = vrot.lane.b32.xlu0 %v3112, 16
      %v3124 = vpop.permute.xlu0 %3123
      %3125 = vrot.lane.b32.xlu0 %v3113, 16
      %v3126 = vpop.permute.xlu0 %3125
      %3127 = vrot.lane.b32.xlu0 %v3114, 16
      %v3128 = vpop.permute.xlu0 %3127
      %3129 = vrot.lane.b32.xlu0 %v3115, 16
      %v3130 = vpop.permute.xlu0 %3129
      %3131 = vrot.lane.b32.xlu0 %v3116, 16
      %v3132 = vpop.permute.xlu0 %3131
      %3133 = vrot.lane.b32.xlu0 %v3117, 16
      %v3134 = vpop.permute.xlu0 %3133
      %3135 = vrot.lane.b32.xlu0 %v3118, 16
      %v3136 = vpop.permute.xlu0 %3135
      %3137 = vrot.lane.b32.xlu0 %v3119, 16
      %v3138 = vpop.permute.xlu0 %3137
      %3139 = vrot.lane.b32.xlu0 %v3120, 16
      %v3140 = vpop.permute.xlu0 %3139
      %vm3141 = vcmask 15360
      %v3144 = vsel %vm3141, %v2711, %v2752
      %v3147 = vsel %vm3141, %v2712, %v2754
      %v3150 = vsel %vm3141, %v2713, %v2756
      %v3153 = vsel %vm3141, %v2714, %v2758
      %v3156 = vsel %vm3141, %v2715, %v2760
      %v3159 = vsel %vm3141, %v2716, %v2762
      %v3162 = vsel %vm3141, %v2717, %v2764
      %v3165 = vsel %vm3141, %v2718, %v2766
      %v3168 = vsel %vm3141, %v2719, %v2768
      %v3171 = vsel %vm3141, %v2720, %v2770
      %v3173 = vsel %vm594, %v3144, %v2802
      %v3175 = vsel %vm594, %v3147, %v2804
      %v3177 = vsel %vm594, %v3150, %v2806
      %v3179 = vsel %vm594, %v3153, %v2808
      %v3181 = vsel %vm594, %v3156, %v2810
      %v3183 = vsel %vm594, %v3159, %v2812
      %v3185 = vsel %vm594, %v3162, %v2814
      %v3187 = vsel %vm594, %v3165, %v2816
      %v3189 = vsel %vm594, %v3168, %v2818
      %v3191 = vsel %vm594, %v3171, %v2820
      %vm3192 = vcmask 48128
      %v3194 = vsel %vm3192, %v3173, %v2862
      %v3196 = vsel %vm3192, %v3175, %v2864
      %v3198 = vsel %vm3192, %v3177, %v2866
      %v3200 = vsel %vm3192, %v3179, %v2868
      %v3202 = vsel %vm3192, %v3181, %v2870
      %v3204 = vsel %vm3192, %v3183, %v2872
      %v3206 = vsel %vm3192, %v3185, %v2874
      %v3208 = vsel %vm3192, %v3187, %v2876
      %v3210 = vsel %vm3192, %v3189, %v2878
      %v3212 = vsel %vm3192, %v3191, %v2880
      %vm3213 = vcmask 64512
      %v3215 = vsel %vm3213, %v3194, %v2912
      %v3217 = vsel %vm3213, %v3196, %v2914
      %v3219 = vsel %vm3213, %v3198, %v2916
      %v3221 = vsel %vm3213, %v3200, %v2918
      %v3223 = vsel %vm3213, %v3202, %v2920
      %v3225 = vsel %vm3213, %v3204, %v2922
      %v3227 = vsel %vm3213, %v3206, %v2924
      %v3229 = vsel %vm3213, %v3208, %v2926
      %v3231 = vsel %vm3213, %v3210, %v2928
      %v3233 = vsel %vm3213, %v3212, %v2930
      %vm3234 = vcmask 80896
      %v3236 = vsel %vm3234, %v3215, %v2962
      %v3238 = vsel %vm3234, %v3217, %v2964
      %v3240 = vsel %vm3234, %v3219, %v2966
      %v3242 = vsel %vm3234, %v3221, %v2968
      %v3244 = vsel %vm3234, %v3223, %v2970
      %v3246 = vsel %vm3234, %v3225, %v2972
      %v3248 = vsel %vm3234, %v3227, %v2974
      %v3250 = vsel %vm3234, %v3229, %v2976
      %v3252 = vsel %vm3234, %v3231, %v2978
      %v3254 = vsel %vm3234, %v3233, %v2980
      %vm3255 = vcmask 97280
      %v3257 = vsel %vm3255, %v3236, %v3022
      %v3259 = vsel %vm3255, %v3238, %v3024
      %v3261 = vsel %vm3255, %v3240, %v3026
      %v3263 = vsel %vm3255, %v3242, %v3028
      %v3265 = vsel %vm3255, %v3244, %v3030
      %v3267 = vsel %vm3255, %v3246, %v3032
      %v3269 = vsel %vm3255, %v3248, %v3034
      %v3271 = vsel %vm3255, %v3250, %v3036
      %v3273 = vsel %vm3255, %v3252, %v3038
      %v3275 = vsel %vm3255, %v3254, %v3040
      %vm3276 = vcmask 113664
      %v3278 = vsel %vm3276, %v3257, %v3072
      %v3280 = vsel %vm3276, %v3259, %v3074
      %v3282 = vsel %vm3276, %v3261, %v3076
      %v3284 = vsel %vm3276, %v3263, %v3078
      %v3286 = vsel %vm3276, %v3265, %v3080
      %v3288 = vsel %vm3276, %v3267, %v3082
      %v3290 = vsel %vm3276, %v3269, %v3084
      %v3292 = vsel %vm3276, %v3271, %v3086
      %v3294 = vsel %vm3276, %v3273, %v3088
      %v3296 = vsel %vm3276, %v3275, %v3090
      %vm3297 = vcmask 130048
      %v3299 = vsel %vm3297, %v3278, %v3122
      %v3301 = vsel %vm3297, %v3280, %v3124
      %v3303 = vsel %vm3297, %v3282, %v3126
      %v3305 = vsel %vm3297, %v3284, %v3128
      %v3307 = vsel %vm3297, %v3286, %v3130
      %v3309 = vsel %vm3297, %v3288, %v3132
      %v3311 = vsel %vm3297, %v3290, %v3134
      %v3313 = vsel %vm3297, %v3292, %v3136
      %v3315 = vsel %vm3297, %v3294, %v3138
      %v3317 = vsel %vm3297, %v3296, %v3140
      %v3318 = vld [vmem:[%s4] sm:$0xf]
      %v3319 = vld [vmem:[%s4 + $0x4] sm:$0xf]
      %v3320 = vld [vmem:[%s4 + $0x8] sm:$0x1]
      %v3321 = vlaneseq
      %v3322 = vshrl.u32 %v3321, 7
      %v3323 = vsub.s32 0, %v3322
      %v3324 = vrot.slane %v567, %v3323
      %v3328 = vunpack.c.l.b16 %v3318
      %v3329 = vunpack.c.l.b16 %v3319
      %v3330 = vunpack.c.l.b16 %v3320
      %v3331 = vpack.c.b16 %v3329, %v3328
      %v3332 = vpack.c.b16 %v3330, %v3330
      %vm3334 = vcmask 146432
      %v3335 = vsel %vm3334, %v3299, 0
      %v3337 = vsel %vm3334, %v3301, 0
      %v3339 = vsel %vm3334, %v3303, 0
      %v3341 = vsel %vm3334, %v3305, 0
      %v3343 = vsel %vm3334, %v3307, 0
      %v3345 = vsel %vm3334, %v3309, 0
      %v3347 = vsel %vm3334, %v3311, 0
      %v3349 = vsel %vm3334, %v3313, 0
      %v3351 = vsel %vm3334, %v3315, 0
      %v3353 = vsel %vm3334, %v3317, 0
      %vm3355 = vcmask 1040384
      %v3357 = vsel %vm3355, %v3332, 0
      %3359 = vmatprep.subr.bf16.mxu0 0
      %3360 = vmatpush1.bf16.msra.mxu0 %v3331
      %3361 = vmatprep.subr.bf16.mxu0 0
      %3362 = vmatpush1.bf16.msra.mxu0 %v3357
      %3363 = vmatprep.subr.bf16.mxu0 0
      %3364 = vmatpush1.bf16.msra.mxu0 0
      %3365 = vmatprep.subr.bf16.mxu0 0
      %3366 = vmatpush1.bf16.msra.mxu0 0
      %3367 = vmatprep.subr.bf16.mxu0 0
      %3368 = vmatpush1.bf16.msra.mxu0 0
      %3369 = vmatprep.subr.bf16.mxu0 0
      %3370 = vmatpush1.bf16.msra.mxu0 0
      %3371 = vmatprep.subr.bf16.mxu0 0
      %3372 = vmatpush1.bf16.msra.mxu0 0
      %3373 = vmatprep.subr.bf16.mxu0 0
      %3374 = vmatpush1.bf16.msra.mxu0 0
      %3375 = vmatprep.subr.bf16.mxu0 0
      %3376 = vmatpush1.bf16.msra.mxu0 0
      %3377 = vmatprep.subr.bf16.mxu0 0
      %3378 = vmatpush1.bf16.msra.mxu0 0
      %3379 = vmatprep.subr.bf16.mxu0 0
      %3380 = vmatpush1.bf16.msra.mxu0 0
      %3381 = vmatprep.subr.bf16.mxu0 0
      %3382 = vmatpush1.bf16.msra.mxu0 0
      %3383 = vmatprep.subr.bf16.mxu0 0
      %3384 = vmatpush1.bf16.msra.mxu0 0
      %3385 = vmatprep.subr.bf16.mxu0 0
      %3386 = vmatpush1.bf16.msra.mxu0 0
      %3387 = vmatprep.subr.bf16.mxu0 0
      %3388 = vmatpush1.bf16.msra.mxu0 0
      %3389 = vmatprep.subr.bf16.mxu0 0
      %3390 = vmatpush1.bf16.msra.mxu0 0
      %3391 = vmatprep.mubr.bf16.mxu0 0
      %3392 = vmatmul.mubr.bf16.gmra.mrb[0].mxu0 %v3335
      %v3393 = vpop.f32.mrb[0].mxu0
      %v3394 = vadd.f32 %v3324, %v3393
      %v3395 = vpop.f32.mrb[0].mxu0
      %v3396 = vpop.f32.mrb[0].mxu0
      %v3397 = vadd.f32 %v3324, %v3396
      %v3398 = vpop.f32.mrb[0].mxu0
      %3399 = vmatprep.mubr.bf16.mxu0 0
      %3400 = vmatmul.mubr.bf16.gmra.mrb[0].mxu0 %v3337
      %v3401 = vpop.f32.mrb[0].mxu0
      %v3402 = vadd.f32 %v3324, %v3401
      %v3403 = vpop.f32.mrb[0].mxu0
      %v3404 = vpop.f32.mrb[0].mxu0
      %v3405 = vadd.f32 %v3324, %v3404
      %v3406 = vpop.f32.mrb[0].mxu0
      %3407 = vmatprep.mubr.bf16.mxu0 0
      %3408 = vmatmul.mubr.bf16.gmra.mrb[0].mxu0 %v3339
      %v3409 = vpop.f32.mrb[0].mxu0
      %v3410 = vadd.f32 %v3324, %v3409
      %v3411 = vpop.f32.mrb[0].mxu0
      %v3412 = vpop.f32.mrb[0].mxu0
      %v3413 = vadd.f32 %v3324, %v3412
      %v3414 = vpop.f32.mrb[0].mxu0
      %3415 = vmatprep.mubr.bf16.mxu0 0
      %3416 = vmatmul.mubr.bf16.gmra.mrb[0].mxu0 %v3341
      %v3417 = vpop.f32.mrb[0].mxu0
      %v3418 = vadd.f32 %v3324, %v3417
      %v3419 = vpop.f32.mrb[0].mxu0
      %v3420 = vpop.f32.mrb[0].mxu0
      %v3421 = vadd.f32 %v3324, %v3420
      %v3422 = vpop.f32.mrb[0].mxu0
      %3423 = vmatprep.mubr.bf16.mxu0 0
      %3424 = vmatmul.mubr.bf16.gmra.mrb[0].mxu0 %v3343
      %v3425 = vpop.f32.mrb[0].mxu0
      %v3426 = vadd.f32 %v3324, %v3425
      %v3427 = vpop.f32.mrb[0].mxu0
      %v3428 = vpop.f32.mrb[0].mxu0
      %v3429 = vadd.f32 %v3324, %v3428
      %v3430 = vpop.f32.mrb[0].mxu0
      %3431 = vmatprep.mubr.bf16.mxu0 0
      %3432 = vmatmul.mubr.bf16.gmra.mrb[0].mxu0 %v3345
      %v3433 = vpop.f32.mrb[0].mxu0
      %v3434 = vadd.f32 %v3324, %v3433
      %v3435 = vpop.f32.mrb[0].mxu0
      %v3436 = vpop.f32.mrb[0].mxu0
      %v3437 = vadd.f32 %v3324, %v3436
      %v3438 = vpop.f32.mrb[0].mxu0
      %3439 = vmatprep.mubr.bf16.mxu0 0
      %3440 = vmatmul.mubr.bf16.gmra.mrb[0].mxu0 %v3347
      %v3441 = vpop.f32.mrb[0].mxu0
      %v3442 = vadd.f32 %v3324, %v3441
      %v3443 = vpop.f32.mrb[0].mxu0
      %v3444 = vpop.f32.mrb[0].mxu0
      %v3445 = vadd.f32 %v3324, %v3444
      %v3446 = vpop.f32.mrb[0].mxu0
      %3447 = vmatprep.mubr.bf16.mxu0 0
      %3448 = vmatmul.mubr.bf16.gmra.mrb[0].mxu0 %v3349
      %v3449 = vpop.f32.mrb[0].mxu0
      %v3450 = vadd.f32 %v3324, %v3449
      %v3451 = vpop.f32.mrb[0].mxu0
      %v3452 = vpop.f32.mrb[0].mxu0
      %v3453 = vadd.f32 %v3324, %v3452
      %v3454 = vpop.f32.mrb[0].mxu0
      %3455 = vmatprep.mubr.bf16.mxu0 0
      %3456 = vmatmul.mubr.bf16.gmra.mrb[0].mxu0 %v3351
      %v3457 = vpop.f32.mrb[0].mxu0
      %v3458 = vadd.f32 %v3324, %v3457
      %v3459 = vpop.f32.mrb[0].mxu0
      %v3460 = vpop.f32.mrb[0].mxu0
      %v3461 = vadd.f32 %v3324, %v3460
      %v3462 = vpop.f32.mrb[0].mxu0
      %3463 = vmatprep.mubr.bf16.mxu0 0
      %3464 = vmatmul.mubr.bf16.gmra.mrb[0].mxu0 %v3353
      %v3465 = vpop.f32.mrb[0].mxu0
      %v3466 = vadd.f32 %v3324, %v3465
      %v3467 = vpop.f32.mrb[0].mxu0
      %v3468 = vpop.f32.mrb[0].mxu0
      %v3469 = vadd.f32 %v3324, %v3468
      %v3470 = vpop.f32.mrb[0].mxu0
      %3471 = vdwg.mxu0
      %v3472 = vxor.u32 %v3394, 2147483648
      %v3473 = vxor.u32 %v3397, 2147483648
      %v3474 = vxor.u32 %v3402, 2147483648
      %v3475 = vxor.u32 %v3405, 2147483648
      %v3476 = vxor.u32 %v3410, 2147483648
      %v3477 = vxor.u32 %v3413, 2147483648
      %v3478 = vxor.u32 %v3418, 2147483648
      %v3479 = vxor.u32 %v3421, 2147483648
      %v3480 = vxor.u32 %v3426, 2147483648
      %v3481 = vxor.u32 %v3429, 2147483648
      %v3482 = vxor.u32 %v3434, 2147483648
      %v3483 = vxor.u32 %v3437, 2147483648
      %v3484 = vxor.u32 %v3442, 2147483648
      %v3485 = vxor.u32 %v3445, 2147483648
      %v3486 = vxor.u32 %v3450, 2147483648
      %v3487 = vxor.u32 %v3453, 2147483648
      %v3488 = vxor.u32 %v3458, 2147483648
      %v3489 = vxor.u32 %v3461, 2147483648
      %v3490 = vxor.u32 %v3466, 2147483648
      %v3491 = vxor.u32 %v3469, 2147483648
      %v3492 = vmul.f32 %v3472, 1.442695
      %v3493 = vpow.pop %v3492
      %v3494 = vmul.f32 %v3473, 1.442695
      %v3495 = vpow.pop %v3494
      %v3496 = vmul.f32 %v3474, 1.442695
      %v3497 = vpow.pop %v3496
      %v3498 = vmul.f32 %v3475, 1.442695
      %v3499 = vpow.pop %v3498
      %v3500 = vmul.f32 %v3476, 1.442695
      %v3501 = vpow.pop %v3500
      %v3502 = vmul.f32 %v3477, 1.442695
      %v3503 = vpow.pop %v3502
      %v3504 = vmul.f32 %v3478, 1.442695
      %v3505 = vpow.pop %v3504
      %v3506 = vmul.f32 %v3479, 1.442695
      %v3507 = vpow.pop %v3506
      %v3508 = vmul.f32 %v3480, 1.442695
      %v3509 = vpow.pop %v3508
      %v3510 = vmul.f32 %v3481, 1.442695
      %v3511 = vpow.pop %v3510
      %v3512 = vmul.f32 %v3482, 1.442695
      %v3513 = vpow.pop %v3512
      %v3514 = vmul.f32 %v3483, 1.442695
      %v3515 = vpow.pop %v3514
      %v3516 = vmul.f32 %v3484, 1.442695
      %v3517 = vpow.pop %v3516
      %v3518 = vmul.f32 %v3485, 1.442695
      %v3519 = vpow.pop %v3518
      %v3520 = vmul.f32 %v3486, 1.442695
      %v3521 = vpow.pop %v3520
      %v3522 = vmul.f32 %v3487, 1.442695
      %v3523 = vpow.pop %v3522
      %v3524 = vmul.f32 %v3488, 1.442695
      %v3525 = vpow.pop %v3524
      %v3526 = vmul.f32 %v3489, 1.442695
      %v3527 = vpow.pop %v3526
      %v3528 = vmul.f32 %v3490, 1.442695
      %v3529 = vpow.pop %v3528
      %v3530 = vmul.f32 %v3491, 1.442695
      %v3531 = vpow.pop %v3530
      %v3532 = vadd.f32 %v3493, 1.0
      %v3533 = vadd.f32 %v3495, 1.0
      %v3534 = vadd.f32 %v3497, 1.0
      %v3535 = vadd.f32 %v3499, 1.0
      %v3536 = vadd.f32 %v3501, 1.0
      %v3537 = vadd.f32 %v3503, 1.0
      %v3538 = vadd.f32 %v3505, 1.0
      %v3539 = vadd.f32 %v3507, 1.0
      %v3540 = vadd.f32 %v3509, 1.0
      %v3541 = vadd.f32 %v3511, 1.0
      %v3542 = vadd.f32 %v3513, 1.0
      %v3543 = vadd.f32 %v3515, 1.0
      %v3544 = vadd.f32 %v3517, 1.0
      %v3545 = vadd.f32 %v3519, 1.0
      %v3546 = vadd.f32 %v3521, 1.0
      %v3547 = vadd.f32 %v3523, 1.0
      %v3548 = vadd.f32 %v3525, 1.0
      %v3549 = vadd.f32 %v3527, 1.0
      %v3550 = vadd.f32 %v3529, 1.0
      %v3551 = vadd.f32 %v3531, 1.0
      %v3552 = vrcp.pop %v3532
      %v3553 = vmul.f32 1.0, %v3552
      %v3554 = vrcp.pop %v3533
      %v3555 = vmul.f32 1.0, %v3554
      %v3556 = vrcp.pop %v3534
      %v3557 = vmul.f32 1.0, %v3556
      %v3558 = vrcp.pop %v3535
      %v3559 = vmul.f32 1.0, %v3558
      %v3560 = vrcp.pop %v3536
      %v3561 = vmul.f32 1.0, %v3560
      %v3562 = vrcp.pop %v3537
      %v3563 = vmul.f32 1.0, %v3562
      %v3564 = vrcp.pop %v3538
      %v3565 = vmul.f32 1.0, %v3564
      %v3566 = vrcp.pop %v3539
      %v3567 = vmul.f32 1.0, %v3566
      %v3568 = vrcp.pop %v3540
      %v3569 = vmul.f32 1.0, %v3568
      %v3570 = vrcp.pop %v3541
      %v3571 = vmul.f32 1.0, %v3570
      %v3572 = vrcp.pop %v3542
      %v3573 = vmul.f32 1.0, %v3572
      %v3574 = vrcp.pop %v3543
      %v3575 = vmul.f32 1.0, %v3574
      %v3576 = vrcp.pop %v3544
      %v3577 = vmul.f32 1.0, %v3576
      %v3578 = vrcp.pop %v3545
      %v3579 = vmul.f32 1.0, %v3578
      %v3580 = vrcp.pop %v3546
      %v3581 = vmul.f32 1.0, %v3580
      %v3582 = vrcp.pop %v3547
      %v3583 = vmul.f32 1.0, %v3582
      %v3584 = vrcp.pop %v3548
      %v3585 = vmul.f32 1.0, %v3584
      %v3586 = vrcp.pop %v3549
      %v3587 = vmul.f32 1.0, %v3586
      %v3588 = vrcp.pop %v3550
      %v3589 = vmul.f32 1.0, %v3588
      %v3590 = vrcp.pop %v3551
      %v3591 = vmul.f32 1.0, %v3590
      %v3592 = vmul.f32 %v3394, %v3553
      %v3593 = vmul.f32 %v3397, %v3555
      %v3594 = vmul.f32 %v3402, %v3557
      %v3595 = vmul.f32 %v3405, %v3559
      %v3596 = vmul.f32 %v3410, %v3561
      %v3597 = vmul.f32 %v3413, %v3563
      %v3598 = vmul.f32 %v3418, %v3565
      %v3599 = vmul.f32 %v3421, %v3567
      %v3600 = vmul.f32 %v3426, %v3569
      %v3601 = vmul.f32 %v3429, %v3571
      %v3602 = vmul.f32 %v3434, %v3573
      %v3603 = vmul.f32 %v3437, %v3575
      %v3604 = vmul.f32 %v3442, %v3577
      %v3605 = vmul.f32 %v3445, %v3579
      %v3606 = vmul.f32 %v3450, %v3581
      %v3607 = vmul.f32 %v3453, %v3583
      %v3608 = vmul.f32 %v3458, %v3585
      %v3609 = vmul.f32 %v3461, %v3587
      %v3610 = vmul.f32 %v3466, %v3589
      %v3611 = vmul.f32 %v3469, %v3591
      %v3612 = vld [vmem:[#allocation3] sm:$0x1]
      %v3613 = vsel %vm1056, 0, %v3612
      %3614 = vst [vmem:[#allocation3] sm:$0x1] %v3613
      %v3615 = vld [vmem:[#allocation3 + $0xc] sm:$0x1]
      %v3616 = vsel %vm1056, 0, %v3615
      %3617 = vst [vmem:[#allocation3 + $0xc] sm:$0x1] %v3616
      %v3618 = vld [vmem:[#allocation3 + $0x18] sm:$0x1]
      %v3619 = vsel %vm1056, 0, %v3618
      %3620 = vst [vmem:[#allocation3 + $0x18] sm:$0x1] %v3619
      %v3621 = vld [vmem:[#allocation3 + $0x24] sm:$0x1]
      %v3622 = vsel %vm1056, 0, %v3621
      %3623 = vst [vmem:[#allocation3 + $0x24] sm:$0x1] %v3622
      %v3624 = vld [vmem:[#allocation3 + $0x30] sm:$0x1]
      %v3625 = vsel %vm1056, 0, %v3624
      %3626 = vst [vmem:[#allocation3 + $0x30] sm:$0x1] %v3625
      %v3627 = vld [vmem:[#allocation3 + $0x3c] sm:$0x1]
      %v3628 = vsel %vm1056, 0, %v3627
      %3629 = vst [vmem:[#allocation3 + $0x3c] sm:$0x1] %v3628
      %v3630 = vld [vmem:[#allocation3 + $0x48] sm:$0x1]
      %v3631 = vsel %vm1056, 0, %v3630
      %3632 = vst [vmem:[#allocation3 + $0x48] sm:$0x1] %v3631
      %v3633 = vld [vmem:[#allocation3 + $0x54] sm:$0x1]
      %v3634 = vsel %vm1056, 0, %v3633
      %3635 = vst [vmem:[#allocation3 + $0x54] sm:$0x1] %v3634
      %v3636 = vld [vmem:[#allocation3 + $0x60] sm:$0x1]
      %v3637 = vsel %vm1056, 0, %v3636
      %3638 = vst [vmem:[#allocation3 + $0x60] sm:$0x1] %v3637
      %v3639 = vld [vmem:[#allocation3 + $0x6c] sm:$0x1]
      %v3640 = vsel %vm1056, 0, %v3639
      %3641 = vst [vmem:[#allocation3 + $0x6c] sm:$0x1] %v3640
      %v3642 = vld [vmem:[#allocation3 + $0x8] sm:$0x1]
      %v3643 = vsel %vm1094, 0, %v3642
      %3644 = vst [vmem:[#allocation3 + $0x8] sm:$0x1] %v3643
      %v3645 = vld [vmem:[#allocation3 + $0x14] sm:$0x1]
      %v3646 = vsel %vm1094, 0, %v3645
      %3647 = vst [vmem:[#allocation3 + $0x14] sm:$0x1] %v3646
      %v3648 = vld [vmem:[#allocation3 + $0x20] sm:$0x1]
      %v3649 = vsel %vm1094, 0, %v3648
      %3650 = vst [vmem:[#allocation3 + $0x20] sm:$0x1] %v3649
      %v3651 = vld [vmem:[#allocation3 + $0x2c] sm:$0x1]
      %v3652 = vsel %vm1094, 0, %v3651
      %3653 = vst [vmem:[#allocation3 + $0x2c] sm:$0x1] %v3652
      %v3654 = vld [vmem:[#allocation3 + $0x38] sm:$0x1]
      %v3655 = vsel %vm1094, 0, %v3654
      %3656 = vst [vmem:[#allocation3 + $0x38] sm:$0x1] %v3655
      %v3657 = vld [vmem:[#allocation3 + $0x44] sm:$0x1]
      %v3658 = vsel %vm1094, 0, %v3657
      %3659 = vst [vmem:[#allocation3 + $0x44] sm:$0x1] %v3658
      %v3660 = vld [vmem:[#allocation3 + $0x50] sm:$0x1]
      %v3661 = vsel %vm1094, 0, %v3660
      %3662 = vst [vmem:[#allocation3 + $0x50] sm:$0x1] %v3661
      %v3663 = vld [vmem:[#allocation3 + $0x5c] sm:$0x1]
      %v3664 = vsel %vm1094, 0, %v3663
      %3665 = vst [vmem:[#allocation3 + $0x5c] sm:$0x1] %v3664
      %v3666 = vld [vmem:[#allocation3 + $0x68] sm:$0x1]
      %v3667 = vsel %vm1094, 0, %v3666
      %3668 = vst [vmem:[#allocation3 + $0x68] sm:$0x1] %v3667
      %v3669 = vld [vmem:[#allocation3 + $0x74] sm:$0x1]
      %v3670 = vsel %vm1094, 0, %v3669
      %3671 = vst [vmem:[#allocation3 + $0x74] sm:$0x1] %v3670
      %v3672 = vsel %vm948, %v3592, 0.0
      %v3673 = vsel %vm948, %v3593, 0.0
      %v3674 = vpack.c.bf16 %v3673, %v3672
      %v3676 = vunpack.c.l.b16 %v3674
      %v3677 = vunpack.c.h.b16 %v3674
      %v3678 = vpack.c.b16 %v3676, %v3676
      %v3679 = vpack.c.b16 %v3677, %v3677
      %v3681 = vshrl.u32 %v3678, 16
      %v3683 = vrot.slane %v3681, 7
      %v3684 = vshll.u32 %v3678, 16
      %v3686 = vor.u32 %v3683, %v3684
      %v3687 = vrot.slane %v3683, 4
      %v3689 = vshrl.u32 %v3679, 16
      %v3691 = vrot.slane %v3689, 7
      %v3692 = vshll.u32 %v3679, 16
      %v3694 = vor.u32 %v3691, %v3692
      %v3695 = vsel %vm1144, %v3687, %v3694
      %v3696 = vrot.slane %v3691, 4
      %v3700 = vld [vmem:[#allocation3] sm:$0xf]
      %v3701 = vsel %vm1186, %v3686, %v3700
      %3702 = vst [vmem:[#allocation3] sm:$0xf] %v3701
      %3703 = vst.msk [vmem:[#allocation3 + $0x4] sm:$0xf] %vm1190, %v3695
      %v3704 = vld [vmem:[#allocation3 + $0x8] sm:$0x1]
      %v3705 = vsel %vm1056, %v3696, %v3704
      %3706 = vst [vmem:[#allocation3 + $0x8] sm:$0x1] %v3705
      %v3707 = vpack.c.bf16 %v3595, %v3594
      %v3708 = vpack.c.bf16 %v3597, %v3596
      %v3709 = vpack.c.bf16 %v3599, %v3598
      %v3710 = vpack.c.bf16 %v3601, %v3600
      %v3711 = vpack.c.bf16 %v3603, %v3602
      %v3712 = vpack.c.bf16 %v3605, %v3604
      %v3713 = vpack.c.bf16 %v3607, %v3606
      %v3714 = vpack.c.bf16 %v3609, %v3608
      %v3723 = vunpack.c.l.b16 %v3707
      %v3724 = vunpack.c.h.b16 %v3707
      %v3725 = vunpack.c.l.b16 %v3708
      %v3726 = vunpack.c.h.b16 %v3708
      %v3727 = vunpack.c.l.b16 %v3709
      %v3728 = vunpack.c.h.b16 %v3709
      %v3729 = vunpack.c.l.b16 %v3710
      %v3730 = vunpack.c.h.b16 %v3710
      %v3731 = vunpack.c.l.b16 %v3711
      %v3732 = vunpack.c.h.b16 %v3711
      %v3733 = vunpack.c.l.b16 %v3712
      %v3734 = vunpack.c.h.b16 %v3712
      %v3735 = vunpack.c.l.b16 %v3713
      %v3736 = vunpack.c.h.b16 %v3713
      %v3737 = vunpack.c.l.b16 %v3714
      %v3738 = vunpack.c.h.b16 %v3714
      %v3739 = vpack.c.b16 %v3723, %v3723
      %v3740 = vpack.c.b16 %v3724, %v3724
      %v3741 = vpack.c.b16 %v3725, %v3725
      %v3742 = vpack.c.b16 %v3726, %v3726
      %v3743 = vpack.c.b16 %v3727, %v3727
      %v3744 = vpack.c.b16 %v3728, %v3728
      %v3745 = vpack.c.b16 %v3729, %v3729
      %v3746 = vpack.c.b16 %v3730, %v3730
      %v3747 = vpack.c.b16 %v3731, %v3731
      %v3748 = vpack.c.b16 %v3732, %v3732
      %v3749 = vpack.c.b16 %v3733, %v3733
      %v3750 = vpack.c.b16 %v3734, %v3734
      %v3751 = vpack.c.b16 %v3735, %v3735
      %v3752 = vpack.c.b16 %v3736, %v3736
      %v3753 = vpack.c.b16 %v3737, %v3737
      %v3754 = vpack.c.b16 %v3738, %v3738
      %v3756 = vshrl.u32 %v3739, 16
      %v3758 = vrot.slane %v3756, 7
      %v3759 = vshll.u32 %v3739, 16
      %v3761 = vor.u32 %v3758, %v3759
      %v3762 = vrot.slane %v3758, 4
      %v3764 = vshrl.u32 %v3740, 16
      %v3766 = vrot.slane %v3764, 7
      %v3767 = vshll.u32 %v3740, 16
      %v3769 = vor.u32 %v3766, %v3767
      %v3770 = vsel %vm1144, %v3762, %v3769
      %v3771 = vrot.slane %v3766, 4
      %v3773 = vshrl.u32 %v3741, 16
      %v3775 = vrot.slane %v3773, 7
      %v3776 = vshll.u32 %v3741, 16
      %v3778 = vor.u32 %v3775, %v3776
      %v3779 = vrot.slane %v3775, 4
      %v3781 = vshrl.u32 %v3742, 16
      %v3783 = vrot.slane %v3781, 7
      %v3784 = vshll.u32 %v3742, 16
      %v3786 = vor.u32 %v3783, %v3784
      %v3787 = vsel %vm1144, %v3779, %v3786
      %v3788 = vrot.slane %v3783, 4
      %v3790 = vshrl.u32 %v3743, 16
      %v3792 = vrot.slane %v3790, 7
      %v3793 = vshll.u32 %v3743, 16
      %v3795 = vor.u32 %v3792, %v3793
      %v3796 = vrot.slane %v3792, 4
      %v3798 = vshrl.u32 %v3744, 16
      %v3800 = vrot.slane %v3798, 7
      %v3801 = vshll.u32 %v3744, 16
      %v3803 = vor.u32 %v3800, %v3801
      %v3804 = vsel %vm1144, %v3796, %v3803
      %v3805 = vrot.slane %v3800, 4
      %v3807 = vshrl.u32 %v3745, 16
      %v3809 = vrot.slane %v3807, 7
      %v3810 = vshll.u32 %v3745, 16
      %v3812 = vor.u32 %v3809, %v3810
      %v3813 = vrot.slane %v3809, 4
      %v3815 = vshrl.u32 %v3746, 16
      %v3817 = vrot.slane %v3815, 7
      %v3818 = vshll.u32 %v3746, 16
      %v3820 = vor.u32 %v3817, %v3818
      %v3821 = vsel %vm1144, %v3813, %v3820
      %v3822 = vrot.slane %v3817, 4
      %v3824 = vshrl.u32 %v3747, 16
      %v3826 = vrot.slane %v3824, 7
      %v3827 = vshll.u32 %v3747, 16
      %v3829 = vor.u32 %v3826, %v3827
      %v3830 = vrot.slane %v3826, 4
      %v3832 = vshrl.u32 %v3748, 16
      %v3834 = vrot.slane %v3832, 7
      %v3835 = vshll.u32 %v3748, 16
      %v3837 = vor.u32 %v3834, %v3835
      %v3838 = vsel %vm1144, %v3830, %v3837
      %v3839 = vrot.slane %v3834, 4
      %v3841 = vshrl.u32 %v3749, 16
      %v3843 = vrot.slane %v3841, 7
      %v3844 = vshll.u32 %v3749, 16
      %v3846 = vor.u32 %v3843, %v3844
      %v3847 = vrot.slane %v3843, 4
      %v3849 = vshrl.u32 %v3750, 16
      %v3851 = vrot.slane %v3849, 7
      %v3852 = vshll.u32 %v3750, 16
      %v3854 = vor.u32 %v3851, %v3852
      %v3855 = vsel %vm1144, %v3847, %v3854
      %v3856 = vrot.slane %v3851, 4
      %v3858 = vshrl.u32 %v3751, 16
      %v3860 = vrot.slane %v3858, 7
      %v3861 = vshll.u32 %v3751, 16
      %v3863 = vor.u32 %v3860, %v3861
      %v3864 = vrot.slane %v3860, 4
      %v3866 = vshrl.u32 %v3752, 16
      %v3868 = vrot.slane %v3866, 7
      %v3869 = vshll.u32 %v3752, 16
      %v3871 = vor.u32 %v3868, %v3869
      %v3872 = vsel %vm1144, %v3864, %v3871
      %v3873 = vrot.slane %v3868, 4
      %v3875 = vshrl.u32 %v3753, 16
      %v3877 = vrot.slane %v3875, 7
      %v3878 = vshll.u32 %v3753, 16
      %v3880 = vor.u32 %v3877, %v3878
      %v3881 = vrot.slane %v3877, 4
      %v3883 = vshrl.u32 %v3754, 16
      %v3885 = vrot.slane %v3883, 7
      %v3886 = vshll.u32 %v3754, 16
      %v3888 = vor.u32 %v3885, %v3886
      %v3889 = vsel %vm1144, %v3881, %v3888
      %v3890 = vrot.slane %v3885, 4
      %s3915 = scalar_lea.vmem [#allocation3], 12
      %v3916 = vld [vmem:[%s3915] sm:$0xf]
      %v3917 = vsel %vm1186, %v3761, %v3916
      %3918 = vst [vmem:[%s3915] sm:$0xf] %v3917
      %3919 = vst.msk [vmem:[%s3915 + $0x4] sm:$0xf] %vm1190, %v3770
      %v3920 = vld [vmem:[%s3915 + $0x8] sm:$0x1]
      %v3921 = vsel %vm1056, %v3771, %v3920
      %3922 = vst [vmem:[%s3915 + $0x8] sm:$0x1] %v3921
      %v3923 = vld [vmem:[%s3915 + $0xc] sm:$0xf]
      %v3924 = vsel %vm1186, %v3778, %v3923
      %3925 = vst [vmem:[%s3915 + $0xc] sm:$0xf] %v3924
      %3926 = vst.msk [vmem:[%s3915 + $0x10] sm:$0xf] %vm1190, %v3787
      %v3927 = vld [vmem:[%s3915 + $0x14] sm:$0x1]
      %v3928 = vsel %vm1056, %v3788, %v3927
      %3929 = vst [vmem:[%s3915 + $0x14] sm:$0x1] %v3928
      %v3930 = vld [vmem:[%s3915 + $0x18] sm:$0xf]
      %v3931 = vsel %vm1186, %v3795, %v3930
      %3932 = vst [vmem:[%s3915 + $0x18] sm:$0xf] %v3931
      %3933 = vst.msk [vmem:[%s3915 + $0x1c] sm:$0xf] %vm1190, %v3804
      %v3934 = vld [vmem:[%s3915 + $0x20] sm:$0x1]
      %v3935 = vsel %vm1056, %v3805, %v3934
      %3936 = vst [vmem:[%s3915 + $0x20] sm:$0x1] %v3935
      %v3937 = vld [vmem:[%s3915 + $0x24] sm:$0xf]
      %v3938 = vsel %vm1186, %v3812, %v3937
      %3939 = vst [vmem:[%s3915 + $0x24] sm:$0xf] %v3938
      %3940 = vst.msk [vmem:[%s3915 + $0x28] sm:$0xf] %vm1190, %v3821
      %v3941 = vld [vmem:[%s3915 + $0x2c] sm:$0x1]
      %v3942 = vsel %vm1056, %v3822, %v3941
      %3943 = vst [vmem:[%s3915 + $0x2c] sm:$0x1] %v3942
      %v3944 = vld [vmem:[%s3915 + $0x30] sm:$0xf]
      %v3945 = vsel %vm1186, %v3829, %v3944
      %3946 = vst [vmem:[%s3915 + $0x30] sm:$0xf] %v3945
      %3947 = vst.msk [vmem:[%s3915 + $0x34] sm:$0xf] %vm1190, %v3838
      %v3948 = vld [vmem:[%s3915 + $0x38] sm:$0x1]
      %v3949 = vsel %vm1056, %v3839, %v3948
      %3950 = vst [vmem:[%s3915 + $0x38] sm:$0x1] %v3949
      %v3951 = vld [vmem:[%s3915 + $0x3c] sm:$0xf]
      %v3952 = vsel %vm1186, %v3846, %v3951
      %3953 = vst [vmem:[%s3915 + $0x3c] sm:$0xf] %v3952
      %3954 = vst.msk [vmem:[%s3915 + $0x40] sm:$0xf] %vm1190, %v3855
      %v3955 = vld [vmem:[%s3915 + $0x44] sm:$0x1]
      %v3956 = vsel %vm1056, %v3856, %v3955
      %3957 = vst [vmem:[%s3915 + $0x44] sm:$0x1] %v3956
      %v3958 = vld [vmem:[%s3915 + $0x48] sm:$0xf]
      %v3959 = vsel %vm1186, %v3863, %v3958
      %3960 = vst [vmem:[%s3915 + $0x48] sm:$0xf] %v3959
      %3961 = vst.msk [vmem:[%s3915 + $0x4c] sm:$0xf] %vm1190, %v3872
      %v3962 = vld [vmem:[%s3915 + $0x50] sm:$0x1]
      %v3963 = vsel %vm1056, %v3873, %v3962
      %3964 = vst [vmem:[%s3915 + $0x50] sm:$0x1] %v3963
      %v3965 = vld [vmem:[%s3915 + $0x54] sm:$0xf]
      %v3966 = vsel %vm1186, %v3880, %v3965
      %3967 = vst [vmem:[%s3915 + $0x54] sm:$0xf] %v3966
      %3968 = vst.msk [vmem:[%s3915 + $0x58] sm:$0xf] %vm1190, %v3889
      %v3969 = vld [vmem:[%s3915 + $0x5c] sm:$0x1]
      %v3970 = vsel %vm1056, %v3890, %v3969
      %3971 = vst [vmem:[%s3915 + $0x5c] sm:$0x1] %v3970
      %v3972 = vsel %vm1049, %v3610, 0.0
      %v3973 = vsel %vm1049, %v3611, 0.0
      %v3974 = vpack.c.bf16 %v3973, %v3972
      %v3976 = vunpack.c.l.b16 %v3974
      %v3977 = vunpack.c.h.b16 %v3974
      %v3978 = vpack.c.b16 %v3976, %v3976
      %v3979 = vpack.c.b16 %v3977, %v3977
      %v3981 = vshrl.u32 %v3978, 16
      %v3983 = vrot.slane %v3981, 7
      %v3984 = vshll.u32 %v3978, 16
      %v3986 = vor.u32 %v3983, %v3984
      %v3987 = vrot.slane %v3983, 4
      %v3989 = vshrl.u32 %v3979, 16
      %v3991 = vrot.slane %v3989, 7
      %v3992 = vshll.u32 %v3979, 16
      %v3994 = vor.u32 %v3991, %v3992
      %v3995 = vsel %vm1144, %v3987, %v3994
      %v3996 = vrot.slane %v3991, 4
      %s4000 = scalar_lea.vmem [#allocation3], 108
      %v4001 = vld [vmem:[%s4000] sm:$0xf]
      %v4002 = vsel %vm1186, %v3986, %v4001
      %4003 = vst [vmem:[%s4000] sm:$0xf] %v4002
      %4004 = vst.msk [vmem:[%s4000 + $0x4] sm:$0xf] %vm1190, %v3995
      %v4005 = vld [vmem:[%s4000 + $0x8] sm:$0x1]
      %v4006 = vsel %vm1056, %v3996, %v4005
      %4007 = vst [vmem:[%s4000 + $0x8] sm:$0x1] %v4006
      %v4008 = vld [vmem:[#allocation3] sm:$0xf]
      %v4009 = vld [vmem:[#allocation3 + $0x4] sm:$0xf]
      %v4010 = vld [vmem:[#allocation3 + $0xc] sm:$0xf]
      %v4011 = vld [vmem:[#allocation3 + $0x10] sm:$0xf]
      %v4012 = vld [vmem:[#allocation3 + $0x18] sm:$0xf]
      %v4013 = vld [vmem:[#allocation3 + $0x1c] sm:$0xf]
      %v4014 = vld [vmem:[#allocation3 + $0x24] sm:$0xf]
      %v4015 = vld [vmem:[#allocation3 + $0x28] sm:$0xf]
      %v4016 = vld [vmem:[#allocation3 + $0x30] sm:$0xf]
      %v4017 = vld [vmem:[#allocation3 + $0x34] sm:$0xf]
      %v4018 = vld [vmem:[#allocation3 + $0x3c] sm:$0xf]
      %v4019 = vld [vmem:[#allocation3 + $0x40] sm:$0xf]
      %v4020 = vld [vmem:[#allocation3 + $0x48] sm:$0xf]
      %v4021 = vld [vmem:[#allocation3 + $0x4c] sm:$0xf]
      %v4022 = vld [vmem:[#allocation3 + $0x54] sm:$0xf]
      %v4023 = vld [vmem:[#allocation3 + $0x58] sm:$0xf]
      %v4024 = vld [vmem:[#allocation3 + $0x8] sm:$0x1]
      %v4025 = vld [vmem:[#allocation3 + $0x14] sm:$0x1]
      %v4026 = vld [vmem:[#allocation3 + $0x20] sm:$0x1]
      %v4027 = vld [vmem:[#allocation3 + $0x2c] sm:$0x1]
      %v4028 = vld [vmem:[#allocation3 + $0x38] sm:$0x1]
      %v4029 = vld [vmem:[#allocation3 + $0x44] sm:$0x1]
      %v4030 = vld [vmem:[#allocation3 + $0x50] sm:$0x1]
      %v4031 = vld [vmem:[#allocation3 + $0x5c] sm:$0x1]
      %v4033 = vshrl.u32 %v4008, 16
      %v4035 = vrot.slane %v4033, 4
      %v4036 = vshll.u32 %v4008, 16
      %v4038 = vrot.slane %v4036, 5
      %v4039 = vor.u32 %v4035, %v4038
      %v4040 = vrot.slane %v4039, 4
      %v4042 = vshll.u32 %v4009, 16
      %v4044 = vrot.slane %v4042, 5
      %v4045 = vsel %vm1566, %v4040, %v4044
      %v4046 = vshrl.u32 %v4009, 16
      %v4048 = vrot.slane %v4046, 4
      %v4049 = vor.u32 %v4048, %v4044
      %v4050 = vrot.slane %v4049, 4
      %v4052 = vshll.u32 %v4024, 16
      %v4054 = vrot.slane %v4052, 5
      %v4055 = vsel %vm1566, %v4050, %v4054
      %v4057 = vshrl.u32 %v4010, 16
      %v4059 = vrot.slane %v4057, 4
      %v4060 = vshll.u32 %v4010, 16
      %v4062 = vrot.slane %v4060, 5
      %v4063 = vor.u32 %v4059, %v4062
      %v4064 = vrot.slane %v4063, 4
      %v4066 = vshll.u32 %v4011, 16
      %v4068 = vrot.slane %v4066, 5
      %v4069 = vsel %vm1566, %v4064, %v4068
      %v4070 = vshrl.u32 %v4011, 16
      %v4072 = vrot.slane %v4070, 4
      %v4073 = vor.u32 %v4072, %v4068
      %v4074 = vrot.slane %v4073, 4
      %v4076 = vshll.u32 %v4025, 16
      %v4078 = vrot.slane %v4076, 5
      %v4079 = vsel %vm1566, %v4074, %v4078
      %v4081 = vshrl.u32 %v4012, 16
      %v4083 = vrot.slane %v4081, 4
      %v4084 = vshll.u32 %v4012, 16
      %v4086 = vrot.slane %v4084, 5
      %v4087 = vor.u32 %v4083, %v4086
      %v4088 = vrot.slane %v4087, 4
      %v4090 = vshll.u32 %v4013, 16
      %v4092 = vrot.slane %v4090, 5
      %v4093 = vsel %vm1566, %v4088, %v4092
      %v4094 = vshrl.u32 %v4013, 16
      %v4096 = vrot.slane %v4094, 4
      %v4097 = vor.u32 %v4096, %v4092
      %v4098 = vrot.slane %v4097, 4
      %v4100 = vshll.u32 %v4026, 16
      %v4102 = vrot.slane %v4100, 5
      %v4103 = vsel %vm1566, %v4098, %v4102
      %v4105 = vshrl.u32 %v4014, 16
      %v4107 = vrot.slane %v4105, 4
      %v4108 = vshll.u32 %v4014, 16
      %v4110 = vrot.slane %v4108, 5
      %v4111 = vor.u32 %v4107, %v4110
      %v4112 = vrot.slane %v4111, 4
      %v4114 = vshll.u32 %v4015, 16
      %v4116 = vrot.slane %v4114, 5
      %v4117 = vsel %vm1566, %v4112, %v4116
      %v4118 = vshrl.u32 %v4015, 16
      %v4120 = vrot.slane %v4118, 4
      %v4121 = vor.u32 %v4120, %v4116
      %v4122 = vrot.slane %v4121, 4
      %v4124 = vshll.u32 %v4027, 16
      %v4126 = vrot.slane %v4124, 5
      %v4127 = vsel %vm1566, %v4122, %v4126
      %v4129 = vshrl.u32 %v4016, 16
      %v4131 = vrot.slane %v4129, 4
      %v4132 = vshll.u32 %v4016, 16
      %v4134 = vrot.slane %v4132, 5
      %v4135 = vor.u32 %v4131, %v4134
      %v4136 = vrot.slane %v4135, 4
      %v4138 = vshll.u32 %v4017, 16
      %v4140 = vrot.slane %v4138, 5
      %v4141 = vsel %vm1566, %v4136, %v4140
      %v4142 = vshrl.u32 %v4017, 16
      %v4144 = vrot.slane %v4142, 4
      %v4145 = vor.u32 %v4144, %v4140
      %v4146 = vrot.slane %v4145, 4
      %v4148 = vshll.u32 %v4028, 16
      %v4150 = vrot.slane %v4148, 5
      %v4151 = vsel %vm1566, %v4146, %v4150
      %v4153 = vshrl.u32 %v4018, 16
      %v4155 = vrot.slane %v4153, 4
      %v4156 = vshll.u32 %v4018, 16
      %v4158 = vrot.slane %v4156, 5
      %v4159 = vor.u32 %v4155, %v4158
      %v4160 = vrot.slane %v4159, 4
      %v4162 = vshll.u32 %v4019, 16
      %v4164 = vrot.slane %v4162, 5
      %v4165 = vsel %vm1566, %v4160, %v4164
      %v4166 = vshrl.u32 %v4019, 16
      %v4168 = vrot.slane %v4166, 4
      %v4169 = vor.u32 %v4168, %v4164
      %v4170 = vrot.slane %v4169, 4
      %v4172 = vshll.u32 %v4029, 16
      %v4174 = vrot.slane %v4172, 5
      %v4175 = vsel %vm1566, %v4170, %v4174
      %v4177 = vshrl.u32 %v4020, 16
      %v4179 = vrot.slane %v4177, 4
      %v4180 = vshll.u32 %v4020, 16
      %v4182 = vrot.slane %v4180, 5
      %v4183 = vor.u32 %v4179, %v4182
      %v4184 = vrot.slane %v4183, 4
      %v4186 = vshll.u32 %v4021, 16
      %v4188 = vrot.slane %v4186, 5
      %v4189 = vsel %vm1566, %v4184, %v4188
      %v4190 = vshrl.u32 %v4021, 16
      %v4192 = vrot.slane %v4190, 4
      %v4193 = vor.u32 %v4192, %v4188
      %v4194 = vrot.slane %v4193, 4
      %v4196 = vshll.u32 %v4030, 16
      %v4198 = vrot.slane %v4196, 5
      %v4199 = vsel %vm1566, %v4194, %v4198
      %v4201 = vshrl.u32 %v4022, 16
      %v4203 = vrot.slane %v4201, 4
      %v4204 = vshll.u32 %v4022, 16
      %v4206 = vrot.slane %v4204, 5
      %v4207 = vor.u32 %v4203, %v4206
      %v4208 = vrot.slane %v4207, 4
      %v4210 = vshll.u32 %v4023, 16
      %v4212 = vrot.slane %v4210, 5
      %v4213 = vsel %vm1566, %v4208, %v4212
      %v4214 = vshrl.u32 %v4023, 16
      %v4216 = vrot.slane %v4214, 4
      %v4217 = vor.u32 %v4216, %v4212
      %v4218 = vrot.slane %v4217, 4
      %v4220 = vshll.u32 %v4031, 16
      %v4222 = vrot.slane %v4220, 5
      %v4223 = vsel %vm1566, %v4218, %v4222
      %v4224 = vld [vmem:[#allocation3] sm:$0xe]
      %v4225 = vld [vmem:[#allocation3 + $0xc] sm:$0xe]
      %v4226 = vld [vmem:[#allocation3 + $0x18] sm:$0xe]
      %v4227 = vld [vmem:[#allocation3 + $0x24] sm:$0xe]
      %v4228 = vld [vmem:[#allocation3 + $0x30] sm:$0xe]
      %v4229 = vld [vmem:[#allocation3 + $0x3c] sm:$0xe]
      %v4230 = vld [vmem:[#allocation3 + $0x48] sm:$0xe]
      %v4231 = vld [vmem:[#allocation3 + $0x54] sm:$0xe]
      %v4256 = vrot.slane %v4224, 5
      %v4257 = vrot.slane %v4256, 4
      %v4258 = vrot.slane %v4009, 5
      %v4259 = vsel %vm1849, %v4257, %v4258
      %v4260 = vrot.slane %v4258, 4
      %v4261 = vrot.slane %v4024, 5
      %v4262 = vsel %vm1849, %v4260, %v4261
      %v4263 = vrot.slane %v4225, 5
      %v4264 = vrot.slane %v4263, 4
      %v4265 = vrot.slane %v4011, 5
      %v4266 = vsel %vm1849, %v4264, %v4265
      %v4267 = vrot.slane %v4265, 4
      %v4268 = vrot.slane %v4025, 5
      %v4269 = vsel %vm1849, %v4267, %v4268
      %v4270 = vrot.slane %v4226, 5
      %v4271 = vrot.slane %v4270, 4
      %v4272 = vrot.slane %v4013, 5
      %v4273 = vsel %vm1849, %v4271, %v4272
      %v4274 = vrot.slane %v4272, 4
      %v4275 = vrot.slane %v4026, 5
      %v4276 = vsel %vm1849, %v4274, %v4275
      %v4277 = vrot.slane %v4227, 5
      %v4278 = vrot.slane %v4277, 4
      %v4279 = vrot.slane %v4015, 5
      %v4280 = vsel %vm1849, %v4278, %v4279
      %v4281 = vrot.slane %v4279, 4
      %v4282 = vrot.slane %v4027, 5
      %v4283 = vsel %vm1849, %v4281, %v4282
      %v4284 = vrot.slane %v4228, 5
      %v4285 = vrot.slane %v4284, 4
      %v4286 = vrot.slane %v4017, 5
      %v4287 = vsel %vm1849, %v4285, %v4286
      %v4288 = vrot.slane %v4286, 4
      %v4289 = vrot.slane %v4028, 5
      %v4290 = vsel %vm1849, %v4288, %v4289
      %v4291 = vrot.slane %v4229, 5
      %v4292 = vrot.slane %v4291, 4
      %v4293 = vrot.slane %v4019, 5
      %v4294 = vsel %vm1849, %v4292, %v4293
      %v4295 = vrot.slane %v4293, 4
      %v4296 = vrot.slane %v4029, 5
      %v4297 = vsel %vm1849, %v4295, %v4296
      %v4298 = vrot.slane %v4230, 5
      %v4299 = vrot.slane %v4298, 4
      %v4300 = vrot.slane %v4021, 5
      %v4301 = vsel %vm1849, %v4299, %v4300
      %v4302 = vrot.slane %v4300, 4
      %v4303 = vrot.slane %v4030, 5
      %v4304 = vsel %vm1849, %v4302, %v4303
      %v4305 = vrot.slane %v4231, 5
      %v4306 = vrot.slane %v4305, 4
      %v4307 = vrot.slane %v4023, 5
      %v4308 = vsel %vm1849, %v4306, %v4307
      %v4309 = vrot.slane %v4307, 4
      %v4310 = vrot.slane %v4031, 5
      %v4311 = vsel %vm1849, %v4309, %v4310
      %v4312 = vld [vmem:[%s3915] sm:$0xf]
      %v4313 = vld [vmem:[%s3915 + $0x4] sm:$0xf]
      %v4314 = vld [vmem:[%s3915 + $0xc] sm:$0xf]
      %v4315 = vld [vmem:[%s3915 + $0x10] sm:$0xf]
      %v4316 = vld [vmem:[%s3915 + $0x18] sm:$0xf]
      %v4317 = vld [vmem:[%s3915 + $0x1c] sm:$0xf]
      %v4318 = vld [vmem:[%s3915 + $0x24] sm:$0xf]
      %v4319 = vld [vmem:[%s3915 + $0x28] sm:$0xf]
      %v4320 = vld [vmem:[%s3915 + $0x30] sm:$0xf]
      %v4321 = vld [vmem:[%s3915 + $0x34] sm:$0xf]
      %v4322 = vld [vmem:[%s3915 + $0x3c] sm:$0xf]
      %v4323 = vld [vmem:[%s3915 + $0x40] sm:$0xf]
      %v4324 = vld [vmem:[%s3915 + $0x48] sm:$0xf]
      %v4325 = vld [vmem:[%s3915 + $0x4c] sm:$0xf]
      %v4326 = vld [vmem:[%s3915 + $0x54] sm:$0xf]
      %v4327 = vld [vmem:[%s3915 + $0x58] sm:$0xf]
      %v4328 = vld [vmem:[%s3915 + $0x8] sm:$0x1]
      %v4329 = vld [vmem:[%s3915 + $0x14] sm:$0x1]
      %v4330 = vld [vmem:[%s3915 + $0x20] sm:$0x1]
      %v4331 = vld [vmem:[%s3915 + $0x2c] sm:$0x1]
      %v4332 = vld [vmem:[%s3915 + $0x38] sm:$0x1]
      %v4333 = vld [vmem:[%s3915 + $0x44] sm:$0x1]
      %v4334 = vld [vmem:[%s3915 + $0x50] sm:$0x1]
      %v4335 = vld [vmem:[%s3915 + $0x5c] sm:$0x1]
      %v4337 = vshrl.u32 %v4312, 16
      %v4339 = vrot.slane %v4337, 4
      %v4340 = vshll.u32 %v4312, 16
      %v4342 = vrot.slane %v4340, 5
      %v4343 = vor.u32 %v4339, %v4342
      %v4344 = vrot.slane %v4343, 4
      %v4346 = vshll.u32 %v4313, 16
      %v4348 = vrot.slane %v4346, 5
      %v4349 = vsel %vm1566, %v4344, %v4348
      %v4350 = vshrl.u32 %v4313, 16
      %v4352 = vrot.slane %v4350, 4
      %v4353 = vor.u32 %v4352, %v4348
      %v4354 = vrot.slane %v4353, 4
      %v4356 = vshll.u32 %v4328, 16
      %v4358 = vrot.slane %v4356, 5
      %v4359 = vsel %vm1566, %v4354, %v4358
      %v4361 = vshrl.u32 %v4314, 16
      %v4363 = vrot.slane %v4361, 4
      %v4364 = vshll.u32 %v4314, 16
      %v4366 = vrot.slane %v4364, 5
      %v4367 = vor.u32 %v4363, %v4366
      %v4368 = vrot.slane %v4367, 4
      %v4370 = vshll.u32 %v4315, 16
      %v4372 = vrot.slane %v4370, 5
      %v4373 = vsel %vm1566, %v4368, %v4372
      %v4374 = vshrl.u32 %v4315, 16
      %v4376 = vrot.slane %v4374, 4
      %v4377 = vor.u32 %v4376, %v4372
      %v4378 = vrot.slane %v4377, 4
      %v4380 = vshll.u32 %v4329, 16
      %v4382 = vrot.slane %v4380, 5
      %v4383 = vsel %vm1566, %v4378, %v4382
      %v4385 = vshrl.u32 %v4316, 16
      %v4387 = vrot.slane %v4385, 4
      %v4388 = vshll.u32 %v4316, 16
      %v4390 = vrot.slane %v4388, 5
      %v4391 = vor.u32 %v4387, %v4390
      %v4392 = vrot.slane %v4391, 4
      %v4394 = vshll.u32 %v4317, 16
      %v4396 = vrot.slane %v4394, 5
      %v4397 = vsel %vm1566, %v4392, %v4396
      %v4398 = vshrl.u32 %v4317, 16
      %v4400 = vrot.slane %v4398, 4
      %v4401 = vor.u32 %v4400, %v4396
      %v4402 = vrot.slane %v4401, 4
      %v4404 = vshll.u32 %v4330, 16
      %v4406 = vrot.slane %v4404, 5
      %v4407 = vsel %vm1566, %v4402, %v4406
      %v4409 = vshrl.u32 %v4318, 16
      %v4411 = vrot.slane %v4409, 4
      %v4412 = vshll.u32 %v4318, 16
      %v4414 = vrot.slane %v4412, 5
      %v4415 = vor.u32 %v4411, %v4414
      %v4416 = vrot.slane %v4415, 4
      %v4418 = vshll.u32 %v4319, 16
      %v4420 = vrot.slane %v4418, 5
      %v4421 = vsel %vm1566, %v4416, %v4420
      %v4422 = vshrl.u32 %v4319, 16
      %v4424 = vrot.slane %v4422, 4
      %v4425 = vor.u32 %v4424, %v4420
      %v4426 = vrot.slane %v4425, 4
      %v4428 = vshll.u32 %v4331, 16
      %v4430 = vrot.slane %v4428, 5
      %v4431 = vsel %vm1566, %v4426, %v4430
      %v4433 = vshrl.u32 %v4320, 16
      %v4435 = vrot.slane %v4433, 4
      %v4436 = vshll.u32 %v4320, 16
      %v4438 = vrot.slane %v4436, 5
      %v4439 = vor.u32 %v4435, %v4438
      %v4440 = vrot.slane %v4439, 4
      %v4442 = vshll.u32 %v4321, 16
      %v4444 = vrot.slane %v4442, 5
      %v4445 = vsel %vm1566, %v4440, %v4444
      %v4446 = vshrl.u32 %v4321, 16
      %v4448 = vrot.slane %v4446, 4
      %v4449 = vor.u32 %v4448, %v4444
      %v4450 = vrot.slane %v4449, 4
      %v4452 = vshll.u32 %v4332, 16
      %v4454 = vrot.slane %v4452, 5
      %v4455 = vsel %vm1566, %v4450, %v4454
      %v4457 = vshrl.u32 %v4322, 16
      %v4459 = vrot.slane %v4457, 4
      %v4460 = vshll.u32 %v4322, 16
      %v4462 = vrot.slane %v4460, 5
      %v4463 = vor.u32 %v4459, %v4462
      %v4464 = vrot.slane %v4463, 4
      %v4466 = vshll.u32 %v4323, 16
      %v4468 = vrot.slane %v4466, 5
      %v4469 = vsel %vm1566, %v4464, %v4468
      %v4470 = vshrl.u32 %v4323, 16
      %v4472 = vrot.slane %v4470, 4
      %v4473 = vor.u32 %v4472, %v4468
      %v4474 = vrot.slane %v4473, 4
      %v4476 = vshll.u32 %v4333, 16
      %v4478 = vrot.slane %v4476, 5
      %v4479 = vsel %vm1566, %v4474, %v4478
      %v4481 = vshrl.u32 %v4324, 16
      %v4483 = vrot.slane %v4481, 4
      %v4484 = vshll.u32 %v4324, 16
      %v4486 = vrot.slane %v4484, 5
      %v4487 = vor.u32 %v4483, %v4486
      %v4488 = vrot.slane %v4487, 4
      %v4490 = vshll.u32 %v4325, 16
      %v4492 = vrot.slane %v4490, 5
      %v4493 = vsel %vm1566, %v4488, %v4492
      %v4494 = vshrl.u32 %v4325, 16
      %v4496 = vrot.slane %v4494, 4
      %v4497 = vor.u32 %v4496, %v4492
      %v4498 = vrot.slane %v4497, 4
      %v4500 = vshll.u32 %v4334, 16
      %v4502 = vrot.slane %v4500, 5
      %v4503 = vsel %vm1566, %v4498, %v4502
      %v4505 = vshrl.u32 %v4326, 16
      %v4507 = vrot.slane %v4505, 4
      %v4508 = vshll.u32 %v4326, 16
      %v4510 = vrot.slane %v4508, 5
      %v4511 = vor.u32 %v4507, %v4510
      %v4512 = vrot.slane %v4511, 4
      %v4514 = vshll.u32 %v4327, 16
      %v4516 = vrot.slane %v4514, 5
      %v4517 = vsel %vm1566, %v4512, %v4516
      %v4518 = vshrl.u32 %v4327, 16
      %v4520 = vrot.slane %v4518, 4
      %v4521 = vor.u32 %v4520, %v4516
      %v4522 = vrot.slane %v4521, 4
      %v4524 = vshll.u32 %v4335, 16
      %v4526 = vrot.slane %v4524, 5
      %v4527 = vsel %vm1566, %v4522, %v4526
      %v4528 = vld [vmem:[%s3915] sm:$0xe]
      %v4529 = vld [vmem:[%s3915 + $0xc] sm:$0xe]
      %v4530 = vld [vmem:[%s3915 + $0x18] sm:$0xe]
      %v4531 = vld [vmem:[%s3915 + $0x24] sm:$0xe]
      %v4532 = vld [vmem:[%s3915 + $0x30] sm:$0xe]
      %v4533 = vld [vmem:[%s3915 + $0x3c] sm:$0xe]
      %v4534 = vld [vmem:[%s3915 + $0x48] sm:$0xe]
      %v4535 = vld [vmem:[%s3915 + $0x54] sm:$0xe]
      %v4560 = vrot.slane %v4528, 5
      %v4561 = vrot.slane %v4560, 4
      %v4562 = vrot.slane %v4313, 5
      %v4563 = vsel %vm1849, %v4561, %v4562
      %v4564 = vrot.slane %v4562, 4
      %v4565 = vrot.slane %v4328, 5
      %v4566 = vsel %vm1849, %v4564, %v4565
      %v4567 = vrot.slane %v4529, 5
      %v4568 = vrot.slane %v4567, 4
      %v4569 = vrot.slane %v4315, 5
      %v4570 = vsel %vm1849, %v4568, %v4569
      %v4571 = vrot.slane %v4569, 4
      %v4572 = vrot.slane %v4329, 5
      %v4573 = vsel %vm1849, %v4571, %v4572
      %v4574 = vrot.slane %v4530, 5
      %v4575 = vrot.slane %v4574, 4
      %v4576 = vrot.slane %v4317, 5
      %v4577 = vsel %vm1849, %v4575, %v4576
      %v4578 = vrot.slane %v4576, 4
      %v4579 = vrot.slane %v4330, 5
      %v4580 = vsel %vm1849, %v4578, %v4579
      %v4581 = vrot.slane %v4531, 5
      %v4582 = vrot.slane %v4581, 4
      %v4583 = vrot.slane %v4319, 5
      %v4584 = vsel %vm1849, %v4582, %v4583
      %v4585 = vrot.slane %v4583, 4
      %v4586 = vrot.slane %v4331, 5
      %v4587 = vsel %vm1849, %v4585, %v4586
      %v4588 = vrot.slane %v4532, 5
      %v4589 = vrot.slane %v4588, 4
      %v4590 = vrot.slane %v4321, 5
      %v4591 = vsel %vm1849, %v4589, %v4590
      %v4592 = vrot.slane %v4590, 4
      %v4593 = vrot.slane %v4332, 5
      %v4594 = vsel %vm1849, %v4592, %v4593
      %v4595 = vrot.slane %v4533, 5
      %v4596 = vrot.slane %v4595, 4
      %v4597 = vrot.slane %v4323, 5
      %v4598 = vsel %vm1849, %v4596, %v4597
      %v4599 = vrot.slane %v4597, 4
      %v4600 = vrot.slane %v4333, 5
      %v4601 = vsel %vm1849, %v4599, %v4600
      %v4602 = vrot.slane %v4534, 5
      %v4603 = vrot.slane %v4602, 4
      %v4604 = vrot.slane %v4325, 5
      %v4605 = vsel %vm1849, %v4603, %v4604
      %v4606 = vrot.slane %v4604, 4
      %v4607 = vrot.slane %v4334, 5
      %v4608 = vsel %vm1849, %v4606, %v4607
      %v4609 = vrot.slane %v4535, 5
      %v4610 = vrot.slane %v4609, 4
      %v4611 = vrot.slane %v4327, 5
      %v4612 = vsel %vm1849, %v4610, %v4611
      %v4613 = vrot.slane %v4611, 4
      %v4614 = vrot.slane %v4335, 5
      %v4615 = vsel %vm1849, %v4613, %v4614
      %s4616 = scalar_lea.vmem [#allocation3], 24
      %v4617 = vld [vmem:[%s4616] sm:$0xf]
      %v4618 = vld [vmem:[%s4616 + $0x4] sm:$0xf]
      %v4619 = vld [vmem:[%s4616 + $0xc] sm:$0xf]
      %v4620 = vld [vmem:[%s4616 + $0x10] sm:$0xf]
      %v4621 = vld [vmem:[%s4616 + $0x18] sm:$0xf]
      %v4622 = vld [vmem:[%s4616 + $0x1c] sm:$0xf]
      %v4623 = vld [vmem:[%s4616 + $0x24] sm:$0xf]
      %v4624 = vld [vmem:[%s4616 + $0x28] sm:$0xf]
      %v4625 = vld [vmem:[%s4616 + $0x30] sm:$0xf]
      %v4626 = vld [vmem:[%s4616 + $0x34] sm:$0xf]
      %v4627 = vld [vmem:[%s4616 + $0x3c] sm:$0xf]
      %v4628 = vld [vmem:[%s4616 + $0x40] sm:$0xf]
      %v4629 = vld [vmem:[%s4616 + $0x48] sm:$0xf]
      %v4630 = vld [vmem:[%s4616 + $0x4c] sm:$0xf]
      %v4631 = vld [vmem:[%s4616 + $0x54] sm:$0xf]
      %v4632 = vld [vmem:[%s4616 + $0x58] sm:$0xf]
      %v4633 = vld [vmem:[%s4616 + $0x8] sm:$0x1]
      %v4634 = vld [vmem:[%s4616 + $0x14] sm:$0x1]
      %v4635 = vld [vmem:[%s4616 + $0x20] sm:$0x1]
      %v4636 = vld [vmem:[%s4616 + $0x2c] sm:$0x1]
      %v4637 = vld [vmem:[%s4616 + $0x38] sm:$0x1]
      %v4638 = vld [vmem:[%s4616 + $0x44] sm:$0x1]
      %v4639 = vld [vmem:[%s4616 + $0x50] sm:$0x1]
      %v4640 = vld [vmem:[%s4616 + $0x5c] sm:$0x1]
      %v4642 = vshrl.u32 %v4617, 16
      %v4644 = vrot.slane %v4642, 4
      %v4645 = vshll.u32 %v4617, 16
      %v4647 = vrot.slane %v4645, 5
      %v4648 = vor.u32 %v4644, %v4647
      %v4649 = vrot.slane %v4648, 4
      %v4651 = vshll.u32 %v4618, 16
      %v4653 = vrot.slane %v4651, 5
      %v4654 = vsel %vm1566, %v4649, %v4653
      %v4655 = vshrl.u32 %v4618, 16
      %v4657 = vrot.slane %v4655, 4
      %v4658 = vor.u32 %v4657, %v4653
      %v4659 = vrot.slane %v4658, 4
      %v4661 = vshll.u32 %v4633, 16
      %v4663 = vrot.slane %v4661, 5
      %v4664 = vsel %vm1566, %v4659, %v4663
      %v4666 = vshrl.u32 %v4619, 16
      %v4668 = vrot.slane %v4666, 4
      %v4669 = vshll.u32 %v4619, 16
      %v4671 = vrot.slane %v4669, 5
      %v4672 = vor.u32 %v4668, %v4671
      %v4673 = vrot.slane %v4672, 4
      %v4675 = vshll.u32 %v4620, 16
      %v4677 = vrot.slane %v4675, 5
      %v4678 = vsel %vm1566, %v4673, %v4677
      %v4679 = vshrl.u32 %v4620, 16
      %v4681 = vrot.slane %v4679, 4
      %v4682 = vor.u32 %v4681, %v4677
      %v4683 = vrot.slane %v4682, 4
      %v4685 = vshll.u32 %v4634, 16
      %v4687 = vrot.slane %v4685, 5
      %v4688 = vsel %vm1566, %v4683, %v4687
      %v4690 = vshrl.u32 %v4621, 16
      %v4692 = vrot.slane %v4690, 4
      %v4693 = vshll.u32 %v4621, 16
      %v4695 = vrot.slane %v4693, 5
      %v4696 = vor.u32 %v4692, %v4695
      %v4697 = vrot.slane %v4696, 4
      %v4699 = vshll.u32 %v4622, 16
      %v4701 = vrot.slane %v4699, 5
      %v4702 = vsel %vm1566, %v4697, %v4701
      %v4703 = vshrl.u32 %v4622, 16
      %v4705 = vrot.slane %v4703, 4
      %v4706 = vor.u32 %v4705, %v4701
      %v4707 = vrot.slane %v4706, 4
      %v4709 = vshll.u32 %v4635, 16
      %v4711 = vrot.slane %v4709, 5
      %v4712 = vsel %vm1566, %v4707, %v4711
      %v4714 = vshrl.u32 %v4623, 16
      %v4716 = vrot.slane %v4714, 4
      %v4717 = vshll.u32 %v4623, 16
      %v4719 = vrot.slane %v4717, 5
      %v4720 = vor.u32 %v4716, %v4719
      %v4721 = vrot.slane %v4720, 4
      %v4723 = vshll.u32 %v4624, 16
      %v4725 = vrot.slane %v4723, 5
      %v4726 = vsel %vm1566, %v4721, %v4725
      %v4727 = vshrl.u32 %v4624, 16
      %v4729 = vrot.slane %v4727, 4
      %v4730 = vor.u32 %v4729, %v4725
      %v4731 = vrot.slane %v4730, 4
      %v4733 = vshll.u32 %v4636, 16
      %v4735 = vrot.slane %v4733, 5
      %v4736 = vsel %vm1566, %v4731, %v4735
      %v4738 = vshrl.u32 %v4625, 16
      %v4740 = vrot.slane %v4738, 4
      %v4741 = vshll.u32 %v4625, 16
      %v4743 = vrot.slane %v4741, 5
      %v4744 = vor.u32 %v4740, %v4743
      %v4745 = vrot.slane %v4744, 4
      %v4747 = vshll.u32 %v4626, 16
      %v4749 = vrot.slane %v4747, 5
      %v4750 = vsel %vm1566, %v4745, %v4749
      %v4751 = vshrl.u32 %v4626, 16
      %v4753 = vrot.slane %v4751, 4
      %v4754 = vor.u32 %v4753, %v4749
      %v4755 = vrot.slane %v4754, 4
      %v4757 = vshll.u32 %v4637, 16
      %v4759 = vrot.slane %v4757, 5
      %v4760 = vsel %vm1566, %v4755, %v4759
      %v4762 = vshrl.u32 %v4627, 16
      %v4764 = vrot.slane %v4762, 4
      %v4765 = vshll.u32 %v4627, 16
      %v4767 = vrot.slane %v4765, 5
      %v4768 = vor.u32 %v4764, %v4767
      %v4769 = vrot.slane %v4768, 4
      %v4771 = vshll.u32 %v4628, 16
      %v4773 = vrot.slane %v4771, 5
      %v4774 = vsel %vm1566, %v4769, %v4773
      %v4775 = vshrl.u32 %v4628, 16
      %v4777 = vrot.slane %v4775, 4
      %v4778 = vor.u32 %v4777, %v4773
      %v4779 = vrot.slane %v4778, 4
      %v4781 = vshll.u32 %v4638, 16
      %v4783 = vrot.slane %v4781, 5
      %v4784 = vsel %vm1566, %v4779, %v4783
      %v4786 = vshrl.u32 %v4629, 16
      %v4788 = vrot.slane %v4786, 4
      %v4789 = vshll.u32 %v4629, 16
      %v4791 = vrot.slane %v4789, 5
      %v4792 = vor.u32 %v4788, %v4791
      %v4793 = vrot.slane %v4792, 4
      %v4795 = vshll.u32 %v4630, 16
      %v4797 = vrot.slane %v4795, 5
      %v4798 = vsel %vm1566, %v4793, %v4797
      %v4799 = vshrl.u32 %v4630, 16
      %v4801 = vrot.slane %v4799, 4
      %v4802 = vor.u32 %v4801, %v4797
      %v4803 = vrot.slane %v4802, 4
      %v4805 = vshll.u32 %v4639, 16
      %v4807 = vrot.slane %v4805, 5
      %v4808 = vsel %vm1566, %v4803, %v4807
      %v4810 = vshrl.u32 %v4631, 16
      %v4812 = vrot.slane %v4810, 4
      %v4813 = vshll.u32 %v4631, 16
      %v4815 = vrot.slane %v4813, 5
      %v4816 = vor.u32 %v4812, %v4815
      %v4817 = vrot.slane %v4816, 4
      %v4819 = vshll.u32 %v4632, 16
      %v4821 = vrot.slane %v4819, 5
      %v4822 = vsel %vm1566, %v4817, %v4821
      %v4823 = vshrl.u32 %v4632, 16
      %v4825 = vrot.slane %v4823, 4
      %v4826 = vor.u32 %v4825, %v4821
      %v4827 = vrot.slane %v4826, 4
      %v4829 = vshll.u32 %v4640, 16
      %v4831 = vrot.slane %v4829, 5
      %v4832 = vsel %vm1566, %v4827, %v4831
      %v4833 = vld [vmem:[%s4616] sm:$0xe]
      %v4834 = vld [vmem:[%s4616 + $0xc] sm:$0xe]
      %v4835 = vld [vmem:[%s4616 + $0x18] sm:$0xe]
      %v4836 = vld [vmem:[%s4616 + $0x24] sm:$0xe]
      %v4837 = vld [vmem:[%s4616 + $0x30] sm:$0xe]
      %v4838 = vld [vmem:[%s4616 + $0x3c] sm:$0xe]
      %v4839 = vld [vmem:[%s4616 + $0x48] sm:$0xe]
      %v4840 = vld [vmem:[%s4616 + $0x54] sm:$0xe]
      %v4865 = vrot.slane %v4833, 5
      %v4866 = vrot.slane %v4865, 4
      %v4867 = vrot.slane %v4618, 5
      %v4868 = vsel %vm1849, %v4866, %v4867
      %v4869 = vrot.slane %v4867, 4
      %v4870 = vrot.slane %v4633, 5
      %v4871 = vsel %vm1849, %v4869, %v4870
      %v4872 = vrot.slane %v4834, 5
      %v4873 = vrot.slane %v4872, 4
      %v4874 = vrot.slane %v4620, 5
      %v4875 = vsel %vm1849, %v4873, %v4874
      %v4876 = vrot.slane %v4874, 4
      %v4877 = vrot.slane %v4634, 5
      %v4878 = vsel %vm1849, %v4876, %v4877
      %v4879 = vrot.slane %v4835, 5
      %v4880 = vrot.slane %v4879, 4
      %v4881 = vrot.slane %v4622, 5
      %v4882 = vsel %vm1849, %v4880, %v4881
      %v4883 = vrot.slane %v4881, 4
      %v4884 = vrot.slane %v4635, 5
      %v4885 = vsel %vm1849, %v4883, %v4884
      %v4886 = vrot.slane %v4836, 5
      %v4887 = vrot.slane %v4886, 4
      %v4888 = vrot.slane %v4624, 5
      %v4889 = vsel %vm1849, %v4887, %v4888
      %v4890 = vrot.slane %v4888, 4
      %v4891 = vrot.slane %v4636, 5
      %v4892 = vsel %vm1849, %v4890, %v4891
      %v4893 = vrot.slane %v4837, 5
      %v4894 = vrot.slane %v4893, 4
      %v4895 = vrot.slane %v4626, 5
      %v4896 = vsel %vm1849, %v4894, %v4895
      %v4897 = vrot.slane %v4895, 4
      %v4898 = vrot.slane %v4637, 5
      %v4899 = vsel %vm1849, %v4897, %v4898
      %v4900 = vrot.slane %v4838, 5
      %v4901 = vrot.slane %v4900, 4
      %v4902 = vrot.slane %v4628, 5
      %v4903 = vsel %vm1849, %v4901, %v4902
      %v4904 = vrot.slane %v4902, 4
      %v4905 = vrot.slane %v4638, 5
      %v4906 = vsel %vm1849, %v4904, %v4905
      %v4907 = vrot.slane %v4839, 5
      %v4908 = vrot.slane %v4907, 4
      %v4909 = vrot.slane %v4630, 5
      %v4910 = vsel %vm1849, %v4908, %v4909
      %v4911 = vrot.slane %v4909, 4
      %v4912 = vrot.slane %v4639, 5
      %v4913 = vsel %vm1849, %v4911, %v4912
      %v4914 = vrot.slane %v4840, 5
      %v4915 = vrot.slane %v4914, 4
      %v4916 = vrot.slane %v4632, 5
      %v4917 = vsel %vm1849, %v4915, %v4916
      %v4918 = vrot.slane %v4916, 4
      %v4919 = vrot.slane %v4640, 5
      %v4920 = vsel %vm1849, %v4918, %v4919
      %v4929 = vunpack.c.l.b16 %v4008
      %v4930 = vunpack.c.l.b16 %v4009
      %v4931 = vunpack.c.l.b16 %v4010
      %v4932 = vunpack.c.l.b16 %v4011
      %v4933 = vunpack.c.l.b16 %v4012
      %v4934 = vunpack.c.l.b16 %v4013
      %v4935 = vunpack.c.l.b16 %v4014
      %v4936 = vunpack.c.l.b16 %v4015
      %v4937 = vunpack.c.l.b16 %v4016
      %v4938 = vunpack.c.l.b16 %v4017
      %v4939 = vunpack.c.l.b16 %v4018
      %v4940 = vunpack.c.l.b16 %v4019
      %v4941 = vunpack.c.l.b16 %v4020
      %v4942 = vunpack.c.l.b16 %v4021
      %v4943 = vunpack.c.l.b16 %v4022
      %v4944 = vunpack.c.l.b16 %v4023
      %v4945 = vpack.c.b16 %v4930, %v4929
      %v4946 = vpack.c.b16 %v4932, %v4931
      %v4947 = vpack.c.b16 %v4934, %v4933
      %v4948 = vpack.c.b16 %v4936, %v4935
      %v4949 = vpack.c.b16 %v4938, %v4937
      %v4950 = vpack.c.b16 %v4940, %v4939
      %v4951 = vpack.c.b16 %v4942, %v4941
      %v4952 = vpack.c.b16 %v4944, %v4943
      %v4953 = vunpack.c.l.b16 %v4045
      %v4954 = vunpack.c.l.b16 %v4055
      %v4955 = vunpack.c.l.b16 %v4069
      %v4956 = vunpack.c.l.b16 %v4079
      %v4957 = vunpack.c.l.b16 %v4093
      %v4958 = vunpack.c.l.b16 %v4103
      %v4959 = vunpack.c.l.b16 %v4117
      %v4960 = vunpack.c.l.b16 %v4127
      %v4961 = vunpack.c.l.b16 %v4141
      %v4962 = vunpack.c.l.b16 %v4151
      %v4963 = vunpack.c.l.b16 %v4165
      %v4964 = vunpack.c.l.b16 %v4175
      %v4965 = vunpack.c.l.b16 %v4189
      %v4966 = vunpack.c.l.b16 %v4199
      %v4967 = vunpack.c.l.b16 %v4213
      %v4968 = vunpack.c.l.b16 %v4223
      %v4969 = vpack.c.b16 %v4954, %v4953
      %v4970 = vpack.c.b16 %v4956, %v4955
      %v4971 = vpack.c.b16 %v4958, %v4957
      %v4972 = vpack.c.b16 %v4960, %v4959
      %v4973 = vpack.c.b16 %v4962, %v4961
      %v4974 = vpack.c.b16 %v4964, %v4963
      %v4975 = vpack.c.b16 %v4966, %v4965
      %v4976 = vpack.c.b16 %v4968, %v4967
      %4977 = vrot.lane.b32.xlu0 %v4969, 2
      %v4978 = vpop.permute.xlu0 %4977
      %4979 = vrot.lane.b32.xlu0 %v4970, 2
      %v4980 = vpop.permute.xlu0 %4979
      %4981 = vrot.lane.b32.xlu0 %v4971, 2
      %v4982 = vpop.permute.xlu0 %4981
      %4983 = vrot.lane.b32.xlu0 %v4972, 2
      %v4984 = vpop.permute.xlu0 %4983
      %4985 = vrot.lane.b32.xlu0 %v4973, 2
      %v4986 = vpop.permute.xlu0 %4985
      %4987 = vrot.lane.b32.xlu0 %v4974, 2
      %v4988 = vpop.permute.xlu0 %4987
      %4989 = vrot.lane.b32.xlu0 %v4975, 2
      %v4990 = vpop.permute.xlu0 %4989
      %4991 = vrot.lane.b32.xlu0 %v4976, 2
      %v4992 = vpop.permute.xlu0 %4991
      %v4993 = vunpack.c.l.b16 %v4259
      %v4994 = vunpack.c.l.b16 %v4262
      %v4995 = vunpack.c.l.b16 %v4266
      %v4996 = vunpack.c.l.b16 %v4269
      %v4997 = vunpack.c.l.b16 %v4273
      %v4998 = vunpack.c.l.b16 %v4276
      %v4999 = vunpack.c.l.b16 %v4280
      %v5000 = vunpack.c.l.b16 %v4283
      %v5001 = vunpack.c.l.b16 %v4287
      %v5002 = vunpack.c.l.b16 %v4290
      %v5003 = vunpack.c.l.b16 %v4294
      %v5004 = vunpack.c.l.b16 %v4297
      %v5005 = vunpack.c.l.b16 %v4301
      %v5006 = vunpack.c.l.b16 %v4304
      %v5007 = vunpack.c.l.b16 %v4308
      %v5008 = vunpack.c.l.b16 %v4311
      %v5009 = vpack.c.b16 %v4994, %v4993
      %v5010 = vpack.c.b16 %v4996, %v4995
      %v5011 = vpack.c.b16 %v4998, %v4997
      %v5012 = vpack.c.b16 %v5000, %v4999
      %v5013 = vpack.c.b16 %v5002, %v5001
      %v5014 = vpack.c.b16 %v5004, %v5003
      %v5015 = vpack.c.b16 %v5006, %v5005
      %v5016 = vpack.c.b16 %v5008, %v5007
      %5017 = vrot.lane.b32.xlu0 %v5009, 4
      %v5018 = vpop.permute.xlu0 %5017
      %5019 = vrot.lane.b32.xlu0 %v5010, 4
      %v5020 = vpop.permute.xlu0 %5019
      %5021 = vrot.lane.b32.xlu0 %v5011, 4
      %v5022 = vpop.permute.xlu0 %5021
      %5023 = vrot.lane.b32.xlu0 %v5012, 4
      %v5024 = vpop.permute.xlu0 %5023
      %5025 = vrot.lane.b32.xlu0 %v5013, 4
      %v5026 = vpop.permute.xlu0 %5025
      %5027 = vrot.lane.b32.xlu0 %v5014, 4
      %v5028 = vpop.permute.xlu0 %5027
      %5029 = vrot.lane.b32.xlu0 %v5015, 4
      %v5030 = vpop.permute.xlu0 %5029
      %5031 = vrot.lane.b32.xlu0 %v5016, 4
      %v5032 = vpop.permute.xlu0 %5031
      %v5041 = vunpack.c.l.b16 %v4312
      %v5042 = vunpack.c.l.b16 %v4313
      %v5043 = vunpack.c.l.b16 %v4314
      %v5044 = vunpack.c.l.b16 %v4315
      %v5045 = vunpack.c.l.b16 %v4316
      %v5046 = vunpack.c.l.b16 %v4317
      %v5047 = vunpack.c.l.b16 %v4318
      %v5048 = vunpack.c.l.b16 %v4319
      %v5049 = vunpack.c.l.b16 %v4320
      %v5050 = vunpack.c.l.b16 %v4321
      %v5051 = vunpack.c.l.b16 %v4322
      %v5052 = vunpack.c.l.b16 %v4323
      %v5053 = vunpack.c.l.b16 %v4324
      %v5054 = vunpack.c.l.b16 %v4325
      %v5055 = vunpack.c.l.b16 %v4326
      %v5056 = vunpack.c.l.b16 %v4327
      %v5057 = vpack.c.b16 %v5042, %v5041
      %v5058 = vpack.c.b16 %v5044, %v5043
      %v5059 = vpack.c.b16 %v5046, %v5045
      %v5060 = vpack.c.b16 %v5048, %v5047
      %v5061 = vpack.c.b16 %v5050, %v5049
      %v5062 = vpack.c.b16 %v5052, %v5051
      %v5063 = vpack.c.b16 %v5054, %v5053
      %v5064 = vpack.c.b16 %v5056, %v5055
      %5065 = vrot.lane.b32.xlu0 %v5057, 6
      %v5066 = vpop.permute.xlu0 %5065
      %5067 = vrot.lane.b32.xlu0 %v5058, 6
      %v5068 = vpop.permute.xlu0 %5067
      %5069 = vrot.lane.b32.xlu0 %v5059, 6
      %v5070 = vpop.permute.xlu0 %5069
      %5071 = vrot.lane.b32.xlu0 %v5060, 6
      %v5072 = vpop.permute.xlu0 %5071
      %5073 = vrot.lane.b32.xlu0 %v5061, 6
      %v5074 = vpop.permute.xlu0 %5073
      %5075 = vrot.lane.b32.xlu0 %v5062, 6
      %v5076 = vpop.permute.xlu0 %5075
      %5077 = vrot.lane.b32.xlu0 %v5063, 6
      %v5078 = vpop.permute.xlu0 %5077
      %5079 = vrot.lane.b32.xlu0 %v5064, 6
      %v5080 = vpop.permute.xlu0 %5079
      %v5081 = vunpack.c.l.b16 %v4349
      %v5082 = vunpack.c.l.b16 %v4359
      %v5083 = vunpack.c.l.b16 %v4373
      %v5084 = vunpack.c.l.b16 %v4383
      %v5085 = vunpack.c.l.b16 %v4397
      %v5086 = vunpack.c.l.b16 %v4407
      %v5087 = vunpack.c.l.b16 %v4421
      %v5088 = vunpack.c.l.b16 %v4431
      %v5089 = vunpack.c.l.b16 %v4445
      %v5090 = vunpack.c.l.b16 %v4455
      %v5091 = vunpack.c.l.b16 %v4469
      %v5092 = vunpack.c.l.b16 %v4479
      %v5093 = vunpack.c.l.b16 %v4493
      %v5094 = vunpack.c.l.b16 %v4503
      %v5095 = vunpack.c.l.b16 %v4517
      %v5096 = vunpack.c.l.b16 %v4527
      %v5097 = vpack.c.b16 %v5082, %v5081
      %v5098 = vpack.c.b16 %v5084, %v5083
      %v5099 = vpack.c.b16 %v5086, %v5085
      %v5100 = vpack.c.b16 %v5088, %v5087
      %v5101 = vpack.c.b16 %v5090, %v5089
      %v5102 = vpack.c.b16 %v5092, %v5091
      %v5103 = vpack.c.b16 %v5094, %v5093
      %v5104 = vpack.c.b16 %v5096, %v5095
      %5105 = vrot.lane.b32.xlu0 %v5097, 8
      %v5106 = vpop.permute.xlu0 %5105
      %5107 = vrot.lane.b32.xlu0 %v5098, 8
      %v5108 = vpop.permute.xlu0 %5107
      %5109 = vrot.lane.b32.xlu0 %v5099, 8
      %v5110 = vpop.permute.xlu0 %5109
      %5111 = vrot.lane.b32.xlu0 %v5100, 8
      %v5112 = vpop.permute.xlu0 %5111
      %5113 = vrot.lane.b32.xlu0 %v5101, 8
      %v5114 = vpop.permute.xlu0 %5113
      %5115 = vrot.lane.b32.xlu0 %v5102, 8
      %v5116 = vpop.permute.xlu0 %5115
      %5117 = vrot.lane.b32.xlu0 %v5103, 8
      %v5118 = vpop.permute.xlu0 %5117
      %5119 = vrot.lane.b32.xlu0 %v5104, 8
      %v5120 = vpop.permute.xlu0 %5119
      %v5121 = vunpack.c.l.b16 %v4563
      %v5122 = vunpack.c.l.b16 %v4566
      %v5123 = vunpack.c.l.b16 %v4570
      %v5124 = vunpack.c.l.b16 %v4573
      %v5125 = vunpack.c.l.b16 %v4577
      %v5126 = vunpack.c.l.b16 %v4580
      %v5127 = vunpack.c.l.b16 %v4584
      %v5128 = vunpack.c.l.b16 %v4587
      %v5129 = vunpack.c.l.b16 %v4591
      %v5130 = vunpack.c.l.b16 %v4594
      %v5131 = vunpack.c.l.b16 %v4598
      %v5132 = vunpack.c.l.b16 %v4601
      %v5133 = vunpack.c.l.b16 %v4605
      %v5134 = vunpack.c.l.b16 %v4608
      %v5135 = vunpack.c.l.b16 %v4612
      %v5136 = vunpack.c.l.b16 %v4615
      %v5137 = vpack.c.b16 %v5122, %v5121
      %v5138 = vpack.c.b16 %v5124, %v5123
      %v5139 = vpack.c.b16 %v5126, %v5125
      %v5140 = vpack.c.b16 %v5128, %v5127
      %v5141 = vpack.c.b16 %v5130, %v5129
      %v5142 = vpack.c.b16 %v5132, %v5131
      %v5143 = vpack.c.b16 %v5134, %v5133
      %v5144 = vpack.c.b16 %v5136, %v5135
      %5145 = vrot.lane.b32.xlu0 %v5137, 10
      %v5146 = vpop.permute.xlu0 %5145
      %5147 = vrot.lane.b32.xlu0 %v5138, 10
      %v5148 = vpop.permute.xlu0 %5147
      %5149 = vrot.lane.b32.xlu0 %v5139, 10
      %v5150 = vpop.permute.xlu0 %5149
      %5151 = vrot.lane.b32.xlu0 %v5140, 10
      %v5152 = vpop.permute.xlu0 %5151
      %5153 = vrot.lane.b32.xlu0 %v5141, 10
      %v5154 = vpop.permute.xlu0 %5153
      %5155 = vrot.lane.b32.xlu0 %v5142, 10
      %v5156 = vpop.permute.xlu0 %5155
      %5157 = vrot.lane.b32.xlu0 %v5143, 10
      %v5158 = vpop.permute.xlu0 %5157
      %5159 = vrot.lane.b32.xlu0 %v5144, 10
      %v5160 = vpop.permute.xlu0 %5159
      %v5169 = vunpack.c.l.b16 %v4617
      %v5170 = vunpack.c.l.b16 %v4618
      %v5171 = vunpack.c.l.b16 %v4619
      %v5172 = vunpack.c.l.b16 %v4620
      %v5173 = vunpack.c.l.b16 %v4621
      %v5174 = vunpack.c.l.b16 %v4622
      %v5175 = vunpack.c.l.b16 %v4623
      %v5176 = vunpack.c.l.b16 %v4624
      %v5177 = vunpack.c.l.b16 %v4625
      %v5178 = vunpack.c.l.b16 %v4626
      %v5179 = vunpack.c.l.b16 %v4627
      %v5180 = vunpack.c.l.b16 %v4628
      %v5181 = vunpack.c.l.b16 %v4629
      %v5182 = vunpack.c.l.b16 %v4630
      %v5183 = vunpack.c.l.b16 %v4631
      %v5184 = vunpack.c.l.b16 %v4632
      %v5185 = vpack.c.b16 %v5170, %v5169
      %v5186 = vpack.c.b16 %v5172, %v5171
      %v5187 = vpack.c.b16 %v5174, %v5173
      %v5188 = vpack.c.b16 %v5176, %v5175
      %v5189 = vpack.c.b16 %v5178, %v5177
      %v5190 = vpack.c.b16 %v5180, %v5179
      %v5191 = vpack.c.b16 %v5182, %v5181
      %v5192 = vpack.c.b16 %v5184, %v5183
      %5193 = vrot.lane.b32.xlu0 %v5185, 12
      %v5194 = vpop.permute.xlu0 %5193
      %5195 = vrot.lane.b32.xlu0 %v5186, 12
      %v5196 = vpop.permute.xlu0 %5195
      %5197 = vrot.lane.b32.xlu0 %v5187, 12
      %v5198 = vpop.permute.xlu0 %5197
      %5199 = vrot.lane.b32.xlu0 %v5188, 12
      %v5200 = vpop.permute.xlu0 %5199
      %5201 = vrot.lane.b32.xlu0 %v5189, 12
      %v5202 = vpop.permute.xlu0 %5201
      %5203 = vrot.lane.b32.xlu0 %v5190, 12
      %v5204 = vpop.permute.xlu0 %5203
      %5205 = vrot.lane.b32.xlu0 %v5191, 12
      %v5206 = vpop.permute.xlu0 %5205
      %5207 = vrot.lane.b32.xlu0 %v5192, 12
      %v5208 = vpop.permute.xlu0 %5207
      %v5209 = vunpack.c.l.b16 %v4654
      %v5210 = vunpack.c.l.b16 %v4664
      %v5211 = vunpack.c.l.b16 %v4678
      %v5212 = vunpack.c.l.b16 %v4688
      %v5213 = vunpack.c.l.b16 %v4702
      %v5214 = vunpack.c.l.b16 %v4712
      %v5215 = vunpack.c.l.b16 %v4726
      %v5216 = vunpack.c.l.b16 %v4736
      %v5217 = vunpack.c.l.b16 %v4750
      %v5218 = vunpack.c.l.b16 %v4760
      %v5219 = vunpack.c.l.b16 %v4774
      %v5220 = vunpack.c.l.b16 %v4784
      %v5221 = vunpack.c.l.b16 %v4798
      %v5222 = vunpack.c.l.b16 %v4808
      %v5223 = vunpack.c.l.b16 %v4822
      %v5224 = vunpack.c.l.b16 %v4832
      %v5225 = vpack.c.b16 %v5210, %v5209
      %v5226 = vpack.c.b16 %v5212, %v5211
      %v5227 = vpack.c.b16 %v5214, %v5213
      %v5228 = vpack.c.b16 %v5216, %v5215
      %v5229 = vpack.c.b16 %v5218, %v5217
      %v5230 = vpack.c.b16 %v5220, %v5219
      %v5231 = vpack.c.b16 %v5222, %v5221
      %v5232 = vpack.c.b16 %v5224, %v5223
      %5233 = vrot.lane.b32.xlu0 %v5225, 14
      %v5234 = vpop.permute.xlu0 %5233
      %5235 = vrot.lane.b32.xlu0 %v5226, 14
      %v5236 = vpop.permute.xlu0 %5235
      %5237 = vrot.lane.b32.xlu0 %v5227, 14
      %v5238 = vpop.permute.xlu0 %5237
      %5239 = vrot.lane.b32.xlu0 %v5228, 14
      %v5240 = vpop.permute.xlu0 %5239
      %5241 = vrot.lane.b32.xlu0 %v5229, 14
      %v5242 = vpop.permute.xlu0 %5241
      %5243 = vrot.lane.b32.xlu0 %v5230, 14
      %v5244 = vpop.permute.xlu0 %5243
      %5245 = vrot.lane.b32.xlu0 %v5231, 14
      %v5246 = vpop.permute.xlu0 %5245
      %5247 = vrot.lane.b32.xlu0 %v5232, 14
      %v5248 = vpop.permute.xlu0 %5247
      %v5249 = vunpack.c.l.b16 %v4868
      %v5250 = vunpack.c.l.b16 %v4871
      %v5251 = vunpack.c.l.b16 %v4875
      %v5252 = vunpack.c.l.b16 %v4878
      %v5253 = vunpack.c.l.b16 %v4882
      %v5254 = vunpack.c.l.b16 %v4885
      %v5255 = vunpack.c.l.b16 %v4889
      %v5256 = vunpack.c.l.b16 %v4892
      %v5257 = vunpack.c.l.b16 %v4896
      %v5258 = vunpack.c.l.b16 %v4899
      %v5259 = vunpack.c.l.b16 %v4903
      %v5260 = vunpack.c.l.b16 %v4906
      %v5261 = vunpack.c.l.b16 %v4910
      %v5262 = vunpack.c.l.b16 %v4913
      %v5263 = vunpack.c.l.b16 %v4917
      %v5264 = vunpack.c.l.b16 %v4920
      %v5265 = vpack.c.b16 %v5250, %v5249
      %v5266 = vpack.c.b16 %v5252, %v5251
      %v5267 = vpack.c.b16 %v5254, %v5253
      %v5268 = vpack.c.b16 %v5256, %v5255
      %v5269 = vpack.c.b16 %v5258, %v5257
      %v5270 = vpack.c.b16 %v5260, %v5259
      %v5271 = vpack.c.b16 %v5262, %v5261
      %v5272 = vpack.c.b16 %v5264, %v5263
      %5273 = vrot.lane.b32.xlu0 %v5265, 16
      %v5274 = vpop.permute.xlu0 %5273
      %5275 = vrot.lane.b32.xlu0 %v5266, 16
      %v5276 = vpop.permute.xlu0 %5275
      %5277 = vrot.lane.b32.xlu0 %v5267, 16
      %v5278 = vpop.permute.xlu0 %5277
      %5279 = vrot.lane.b32.xlu0 %v5268, 16
      %v5280 = vpop.permute.xlu0 %5279
      %5281 = vrot.lane.b32.xlu0 %v5269, 16
      %v5282 = vpop.permute.xlu0 %5281
      %5283 = vrot.lane.b32.xlu0 %v5270, 16
      %v5284 = vpop.permute.xlu0 %5283
      %5285 = vrot.lane.b32.xlu0 %v5271, 16
      %v5286 = vpop.permute.xlu0 %5285
      %5287 = vrot.lane.b32.xlu0 %v5272, 16
      %v5288 = vpop.permute.xlu0 %5287
      %v5291 = vsel %vm3141, %v4945, %v4978
      %v5294 = vsel %vm3141, %v4946, %v4980
      %v5297 = vsel %vm3141, %v4947, %v4982
      %v5300 = vsel %vm3141, %v4948, %v4984
      %v5303 = vsel %vm3141, %v4949, %v4986
      %v5306 = vsel %vm3141, %v4950, %v4988
      %v5309 = vsel %vm3141, %v4951, %v4990
      %v5312 = vsel %vm3141, %v4952, %v4992
      %v5314 = vsel %vm594, %v5291, %v5018
      %v5316 = vsel %vm594, %v5294, %v5020
      %v5318 = vsel %vm594, %v5297, %v5022
      %v5320 = vsel %vm594, %v5300, %v5024
      %v5322 = vsel %vm594, %v5303, %v5026
      %v5324 = vsel %vm594, %v5306, %v5028
      %v5326 = vsel %vm594, %v5309, %v5030
      %v5328 = vsel %vm594, %v5312, %v5032
      %v5330 = vsel %vm3192, %v5314, %v5066
      %v5332 = vsel %vm3192, %v5316, %v5068
      %v5334 = vsel %vm3192, %v5318, %v5070
      %v5336 = vsel %vm3192, %v5320, %v5072
      %v5338 = vsel %vm3192, %v5322, %v5074
      %v5340 = vsel %vm3192, %v5324, %v5076
      %v5342 = vsel %vm3192, %v5326, %v5078
      %v5344 = vsel %vm3192, %v5328, %v5080
      %v5346 = vsel %vm3213, %v5330, %v5106
      %v5348 = vsel %vm3213, %v5332, %v5108
      %v5350 = vsel %vm3213, %v5334, %v5110
      %v5352 = vsel %vm3213, %v5336, %v5112
      %v5354 = vsel %vm3213, %v5338, %v5114
      %v5356 = vsel %vm3213, %v5340, %v5116
      %v5358 = vsel %vm3213, %v5342, %v5118
      %v5360 = vsel %vm3213, %v5344, %v5120
      %v5362 = vsel %vm3234, %v5346, %v5146
      %v5364 = vsel %vm3234, %v5348, %v5148
      %v5366 = vsel %vm3234, %v5350, %v5150
      %v5368 = vsel %vm3234, %v5352, %v5152
      %v5370 = vsel %vm3234, %v5354, %v5154
      %v5372 = vsel %vm3234, %v5356, %v5156
      %v5374 = vsel %vm3234, %v5358, %v5158
      %v5376 = vsel %vm3234, %v5360, %v5160
      %v5378 = vsel %vm3255, %v5362, %v5194
      %v5380 = vsel %vm3255, %v5364, %v5196
      %v5382 = vsel %vm3255, %v5366, %v5198
      %v5384 = vsel %vm3255, %v5368, %v5200
      %v5386 = vsel %vm3255, %v5370, %v5202
      %v5388 = vsel %vm3255, %v5372, %v5204
      %v5390 = vsel %vm3255, %v5374, %v5206
      %v5392 = vsel %vm3255, %v5376, %v5208
      %v5394 = vsel %vm3276, %v5378, %v5234
      %v5396 = vsel %vm3276, %v5380, %v5236
      %v5398 = vsel %vm3276, %v5382, %v5238
      %v5400 = vsel %vm3276, %v5384, %v5240
      %v5402 = vsel %vm3276, %v5386, %v5242
      %v5404 = vsel %vm3276, %v5388, %v5244
      %v5406 = vsel %vm3276, %v5390, %v5246
      %v5408 = vsel %vm3276, %v5392, %v5248
      %v5410 = vsel %vm3297, %v5394, %v5274
      %v5412 = vsel %vm3297, %v5396, %v5276
      %v5414 = vsel %vm3297, %v5398, %v5278
      %v5416 = vsel %vm3297, %v5400, %v5280
      %v5418 = vsel %vm3297, %v5402, %v5282
      %v5420 = vsel %vm3297, %v5404, %v5284
      %v5422 = vsel %vm3297, %v5406, %v5286
      %v5424 = vsel %vm3297, %v5408, %v5288
      %v5425 = vld [vmem:[%s5] sm:$0xf]
      %v5426 = vld [vmem:[%s5 + $0x4] sm:$0xf]
      %v5427 = vld [vmem:[%s5 + $0x8] sm:$0x1]
      %v5428 = vlaneseq
      %v5429 = vshrl.u32 %v5428, 7
      %v5430 = vsub.s32 0, %v5429
      %v5431 = vrot.slane %v568, %v5430
      %v5435 = vunpack.c.l.b16 %v5425
      %v5436 = vunpack.c.l.b16 %v5426
      %v5437 = vunpack.c.l.b16 %v5427
      %v5438 = vpack.c.b16 %v5436, %v5435
      %v5439 = vpack.c.b16 %v5437, %v5437
      %v5441 = vsel %vm3334, %v5410, 0
      %v5443 = vsel %vm3334, %v5412, 0
      %v5445 = vsel %vm3334, %v5414, 0
      %v5447 = vsel %vm3334, %v5416, 0
      %v5449 = vsel %vm3334, %v5418, 0
      %v5451 = vsel %vm3334, %v5420, 0
      %v5453 = vsel %vm3334, %v5422, 0
      %v5455 = vsel %vm3334, %v5424, 0
      %v5458 = vsel %vm3355, %v5439, 0
      %5460 = vmatprep.subr.bf16.mxu0 0
      %5461 = vmatpush1.bf16.msra.mxu0 %v5438
      %5462 = vmatprep.subr.bf16.mxu0 0
      %5463 = vmatpush1.bf16.msra.mxu0 %v5458
      %5464 = vmatprep.subr.bf16.mxu0 0
      %5465 = vmatpush1.bf16.msra.mxu0 0
      %5466 = vmatprep.subr.bf16.mxu0 0
      %5467 = vmatpush1.bf16.msra.mxu0 0
      %5468 = vmatprep.subr.bf16.mxu0 0
      %5469 = vmatpush1.bf16.msra.mxu0 0
      %5470 = vmatprep.subr.bf16.mxu0 0
      %5471 = vmatpush1.bf16.msra.mxu0 0
      %5472 = vmatprep.subr.bf16.mxu0 0
      %5473 = vmatpush1.bf16.msra.mxu0 0
      %5474 = vmatprep.subr.bf16.mxu0 0
      %5475 = vmatpush1.bf16.msra.mxu0 0
      %5476 = vmatprep.subr.bf16.mxu0 0
      %5477 = vmatpush1.bf16.msra.mxu0 0
      %5478 = vmatprep.subr.bf16.mxu0 0
      %5479 = vmatpush1.bf16.msra.mxu0 0
      %5480 = vmatprep.subr.bf16.mxu0 0
      %5481 = vmatpush1.bf16.msra.mxu0 0
      %5482 = vmatprep.subr.bf16.mxu0 0
      %5483 = vmatpush1.bf16.msra.mxu0 0
      %5484 = vmatprep.subr.bf16.mxu0 0
      %5485 = vmatpush1.bf16.msra.mxu0 0
      %5486 = vmatprep.subr.bf16.mxu0 0
      %5487 = vmatpush1.bf16.msra.mxu0 0
      %5488 = vmatprep.subr.bf16.mxu0 0
      %5489 = vmatpush1.bf16.msra.mxu0 0
      %5490 = vmatprep.subr.bf16.mxu0 0
      %5491 = vmatpush1.bf16.msra.mxu0 0
      %5492 = vmatprep.mubr.bf16.mxu0 0
      %5493 = vmatmul.mubr.bf16.gmra.mrb[0].mxu0 %v5441
      %v5494 = vpop.f32.mrb[0].mxu0
      %v5495 = vadd.f32 %v5431, %v5494
      %v5496 = vpop.f32.mrb[0].mxu0
      %v5497 = vpop.f32.mrb[0].mxu0
      %v5498 = vadd.f32 %v5431, %v5497
      %v5499 = vpop.f32.mrb[0].mxu0
      %5500 = vmatprep.mubr.bf16.mxu0 0
      %5501 = vmatmul.mubr.bf16.gmra.mrb[0].mxu0 %v5443
      %v5502 = vpop.f32.mrb[0].mxu0
      %v5503 = vadd.f32 %v5431, %v5502
      %v5504 = vpop.f32.mrb[0].mxu0
      %v5505 = vpop.f32.mrb[0].mxu0
      %v5506 = vadd.f32 %v5431, %v5505
      %v5507 = vpop.f32.mrb[0].mxu0
      %5508 = vmatprep.mubr.bf16.mxu0 0
      %5509 = vmatmul.mubr.bf16.gmra.mrb[0].mxu0 %v5445
      %v5510 = vpop.f32.mrb[0].mxu0
      %v5511 = vadd.f32 %v5431, %v5510
      %v5512 = vpop.f32.mrb[0].mxu0
      %v5513 = vpop.f32.mrb[0].mxu0
      %v5514 = vadd.f32 %v5431, %v5513
      %v5515 = vpop.f32.mrb[0].mxu0
      %5516 = vmatprep.mubr.bf16.mxu0 0
      %5517 = vmatmul.mubr.bf16.gmra.mrb[0].mxu0 %v5447
      %v5518 = vpop.f32.mrb[0].mxu0
      %v5519 = vadd.f32 %v5431, %v5518
      %v5520 = vpop.f32.mrb[0].mxu0
      %v5521 = vpop.f32.mrb[0].mxu0
      %v5522 = vadd.f32 %v5431, %v5521
      %v5523 = vpop.f32.mrb[0].mxu0
      %5524 = vmatprep.mubr.bf16.mxu0 0
      %5525 = vmatmul.mubr.bf16.gmra.mrb[0].mxu0 %v5449
      %v5526 = vpop.f32.mrb[0].mxu0
      %v5527 = vadd.f32 %v5431, %v5526
      %v5528 = vpop.f32.mrb[0].mxu0
      %v5529 = vpop.f32.mrb[0].mxu0
      %v5530 = vadd.f32 %v5431, %v5529
      %v5531 = vpop.f32.mrb[0].mxu0
      %5532 = vmatprep.mubr.bf16.mxu0 0
      %5533 = vmatmul.mubr.bf16.gmra.mrb[0].mxu0 %v5451
      %v5534 = vpop.f32.mrb[0].mxu0
      %v5535 = vadd.f32 %v5431, %v5534
      %v5536 = vpop.f32.mrb[0].mxu0
      %v5537 = vpop.f32.mrb[0].mxu0
      %v5538 = vadd.f32 %v5431, %v5537
      %v5539 = vpop.f32.mrb[0].mxu0
      %5540 = vmatprep.mubr.bf16.mxu0 0
      %5541 = vmatmul.mubr.bf16.gmra.mrb[0].mxu0 %v5453
      %v5542 = vpop.f32.mrb[0].mxu0
      %v5543 = vadd.f32 %v5431, %v5542
      %v5544 = vpop.f32.mrb[0].mxu0
      %v5545 = vpop.f32.mrb[0].mxu0
      %v5546 = vadd.f32 %v5431, %v5545
      %v5547 = vpop.f32.mrb[0].mxu0
      %5548 = vmatprep.mubr.bf16.mxu0 0
      %5549 = vmatmul.mubr.bf16.gmra.mrb[0].mxu0 %v5455
      %v5550 = vpop.f32.mrb[0].mxu0
      %v5551 = vadd.f32 %v5431, %v5550
      %v5552 = vpop.f32.mrb[0].mxu0
      %v5553 = vpop.f32.mrb[0].mxu0
      %v5554 = vadd.f32 %v5431, %v5553
      %v5555 = vpop.f32.mrb[0].mxu0
      %5556 = vdwg.mxu0
      %v5557 = vxor.u32 %v5495, 2147483648
      %v5558 = vxor.u32 %v5498, 2147483648
      %v5559 = vxor.u32 %v5503, 2147483648
      %v5560 = vxor.u32 %v5506, 2147483648
      %v5561 = vxor.u32 %v5511, 2147483648
      %v5562 = vxor.u32 %v5514, 2147483648
      %v5563 = vxor.u32 %v5519, 2147483648
      %v5564 = vxor.u32 %v5522, 2147483648
      %v5565 = vxor.u32 %v5527, 2147483648
      %v5566 = vxor.u32 %v5530, 2147483648
      %v5567 = vxor.u32 %v5535, 2147483648
      %v5568 = vxor.u32 %v5538, 2147483648
      %v5569 = vxor.u32 %v5543, 2147483648
      %v5570 = vxor.u32 %v5546, 2147483648
      %v5571 = vxor.u32 %v5551, 2147483648
      %v5572 = vxor.u32 %v5554, 2147483648
      %v5573 = vmul.f32 %v5557, 1.442695
      %v5574 = vpow.pop %v5573
      %v5575 = vmul.f32 %v5558, 1.442695
      %v5576 = vpow.pop %v5575
      %v5577 = vmul.f32 %v5559, 1.442695
      %v5578 = vpow.pop %v5577
      %v5579 = vmul.f32 %v5560, 1.442695
      %v5580 = vpow.pop %v5579
      %v5581 = vmul.f32 %v5561, 1.442695
      %v5582 = vpow.pop %v5581
      %v5583 = vmul.f32 %v5562, 1.442695
      %v5584 = vpow.pop %v5583
      %v5585 = vmul.f32 %v5563, 1.442695
      %v5586 = vpow.pop %v5585
      %v5587 = vmul.f32 %v5564, 1.442695
      %v5588 = vpow.pop %v5587
      %v5589 = vmul.f32 %v5565, 1.442695
      %v5590 = vpow.pop %v5589
      %v5591 = vmul.f32 %v5566, 1.442695
      %v5592 = vpow.pop %v5591
      %v5593 = vmul.f32 %v5567, 1.442695
      %v5594 = vpow.pop %v5593
      %v5595 = vmul.f32 %v5568, 1.442695
      %v5596 = vpow.pop %v5595
      %v5597 = vmul.f32 %v5569, 1.442695
      %v5598 = vpow.pop %v5597
      %v5599 = vmul.f32 %v5570, 1.442695
      %v5600 = vpow.pop %v5599
      %v5601 = vmul.f32 %v5571, 1.442695
      %v5602 = vpow.pop %v5601
      %v5603 = vmul.f32 %v5572, 1.442695
      %v5604 = vpow.pop %v5603
      %v5605 = vadd.f32 %v5574, 1.0
      %v5606 = vadd.f32 %v5576, 1.0
      %v5607 = vadd.f32 %v5578, 1.0
      %v5608 = vadd.f32 %v5580, 1.0
      %v5609 = vadd.f32 %v5582, 1.0
      %v5610 = vadd.f32 %v5584, 1.0
      %v5611 = vadd.f32 %v5586, 1.0
      %v5612 = vadd.f32 %v5588, 1.0
      %v5613 = vadd.f32 %v5590, 1.0
      %v5614 = vadd.f32 %v5592, 1.0
      %v5615 = vadd.f32 %v5594, 1.0
      %v5616 = vadd.f32 %v5596, 1.0
      %v5617 = vadd.f32 %v5598, 1.0
      %v5618 = vadd.f32 %v5600, 1.0
      %v5619 = vadd.f32 %v5602, 1.0
      %v5620 = vadd.f32 %v5604, 1.0
      %v5621 = vrcp.pop %v5605
      %v5622 = vmul.f32 1.0, %v5621
      %v5623 = vrcp.pop %v5606
      %v5624 = vmul.f32 1.0, %v5623
      %v5625 = vrcp.pop %v5607
      %v5626 = vmul.f32 1.0, %v5625
      %v5627 = vrcp.pop %v5608
      %v5628 = vmul.f32 1.0, %v5627
      %v5629 = vrcp.pop %v5609
      %v5630 = vmul.f32 1.0, %v5629
      %v5631 = vrcp.pop %v5610
      %v5632 = vmul.f32 1.0, %v5631
      %v5633 = vrcp.pop %v5611
      %v5634 = vmul.f32 1.0, %v5633
      %v5635 = vrcp.pop %v5612
      %v5636 = vmul.f32 1.0, %v5635
      %v5637 = vrcp.pop %v5613
      %v5638 = vmul.f32 1.0, %v5637
      %v5639 = vrcp.pop %v5614
      %v5640 = vmul.f32 1.0, %v5639
      %v5641 = vrcp.pop %v5615
      %v5642 = vmul.f32 1.0, %v5641
      %v5643 = vrcp.pop %v5616
      %v5644 = vmul.f32 1.0, %v5643
      %v5645 = vrcp.pop %v5617
      %v5646 = vmul.f32 1.0, %v5645
      %v5647 = vrcp.pop %v5618
      %v5648 = vmul.f32 1.0, %v5647
      %v5649 = vrcp.pop %v5619
      %v5650 = vmul.f32 1.0, %v5649
      %v5651 = vrcp.pop %v5620
      %v5652 = vmul.f32 1.0, %v5651
      %v5653 = vmul.f32 %v5495, %v5622
      %v5654 = vmul.f32 %v5498, %v5624
      %v5655 = vmul.f32 %v5503, %v5626
      %v5656 = vmul.f32 %v5506, %v5628
      %v5657 = vmul.f32 %v5511, %v5630
      %v5658 = vmul.f32 %v5514, %v5632
      %v5659 = vmul.f32 %v5519, %v5634
      %v5660 = vmul.f32 %v5522, %v5636
      %v5661 = vmul.f32 %v5527, %v5638
      %v5662 = vmul.f32 %v5530, %v5640
      %v5663 = vmul.f32 %v5535, %v5642
      %v5664 = vmul.f32 %v5538, %v5644
      %v5665 = vmul.f32 %v5543, %v5646
      %v5666 = vmul.f32 %v5546, %v5648
      %v5667 = vmul.f32 %v5551, %v5650
      %v5668 = vmul.f32 %v5554, %v5652
      %v5669 = vadd.f32 %v836, %v5653
      %v5670 = vadd.f32 %v837, %v5654
      %v5671 = vadd.f32 %v838, %v5655
      %v5672 = vadd.f32 %v839, %v5656
      %v5673 = vadd.f32 %v840, %v5657
      %v5674 = vadd.f32 %v841, %v5658
      %v5675 = vadd.f32 %v842, %v5659
      %v5676 = vadd.f32 %v843, %v5660
      %v5677 = vadd.f32 %v844, %v5661
      %v5678 = vadd.f32 %v845, %v5662
      %v5679 = vadd.f32 %v846, %v5663
      %v5680 = vadd.f32 %v847, %v5664
      %v5681 = vadd.f32 %v848, %v5665
      %v5682 = vadd.f32 %v849, %v5666
      %v5683 = vadd.f32 %v850, %v5667
      %v5684 = vadd.f32 %v851, %v5668
      %v5685 = vpack.c.bf16 %v5670, %v5669
      %v5686 = vpack.c.bf16 %v5672, %v5671
      %v5687 = vpack.c.bf16 %v5674, %v5673
      %v5688 = vpack.c.bf16 %v5676, %v5675
      %v5689 = vpack.c.bf16 %v5678, %v5677
      %v5690 = vpack.c.bf16 %v5680, %v5679
      %v5691 = vpack.c.bf16 %v5682, %v5681
      %v5692 = vpack.c.bf16 %v5684, %v5683
      %v5693 = vld [vmem:[%s6] sm:$0x1]
      %v5695 = vsel %vm3141, %v5685, 0
      %v5698 = vsel %vm3141, %v5686, 0
      %v5701 = vsel %vm3141, %v5687, 0
      %v5704 = vsel %vm3141, %v5688, 0
      %v5707 = vsel %vm3141, %v5689, 0
      %v5710 = vsel %vm3141, %v5690, 0
      %v5713 = vsel %vm3141, %v5691, 0
      %v5716 = vsel %vm3141, %v5692, 0
      %v5719 = vsel %vm3355, %v5693, 0
      %5721 = vmatprep.subr.bf16.mxu0 0
      %5722 = vmatpush1.bf16.msra.mxu0 %v5719
      %5723 = vmatprep.subr.bf16.mxu0 0
      %5724 = vmatpush1.bf16.msra.mxu0 0
      %5725 = vmatprep.subr.bf16.mxu0 0
      %5726 = vmatpush1.bf16.msra.mxu0 0
      %5727 = vmatprep.subr.bf16.mxu0 0
      %5728 = vmatpush1.bf16.msra.mxu0 0
      %5729 = vmatprep.subr.bf16.mxu0 0
      %5730 = vmatpush1.bf16.msra.mxu0 0
      %5731 = vmatprep.subr.bf16.mxu0 0
      %5732 = vmatpush1.bf16.msra.mxu0 0
      %5733 = vmatprep.subr.bf16.mxu0 0
      %5734 = vmatpush1.bf16.msra.mxu0 0
      %5735 = vmatprep.subr.bf16.mxu0 0
      %5736 = vmatpush1.bf16.msra.mxu0 0
      %5737 = vmatprep.subr.bf16.mxu0 0
      %5738 = vmatpush1.bf16.msra.mxu0 0
      %5739 = vmatprep.subr.bf16.mxu0 0
      %5740 = vmatpush1.bf16.msra.mxu0 0
      %5741 = vmatprep.subr.bf16.mxu0 0
      %5742 = vmatpush1.bf16.msra.mxu0 0
      %5743 = vmatprep.subr.bf16.mxu0 0
      %5744 = vmatpush1.bf16.msra.mxu0 0
      %5745 = vmatprep.subr.bf16.mxu0 0
      %5746 = vmatpush1.bf16.msra.mxu0 0
      %5747 = vmatprep.subr.bf16.mxu0 0
      %5748 = vmatpush1.bf16.msra.mxu0 0
      %5749 = vmatprep.subr.bf16.mxu0 0
      %5750 = vmatpush1.bf16.msra.mxu0 0
      %5751 = vmatprep.subr.bf16.mxu0 0
      %5752 = vmatpush1.bf16.msra.mxu0 0
      %5753 = vmatprep.mubr.bf16.mxu0 0
      %5754 = vmatmul.mubr.bf16.gmra.mrb[0].mxu0 %v5695
      %v5755 = vpop.f32.mrb[0].mxu0
      %v5756 = vadd.f32 0.0, %v5755
      %v5757 = vpop.f32.mrb[0].mxu0
      %v5758 = vpop.f32.mrb[0].mxu0
      %v5759 = vadd.f32 0.0, %v5758
      %v5760 = vpop.f32.mrb[0].mxu0
      %5761 = vmatprep.mubr.bf16.mxu0 0
      %5762 = vmatmul.mubr.bf16.gmra.mrb[0].mxu0 %v5698
      %v5763 = vpop.f32.mrb[0].mxu0
      %v5764 = vadd.f32 0.0, %v5763
      %v5765 = vpop.f32.mrb[0].mxu0
      %v5766 = vpop.f32.mrb[0].mxu0
      %v5767 = vadd.f32 0.0, %v5766
      %v5768 = vpop.f32.mrb[0].mxu0
      %5769 = vmatprep.mubr.bf16.mxu0 0
      %5770 = vmatmul.mubr.bf16.gmra.mrb[0].mxu0 %v5701
      %v5771 = vpop.f32.mrb[0].mxu0
      %v5772 = vadd.f32 0.0, %v5771
      %v5773 = vpop.f32.mrb[0].mxu0
      %v5774 = vpop.f32.mrb[0].mxu0
      %v5775 = vadd.f32 0.0, %v5774
      %v5776 = vpop.f32.mrb[0].mxu0
      %5777 = vmatprep.mubr.bf16.mxu0 0
      %5778 = vmatmul.mubr.bf16.gmra.mrb[0].mxu0 %v5704
      %v5779 = vpop.f32.mrb[0].mxu0
      %v5780 = vadd.f32 0.0, %v5779
      %v5781 = vpop.f32.mrb[0].mxu0
      %v5782 = vpop.f32.mrb[0].mxu0
      %v5783 = vadd.f32 0.0, %v5782
      %v5784 = vpop.f32.mrb[0].mxu0
      %5785 = vmatprep.mubr.bf16.mxu0 0
      %5786 = vmatmul.mubr.bf16.gmra.mrb[0].mxu0 %v5707
      %v5787 = vpop.f32.mrb[0].mxu0
      %v5788 = vadd.f32 0.0, %v5787
      %v5789 = vpop.f32.mrb[0].mxu0
      %v5790 = vpop.f32.mrb[0].mxu0
      %v5791 = vadd.f32 0.0, %v5790
      %v5792 = vpop.f32.mrb[0].mxu0
      %5793 = vmatprep.mubr.bf16.mxu0 0
      %5794 = vmatmul.mubr.bf16.gmra.mrb[0].mxu0 %v5710
      %v5795 = vpop.f32.mrb[0].mxu0
      %v5796 = vadd.f32 0.0, %v5795
      %v5797 = vpop.f32.mrb[0].mxu0
      %v5798 = vpop.f32.mrb[0].mxu0
      %v5799 = vadd.f32 0.0, %v5798
      %v5800 = vpop.f32.mrb[0].mxu0
      %5801 = vmatprep.mubr.bf16.mxu0 0
      %5802 = vmatmul.mubr.bf16.gmra.mrb[0].mxu0 %v5713
      %v5803 = vpop.f32.mrb[0].mxu0
      %v5804 = vadd.f32 0.0, %v5803
      %v5805 = vpop.f32.mrb[0].mxu0
      %v5806 = vpop.f32.mrb[0].mxu0
      %v5807 = vadd.f32 0.0, %v5806
      %v5808 = vpop.f32.mrb[0].mxu0
      %5809 = vmatprep.mubr.bf16.mxu0 0
      %5810 = vmatmul.mubr.bf16.gmra.mrb[0].mxu0 %v5716
      %v5811 = vpop.f32.mrb[0].mxu0
      %v5812 = vadd.f32 0.0, %v5811
      %v5813 = vpop.f32.mrb[0].mxu0
      %v5814 = vpop.f32.mrb[0].mxu0
      %v5815 = vadd.f32 0.0, %v5814
      %v5816 = vpop.f32.mrb[0].mxu0
      %5817 = vdwg.mxu0
      %v5818 = vsel %vm3141, %v5756, %v658
      %v5819 = vsel %vm3141, %v5759, %v661
      %v5820 = vsel %vm3141, %v5764, %v666
      %v5821 = vsel %vm3141, %v5767, %v669
      %v5822 = vsel %vm3141, %v5772, %v674
      %v5823 = vsel %vm3141, %v5775, %v677
      %v5824 = vsel %vm3141, %v5780, %v682
      %v5825 = vsel %vm3141, %v5783, %v685
      %v5826 = vsel %vm3141, %v5788, %v690
      %v5827 = vsel %vm3141, %v5791, %v693
      %v5828 = vsel %vm3141, %v5796, %v698
      %v5829 = vsel %vm3141, %v5799, %v701
      %v5830 = vsel %vm3141, %v5804, %v706
      %v5831 = vsel %vm3141, %v5807, %v709
      %v5832 = vsel %vm3141, %v5812, %v714
      %v5833 = vsel %vm3141, %v5815, %v717
      %v5834 = vld [vmem:[%s9] sm:$0x1]
      %v5835 = vlaneseq
      %v5836 = vshrl.u32 %v5835, 7
      %v5837 = vsub.s32 0, %v5836
      %v5838 = vrot.slane %v5834, %v5837
      %v5839 = vmul.f32 %v5818, %v5838
      %v5840 = vmul.f32 %v5819, %v5838
      %v5841 = vmul.f32 %v5820, %v5838
      %v5842 = vmul.f32 %v5821, %v5838
      %v5843 = vmul.f32 %v5822, %v5838
      %v5844 = vmul.f32 %v5823, %v5838
      %v5845 = vmul.f32 %v5824, %v5838
      %v5846 = vmul.f32 %v5825, %v5838
      %v5847 = vmul.f32 %v5826, %v5838
      %v5848 = vmul.f32 %v5827, %v5838
      %v5849 = vmul.f32 %v5828, %v5838
      %v5850 = vmul.f32 %v5829, %v5838
      %v5851 = vmul.f32 %v5830, %v5838
      %v5852 = vmul.f32 %v5831, %v5838
      %v5853 = vmul.f32 %v5832, %v5838
      %v5854 = vmul.f32 %v5833, %v5838
      %v5855 = vld [vmem:[%s9 + $0x1] sm:$0x1]
      %v5856 = vlaneseq
      %v5857 = vshrl.u32 %v5856, 7
      %v5858 = vsub.s32 0, %v5857
      %v5859 = vrot.slane %v5855, %v5858
      %v5860 = vadd.f32 %v5839, %v5859
      %v5861 = vadd.f32 %v5840, %v5859
      %v5862 = vadd.f32 %v5841, %v5859
      %v5863 = vadd.f32 %v5842, %v5859
      %v5864 = vadd.f32 %v5843, %v5859
      %v5865 = vadd.f32 %v5844, %v5859
      %v5866 = vadd.f32 %v5845, %v5859
      %v5867 = vadd.f32 %v5846, %v5859
      %v5868 = vadd.f32 %v5847, %v5859
      %v5869 = vadd.f32 %v5848, %v5859
      %v5870 = vadd.f32 %v5849, %v5859
      %v5871 = vadd.f32 %v5850, %v5859
      %v5872 = vadd.f32 %v5851, %v5859
      %v5873 = vadd.f32 %v5852, %v5859
      %v5874 = vadd.f32 %v5853, %v5859
      %v5875 = vadd.f32 %v5854, %v5859
      %v5876 = vxor.u32 %v5860, 2147483648
      %v5877 = vxor.u32 %v5861, 2147483648
      %v5878 = vxor.u32 %v5862, 2147483648
      %v5879 = vxor.u32 %v5863, 2147483648
      %v5880 = vxor.u32 %v5864, 2147483648
      %v5881 = vxor.u32 %v5865, 2147483648
      %v5882 = vxor.u32 %v5866, 2147483648
      %v5883 = vxor.u32 %v5867, 2147483648
      %v5884 = vxor.u32 %v5868, 2147483648
      %v5885 = vxor.u32 %v5869, 2147483648
      %v5886 = vxor.u32 %v5870, 2147483648
      %v5887 = vxor.u32 %v5871, 2147483648
      %v5888 = vxor.u32 %v5872, 2147483648
      %v5889 = vxor.u32 %v5873, 2147483648
      %v5890 = vxor.u32 %v5874, 2147483648
      %v5891 = vxor.u32 %v5875, 2147483648
      %v5892 = vmul.f32 %v5876, 1.442695
      %v5893 = vpow.pop %v5892
      %v5894 = vmul.f32 %v5877, 1.442695
      %v5895 = vpow.pop %v5894
      %v5896 = vmul.f32 %v5878, 1.442695
      %v5897 = vpow.pop %v5896
      %v5898 = vmul.f32 %v5879, 1.442695
      %v5899 = vpow.pop %v5898
      %v5900 = vmul.f32 %v5880, 1.442695
      %v5901 = vpow.pop %v5900
      %v5902 = vmul.f32 %v5881, 1.442695
      %v5903 = vpow.pop %v5902
      %v5904 = vmul.f32 %v5882, 1.442695
      %v5905 = vpow.pop %v5904
      %v5906 = vmul.f32 %v5883, 1.442695
      %v5907 = vpow.pop %v5906
      %v5908 = vmul.f32 %v5884, 1.442695
      %v5909 = vpow.pop %v5908
      %v5910 = vmul.f32 %v5885, 1.442695
      %v5911 = vpow.pop %v5910
      %v5912 = vmul.f32 %v5886, 1.442695
      %v5913 = vpow.pop %v5912
      %v5914 = vmul.f32 %v5887, 1.442695
      %v5915 = vpow.pop %v5914
      %v5916 = vmul.f32 %v5888, 1.442695
      %v5917 = vpow.pop %v5916
      %v5918 = vmul.f32 %v5889, 1.442695
      %v5919 = vpow.pop %v5918
      %v5920 = vmul.f32 %v5890, 1.442695
      %v5921 = vpow.pop %v5920
      %v5922 = vmul.f32 %v5891, 1.442695
      %v5923 = vpow.pop %v5922
      %v5924 = vadd.f32 %v5893, 1.0
      %v5925 = vadd.f32 %v5895, 1.0
      %v5926 = vadd.f32 %v5897, 1.0
      %v5927 = vadd.f32 %v5899, 1.0
      %v5928 = vadd.f32 %v5901, 1.0
      %v5929 = vadd.f32 %v5903, 1.0
      %v5930 = vadd.f32 %v5905, 1.0
      %v5931 = vadd.f32 %v5907, 1.0
      %v5932 = vadd.f32 %v5909, 1.0
      %v5933 = vadd.f32 %v5911, 1.0
      %v5934 = vadd.f32 %v5913, 1.0
      %v5935 = vadd.f32 %v5915, 1.0
      %v5936 = vadd.f32 %v5917, 1.0
      %v5937 = vadd.f32 %v5919, 1.0
      %v5938 = vadd.f32 %v5921, 1.0
      %v5939 = vadd.f32 %v5923, 1.0
      %v5940 = vrcp.pop %v5924
      %v5941 = vmul.f32 1.0, %v5940
      %v5942 = vrcp.pop %v5925
      %v5943 = vmul.f32 1.0, %v5942
      %v5944 = vrcp.pop %v5926
      %v5945 = vmul.f32 1.0, %v5944
      %v5946 = vrcp.pop %v5927
      %v5947 = vmul.f32 1.0, %v5946
      %v5948 = vrcp.pop %v5928
      %v5949 = vmul.f32 1.0, %v5948
      %v5950 = vrcp.pop %v5929
      %v5951 = vmul.f32 1.0, %v5950
      %v5952 = vrcp.pop %v5930
      %v5953 = vmul.f32 1.0, %v5952
      %v5954 = vrcp.pop %v5931
      %v5955 = vmul.f32 1.0, %v5954
      %v5956 = vrcp.pop %v5932
      %v5957 = vmul.f32 1.0, %v5956
      %v5958 = vrcp.pop %v5933
      %v5959 = vmul.f32 1.0, %v5958
      %v5960 = vrcp.pop %v5934
      %v5961 = vmul.f32 1.0, %v5960
      %v5962 = vrcp.pop %v5935
      %v5963 = vmul.f32 1.0, %v5962
      %v5964 = vrcp.pop %v5936
      %v5965 = vmul.f32 1.0, %v5964
      %v5966 = vrcp.pop %v5937
      %v5967 = vmul.f32 1.0, %v5966
      %v5968 = vrcp.pop %v5938
      %v5969 = vmul.f32 1.0, %v5968
      %v5970 = vrcp.pop %v5939
      %v5971 = vmul.f32 1.0, %v5970
      %v5972 = vmul.f32 %v5860, %v5941
      %v5973 = vmul.f32 %v5861, %v5943
      %v5974 = vmul.f32 %v5862, %v5945
      %v5975 = vmul.f32 %v5863, %v5947
      %v5976 = vmul.f32 %v5864, %v5949
      %v5977 = vmul.f32 %v5865, %v5951
      %v5978 = vmul.f32 %v5866, %v5953
      %v5979 = vmul.f32 %v5867, %v5955
      %v5980 = vmul.f32 %v5868, %v5957
      %v5981 = vmul.f32 %v5869, %v5959
      %v5982 = vmul.f32 %v5870, %v5961
      %v5983 = vmul.f32 %v5871, %v5963
      %v5984 = vmul.f32 %v5872, %v5965
      %v5985 = vmul.f32 %v5873, %v5967
      %v5986 = vmul.f32 %v5874, %v5969
      %v5987 = vmul.f32 %v5875, %v5971
      %v5988 = vpack.c.bf16 %v5973, %v5972
      %v5989 = vpack.c.bf16 %v5975, %v5974
      %v5990 = vpack.c.bf16 %v5977, %v5976
      %v5991 = vpack.c.bf16 %v5979, %v5978
      %v5992 = vpack.c.bf16 %v5981, %v5980
      %v5993 = vpack.c.bf16 %v5983, %v5982
      %v5994 = vpack.c.bf16 %v5985, %v5984
      %v5995 = vpack.c.bf16 %v5987, %v5986
      %v5996 = vld [vmem:[%s7] sm:$0x3]
      %v5997 = vld [vmem:[%s10] sm:$0x1]
      %v5999 = vlaneseq
      %v6000 = vshrl.u32 %v5999, 7
      %v6001 = vsub.s32 0, %v6000
      %v6002 = vrot.slane %v5997, %v6001
      %v6005 = vsel %vm594, %v5988, 0
      %v6008 = vsel %vm594, %v5989, 0
      %v6011 = vsel %vm594, %v5990, 0
      %v6014 = vsel %vm594, %v5991, 0
      %v6017 = vsel %vm594, %v5992, 0
      %v6020 = vsel %vm594, %v5993, 0
      %v6023 = vsel %vm594, %v5994, 0
      %v6026 = vsel %vm594, %v5995, 0
      %v6029 = vsel %vm619, %v5996, 0
      %6031 = vmatprep.subr.bf16.mxu0 0
      %6032 = vmatpush1.bf16.msra.mxu0 %v6029
      %6033 = vmatprep.subr.bf16.mxu0 0
      %6034 = vmatpush1.bf16.msra.mxu0 0
      %6035 = vmatprep.subr.bf16.mxu0 0
      %6036 = vmatpush1.bf16.msra.mxu0 0
      %6037 = vmatprep.subr.bf16.mxu0 0
      %6038 = vmatpush1.bf16.msra.mxu0 0
      %6039 = vmatprep.subr.bf16.mxu0 0
      %6040 = vmatpush1.bf16.msra.mxu0 0
      %6041 = vmatprep.subr.bf16.mxu0 0
      %6042 = vmatpush1.bf16.msra.mxu0 0
      %6043 = vmatprep.subr.bf16.mxu0 0
      %6044 = vmatpush1.bf16.msra.mxu0 0
      %6045 = vmatprep.subr.bf16.mxu0 0
      %6046 = vmatpush1.bf16.msra.mxu0 0
      %6047 = vmatprep.subr.bf16.mxu0 0
      %6048 = vmatpush1.bf16.msra.mxu0 0
      %6049 = vmatprep.subr.bf16.mxu0 0
      %6050 = vmatpush1.bf16.msra.mxu0 0
      %6051 = vmatprep.subr.bf16.mxu0 0
      %6052 = vmatpush1.bf16.msra.mxu0 0
      %6053 = vmatprep.subr.bf16.mxu0 0
      %6054 = vmatpush1.bf16.msra.mxu0 0
      %6055 = vmatprep.subr.bf16.mxu0 0
      %6056 = vmatpush1.bf16.msra.mxu0 0
      %6057 = vmatprep.subr.bf16.mxu0 0
      %6058 = vmatpush1.bf16.msra.mxu0 0
      %6059 = vmatprep.subr.bf16.mxu0 0
      %6060 = vmatpush1.bf16.msra.mxu0 0
      %6061 = vmatprep.subr.bf16.mxu0 0
      %6062 = vmatpush1.bf16.msra.mxu0 0
      %6063 = vmatprep.mubr.bf16.mxu0 0
      %6064 = vmatmul.mubr.bf16.gmra.mrb[0].mxu0 %v6005
      %v6065 = vpop.f32.mrb[0].mxu0
      %v6066 = vadd.f32 %v6002, %v6065
      %v6067 = vpop.f32.mrb[0].mxu0
      %v6068 = vpop.f32.mrb[0].mxu0
      %v6069 = vadd.f32 %v6002, %v6068
      %v6070 = vpop.f32.mrb[0].mxu0
      %6071 = vmatprep.mubr.bf16.mxu0 0
      %6072 = vmatmul.mubr.bf16.gmra.mrb[0].mxu0 %v6008
      %v6073 = vpop.f32.mrb[0].mxu0
      %v6074 = vadd.f32 %v6002, %v6073
      %v6075 = vpop.f32.mrb[0].mxu0
      %v6076 = vpop.f32.mrb[0].mxu0
      %v6077 = vadd.f32 %v6002, %v6076
      %v6078 = vpop.f32.mrb[0].mxu0
      %6079 = vmatprep.mubr.bf16.mxu0 0
      %6080 = vmatmul.mubr.bf16.gmra.mrb[0].mxu0 %v6011
      %v6081 = vpop.f32.mrb[0].mxu0
      %v6082 = vadd.f32 %v6002, %v6081
      %v6083 = vpop.f32.mrb[0].mxu0
      %v6084 = vpop.f32.mrb[0].mxu0
      %v6085 = vadd.f32 %v6002, %v6084
      %v6086 = vpop.f32.mrb[0].mxu0
      %6087 = vmatprep.mubr.bf16.mxu0 0
      %6088 = vmatmul.mubr.bf16.gmra.mrb[0].mxu0 %v6014
      %v6089 = vpop.f32.mrb[0].mxu0
      %v6090 = vadd.f32 %v6002, %v6089
      %v6091 = vpop.f32.mrb[0].mxu0
      %v6092 = vpop.f32.mrb[0].mxu0
      %v6093 = vadd.f32 %v6002, %v6092
      %v6094 = vpop.f32.mrb[0].mxu0
      %6095 = vmatprep.mubr.bf16.mxu0 0
      %6096 = vmatmul.mubr.bf16.gmra.mrb[0].mxu0 %v6017
      %v6097 = vpop.f32.mrb[0].mxu0
      %v6098 = vadd.f32 %v6002, %v6097
      %v6099 = vpop.f32.mrb[0].mxu0
      %v6100 = vpop.f32.mrb[0].mxu0
      %v6101 = vadd.f32 %v6002, %v6100
      %v6102 = vpop.f32.mrb[0].mxu0
      %6103 = vmatprep.mubr.bf16.mxu0 0
      %6104 = vmatmul.mubr.bf16.gmra.mrb[0].mxu0 %v6020
      %v6105 = vpop.f32.mrb[0].mxu0
      %v6106 = vadd.f32 %v6002, %v6105
      %v6107 = vpop.f32.mrb[0].mxu0
      %v6108 = vpop.f32.mrb[0].mxu0
      %v6109 = vadd.f32 %v6002, %v6108
      %v6110 = vpop.f32.mrb[0].mxu0
      %6111 = vmatprep.mubr.bf16.mxu0 0
      %6112 = vmatmul.mubr.bf16.gmra.mrb[0].mxu0 %v6023
      %v6113 = vpop.f32.mrb[0].mxu0
      %v6114 = vadd.f32 %v6002, %v6113
      %v6115 = vpop.f32.mrb[0].mxu0
      %v6116 = vpop.f32.mrb[0].mxu0
      %v6117 = vadd.f32 %v6002, %v6116
      %v6118 = vpop.f32.mrb[0].mxu0
      %6119 = vmatprep.mubr.bf16.mxu0 0
      %6120 = vmatmul.mubr.bf16.gmra.mrb[0].mxu0 %v6026
      %v6121 = vpop.f32.mrb[0].mxu0
      %v6122 = vadd.f32 %v6002, %v6121
      %v6123 = vpop.f32.mrb[0].mxu0
      %v6124 = vpop.f32.mrb[0].mxu0
      %v6125 = vadd.f32 %v6002, %v6124
      %v6126 = vpop.f32.mrb[0].mxu0
      %6127 = vdwg.mxu0
      %v6128 = vxor.u32 %v6066, 2147483648
      %v6129 = vxor.u32 %v6069, 2147483648
      %v6130 = vxor.u32 %v6074, 2147483648
      %v6131 = vxor.u32 %v6077, 2147483648
      %v6132 = vxor.u32 %v6082, 2147483648
      %v6133 = vxor.u32 %v6085, 2147483648
      %v6134 = vxor.u32 %v6090, 2147483648
      %v6135 = vxor.u32 %v6093, 2147483648
      %v6136 = vxor.u32 %v6098, 2147483648
      %v6137 = vxor.u32 %v6101, 2147483648
      %v6138 = vxor.u32 %v6106, 2147483648
      %v6139 = vxor.u32 %v6109, 2147483648
      %v6140 = vxor.u32 %v6114, 2147483648
      %v6141 = vxor.u32 %v6117, 2147483648
      %v6142 = vxor.u32 %v6122, 2147483648
      %v6143 = vxor.u32 %v6125, 2147483648
      %v6144 = vmul.f32 %v6128, 1.442695
      %v6145 = vpow.pop %v6144
      %v6146 = vmul.f32 %v6129, 1.442695
      %v6147 = vpow.pop %v6146
      %v6148 = vmul.f32 %v6130, 1.442695
      %v6149 = vpow.pop %v6148
      %v6150 = vmul.f32 %v6131, 1.442695
      %v6151 = vpow.pop %v6150
      %v6152 = vmul.f32 %v6132, 1.442695
      %v6153 = vpow.pop %v6152
      %v6154 = vmul.f32 %v6133, 1.442695
      %v6155 = vpow.pop %v6154
      %v6156 = vmul.f32 %v6134, 1.442695
      %v6157 = vpow.pop %v6156
      %v6158 = vmul.f32 %v6135, 1.442695
      %v6159 = vpow.pop %v6158
      %v6160 = vmul.f32 %v6136, 1.442695
      %v6161 = vpow.pop %v6160
      %v6162 = vmul.f32 %v6137, 1.442695
      %v6163 = vpow.pop %v6162
      %v6164 = vmul.f32 %v6138, 1.442695
      %v6165 = vpow.pop %v6164
      %v6166 = vmul.f32 %v6139, 1.442695
      %v6167 = vpow.pop %v6166
      %v6168 = vmul.f32 %v6140, 1.442695
      %v6169 = vpow.pop %v6168
      %v6170 = vmul.f32 %v6141, 1.442695
      %v6171 = vpow.pop %v6170
      %v6172 = vmul.f32 %v6142, 1.442695
      %v6173 = vpow.pop %v6172
      %v6174 = vmul.f32 %v6143, 1.442695
      %v6175 = vpow.pop %v6174
      %v6176 = vadd.f32 %v6145, 1.0
      %v6177 = vadd.f32 %v6147, 1.0
      %v6178 = vadd.f32 %v6149, 1.0
      %v6179 = vadd.f32 %v6151, 1.0
      %v6180 = vadd.f32 %v6153, 1.0
      %v6181 = vadd.f32 %v6155, 1.0
      %v6182 = vadd.f32 %v6157, 1.0
      %v6183 = vadd.f32 %v6159, 1.0
      %v6184 = vadd.f32 %v6161, 1.0
      %v6185 = vadd.f32 %v6163, 1.0
      %v6186 = vadd.f32 %v6165, 1.0
      %v6187 = vadd.f32 %v6167, 1.0
      %v6188 = vadd.f32 %v6169, 1.0
      %v6189 = vadd.f32 %v6171, 1.0
      %v6190 = vadd.f32 %v6173, 1.0
      %v6191 = vadd.f32 %v6175, 1.0
      %v6192 = vrcp.pop %v6176
      %v6193 = vmul.f32 1.0, %v6192
      %v6194 = vrcp.pop %v6177
      %v6195 = vmul.f32 1.0, %v6194
      %v6196 = vrcp.pop %v6178
      %v6197 = vmul.f32 1.0, %v6196
      %v6198 = vrcp.pop %v6179
      %v6199 = vmul.f32 1.0, %v6198
      %v6200 = vrcp.pop %v6180
      %v6201 = vmul.f32 1.0, %v6200
      %v6202 = vrcp.pop %v6181
      %v6203 = vmul.f32 1.0, %v6202
      %v6204 = vrcp.pop %v6182
      %v6205 = vmul.f32 1.0, %v6204
      %v6206 = vrcp.pop %v6183
      %v6207 = vmul.f32 1.0, %v6206
      %v6208 = vrcp.pop %v6184
      %v6209 = vmul.f32 1.0, %v6208
      %v6210 = vrcp.pop %v6185
      %v6211 = vmul.f32 1.0, %v6210
      %v6212 = vrcp.pop %v6186
      %v6213 = vmul.f32 1.0, %v6212
      %v6214 = vrcp.pop %v6187
      %v6215 = vmul.f32 1.0, %v6214
      %v6216 = vrcp.pop %v6188
      %v6217 = vmul.f32 1.0, %v6216
      %v6218 = vrcp.pop %v6189
      %v6219 = vmul.f32 1.0, %v6218
      %v6220 = vrcp.pop %v6190
      %v6221 = vmul.f32 1.0, %v6220
      %v6222 = vrcp.pop %v6191
      %v6223 = vmul.f32 1.0, %v6222
      %v6224 = vmul.f32 %v6066, %v6193
      %v6225 = vmul.f32 %v6069, %v6195
      %v6226 = vmul.f32 %v6074, %v6197
      %v6227 = vmul.f32 %v6077, %v6199
      %v6228 = vmul.f32 %v6082, %v6201
      %v6229 = vmul.f32 %v6085, %v6203
      %v6230 = vmul.f32 %v6090, %v6205
      %v6231 = vmul.f32 %v6093, %v6207
      %v6232 = vmul.f32 %v6098, %v6209
      %v6233 = vmul.f32 %v6101, %v6211
      %v6234 = vmul.f32 %v6106, %v6213
      %v6235 = vmul.f32 %v6109, %v6215
      %v6236 = vmul.f32 %v6114, %v6217
      %v6237 = vmul.f32 %v6117, %v6219
      %v6238 = vmul.f32 %v6122, %v6221
      %v6239 = vmul.f32 %v6125, %v6223
      %6240 = vst.msk [vmem:[%s563] sm:$0xff] %vm594, %v6224
      %6241 = vst.msk [vmem:[%s563 + $0x8] sm:$0xff] %vm594, %v6225
      %6242 = vst.msk [vmem:[%s563 + $0x10] sm:$0xff] %vm594, %v6226
      %6243 = vst.msk [vmem:[%s563 + $0x18] sm:$0xff] %vm594, %v6227
      %6244 = vst.msk [vmem:[%s563 + $0x20] sm:$0xff] %vm594, %v6228
      %6245 = vst.msk [vmem:[%s563 + $0x28] sm:$0xff] %vm594, %v6229
      %6246 = vst.msk [vmem:[%s563 + $0x30] sm:$0xff] %vm594, %v6230
      %6247 = vst.msk [vmem:[%s563 + $0x38] sm:$0xff] %vm594, %v6231
      %6248 = vst.msk [vmem:[%s563 + $0x40] sm:$0xff] %vm594, %v6232
      %6249 = vst.msk [vmem:[%s563 + $0x48] sm:$0xff] %vm594, %v6233
      %6250 = vst.msk [vmem:[%s563 + $0x50] sm:$0xff] %vm594, %v6234
      %6251 = vst.msk [vmem:[%s563 + $0x58] sm:$0xff] %vm594, %v6235
      %6252 = vst.msk [vmem:[%s563 + $0x60] sm:$0xff] %vm594, %v6236
      %6253 = vst.msk [vmem:[%s563 + $0x68] sm:$0xff] %vm594, %v6237
      %6254 = vst.msk [vmem:[%s563 + $0x70] sm:$0xff] %vm594, %v6238
      %6255 = vst.msk [vmem:[%s563 + $0x78] sm:$0xff] %vm594, %v6239
      %s6256 = smul.u32 8, %s27
      %p6257 = scmp.lt.s32.totalorder %s26, 1
      %s6258 = scalar_select %p6257, %s26, 1
      %p6259 = scmp.lt.s32.totalorder %s6256, 15
      %s6260 = scalar_select %p6259, %s6256, 15
      %s6261 = smul.addr %s6260, 2
      %s6262 = smul.addr %s6258, 32
      %s6263 = sadd.s32 %s6261, %s6262
      %s6264 = smul.addr %s6263, 8
      %s6265 = scalar_lea.vmem %s11, %s6264
      // Predicated region
      $region65: #{bottleneck_csp_pallas.1} parent=63 // pred_check
        %p6266 = pneg %p322
      $region66: #{bottleneck_csp_pallas.1} parent=63 // pred_check_branch
        %6268 = sbr.rel (%p6266) target = $region68
      $region67: #{bottleneck_csp_pallas.1} parent=63 // pred_region
        %s6269 = smul.u32 8, %s27
      $region68: #{bottleneck_csp_pallas.1} parent=63 // pred_fallthru
        _
    $region64: #{bottleneck_csp_pallas.1} parent=5 // pred_fallthru
      _
    %p6270 = scmp.le.s32.totalorder 2, %s17
    // Predicated region
    $region69: #{bottleneck_csp_pallas.1} parent=5 // pred_check
      %p6271 = pneg %p6270
    $region70: #{bottleneck_csp_pallas.1} parent=5 // pred_check_branch
      %6273 = sbr.rel (%p6271) target = $region72
    $region71: #{bottleneck_csp_pallas.1} parent=5 // pred_region
      %s6274 = ssub.s32 %s17, 2
      // Predicated region
      $region73: #{bottleneck_csp_pallas.1} parent=71 // pred_check
        %p6275 = pneg %p328
      $region74: #{bottleneck_csp_pallas.1} parent=71 // pred_check_branch
        %6277 = sbr.rel (%p6275) target = $region76
      $region75: #{bottleneck_csp_pallas.1} parent=71 // pred_region
        %s6278 = smul.u32 8, %s29
        %p6279 = scmp.lt.s32.totalorder %s28, 1
        %s6280 = scalar_select %p6279, %s28, 1
        %p6281 = scmp.lt.s32.totalorder %s6278, 15
        %s6282 = scalar_select %p6281, %s6278, 15
        %s6283 = smul.addr %s6282, 2
        %s6284 = smul.addr %s6280, 32
        %s6285 = sadd.s32 %s6283, %s6284
        %s6286 = smul.addr %s6285, 8
        %s6287 = scalar_lea.vmem %s11, %s6286
      $region76: #{bottleneck_csp_pallas.1} parent=71 // pred_fallthru
        _
    $region72: #{bottleneck_csp_pallas.1} parent=5 // pred_fallthru
      _
  $region6: #{bottleneck_csp_pallas.1} parent=0 // loop_footer
    %s21 = sadd.s32 1, %s17
  $region7: #{bottleneck_csp_pallas.1} parent=0 // loop_footer_branch
    %16 = sbr.rel target = $region3
  $region8: #{bottleneck_csp_pallas.1} parent=0 // loop_exit
    _

</llo_original>
